<compile_context>
chip_gen: v7x
topology: tpu7x:2x2x1
jax: 0.10.0
libtpu: 0.0.40
codegen_flags: <defaults>
</compile_context>

<pallas_src>
import jax
import jax.numpy as jnp
from jax.experimental import pallas as pl
from jax.experimental.pallas import tpu as pltpu
import numpy as np

INPUT_SIZE = 12
HIDDEN_SIZE = 50
HIDDEN_PAD = 128          # each gate gets its own 128-lane slab
OUTPUT_SIZE = 1
BATCH_PAD = 8             # sublane-aligned rows per timestep


def _cell_update(gates, c, HP):
    # PyTorch nn.LSTM gate order: i, f, g, o (each in its own 128-lane slab).
    # All elementwise / transcendental math stays in f32 (v5e has no bf16
    # VPU/EUP path); only matmul operands are bf16.
    i = jax.nn.sigmoid(gates[:, 0 * HP:1 * HP])
    f = jax.nn.sigmoid(gates[:, 1 * HP:2 * HP])
    g = jnp.tanh(gates[:, 2 * HP:3 * HP])
    o = jax.nn.sigmoid(gates[:, 3 * HP:4 * HP])
    c_new = f * c + i * g
    h_new = o * jnp.tanh(c_new)
    return h_new, c_new


def lstm_model_kernel(x_ref, wih1_ref, whh1_ref, b1_ref,
                      w2_ref, b2_ref, wfc_ref, bfc_ref, out_ref):
    BP = out_ref.shape[0]                 # padded batch rows (8)
    T = x_ref.shape[0] // BP
    HP = whh1_ref.shape[0]                # 128

    # Hoisted layer-1 input projection: one (T*BP, I) @ (I, 4*HP) matmul +
    # bias, entirely off the recurrent critical path.  Rows are time-major
    # (row = t*BP + b), so each per-step slice below is (8,128)-tile aligned.
    xp1 = (jnp.dot(x_ref[...], wih1_ref[...],
                   preferred_element_type=jnp.float32) + b1_ref[...])

    zeros_f32 = jnp.zeros((BP, HP), jnp.float32)
    zeros_bf16 = jnp.zeros((BP, HP), jnp.bfloat16)
    b2 = jnp.broadcast_to(b2_ref[...], (BP, 4 * HP))   # hoist bias broadcast

    # h lives in bf16 (matmul LHS only); c and all gate math stay in f32.
    h1, c1 = zeros_bf16, zeros_f32
    h2, c2 = zeros_bf16, zeros_f32
    h2_f = zeros_f32
    for t in range(T):
        # ---- layer 1, step t (bf16 MXU, f32 accumulate) ----
        g1 = xp1[t * BP:(t + 1) * BP, :] + jnp.dot(
            h1, whh1_ref[...], preferred_element_type=jnp.float32)
        h1_f, c1 = _cell_update(g1, c1, HP)
        h1 = h1_f.astype(jnp.bfloat16)

        # dropout1 (p=0.2) is identity at inference time.

        # ---- layer 2, step t: fused 256-deep contraction ----
        # [h1_t | h2] (BP, 2*HP) @ [wih2; whh2] (2*HP, 4*HP)
        lhs2 = jnp.concatenate([h1, h2], axis=-1)
        g2 = jnp.dot(lhs2, w2_ref[...],
                     preferred_element_type=jnp.float32) + b2
        h2_f, c2 = _cell_update(g2, c2, HP)
        h2 = h2_f.astype(jnp.bfloat16)

    # dropout2 is identity at inference; fc on the final hidden state (f32).
    out_ref[...] = (jnp.dot(h2_f, wfc_ref[...],
                            preferred_element_type=jnp.float32) + bfc_ref[...])


def lstm_model_forward(x, padded_params):
    """x: (B, T, INPUT_SIZE) batch-first, like the PyTorch module."""
    B, T, I = x.shape
    BP = max(BATCH_PAD, ((B + 7) // 8) * 8)
    # Time-major, batch padded to a full 8-sublane slab per timestep
    # (row = t*BP + b; rows b >= B are zero and discarded at the end).
    x_tb = jnp.transpose(x, (1, 0, 2))                       # (T, B, I)
    x_pad = jnp.zeros((T, BP, I), x.dtype).at[:, :B, :].set(x_tb)
    x2d = x_pad.reshape(T * BP, I)
    # NOTE: at serving batch sizes >> 8, add a leading batch grid axis with
    # dimension_semantics=("parallel",) so v7x's two TensorCores each run an
    # independent batch shard; at B=2 the grid-less single call is optimal.
    out = pl.pallas_call(
        lstm_model_kernel,
        out_shape=jax.ShapeDtypeStruct((BP, OUTPUT_SIZE), jnp.float32),
        in_specs=[pl.BlockSpec(memory_space=pltpu.MemorySpace.VMEM)] * 8,
        out_specs=pl.BlockSpec(memory_space=pltpu.MemorySpace.VMEM),
    )(x2d,
      padded_params["wih1"], padded_params["whh1"], padded_params["b1"],
      padded_params["w2"], padded_params["b2"],
      padded_params["wfc"], padded_params["bfc"])
    return out[:B]


def init_params(key):
    """Deterministic synthetic params, PyTorch-style U(-1/sqrt(H), 1/sqrt(H)).

    Natural (unpadded) layout, weights already transposed for `x @ W`:
      wih: (in, 4H), whh: (H, 4H), b: (1, 4H) [= b_ih + b_hh], wfc: (H, 1).
    """
    H, I, O = HIDDEN_SIZE, INPUT_SIZE, OUTPUT_SIZE
    stdv = 1.0 / np.sqrt(H)
    ks = jax.random.split(key, 10)

    def u(k, shape):
        return jax.random.uniform(k, shape, jnp.float32, -stdv, stdv)

    wih1 = u(ks[0], (I, 4 * H))
    whh1 = u(ks[1], (H, 4 * H))
    b1 = u(ks[2], (1, 4 * H)) + u(ks[3], (1, 4 * H))
    wih2 = u(ks[4], (H, 4 * H))
    whh2 = u(ks[5], (H, 4 * H))
    b2 = u(ks[6], (1, 4 * H)) + u(ks[7], (1, 4 * H))
    wfc = u(ks[8], (H, O))
    bfc = u(ks[9], (1, O))
    return dict(wih1=wih1, whh1=whh1, b1=b1,
                wih2=wih2, whh2=whh2, b2=b2,
                wfc=wfc, bfc=bfc)


def pad_params(params, H=HIDDEN_SIZE, HP=HIDDEN_PAD):
    """One-time lane-aligned (and bf16) weight layout.

    * Each gate gets its own 128-lane slab; padded rows/cols/lanes are zero.
      With zero initial state, sigmoid(0)=0.5 / tanh(0)=0 keeps the padded
      part of h and c exactly zero through the whole recurrence (bf16 zeros
      are exact), so no masking is needed in the kernel.
    * Recurrent weights are stored as bfloat16 (single-pass MXU, half DMA);
      biases, the tiny layer-1 input weight, and the fc head stay f32.
    * Layer-2's input and recurrent weights are stacked into one
      (2*HP, 4*HP) matrix for the fused 256-deep contraction.
    """
    def pad_gate_cols(w):                       # (R, 4H) -> (R, 4*HP)
        r = w.shape[0]
        out = jnp.zeros((r, 4, HP), w.dtype).at[:, :, :H].set(
            w.reshape(r, 4, H))
        return out.reshape(r, 4 * HP)

    def pad_rows(w):                            # (H, C) -> (HP, C)
        return jnp.zeros((HP,) + w.shape[1:], w.dtype).at[:H].set(w)

    wih2_p = pad_gate_cols(pad_rows(params["wih2"]))         # (HP, 4*HP)
    whh2_p = pad_gate_cols(pad_rows(params["whh2"]))         # (HP, 4*HP)
    w2 = jnp.concatenate([wih2_p, whh2_p], axis=0)           # (2*HP, 4*HP)

    return dict(
        wih1=pad_gate_cols(params["wih1"]),                           # f32
        whh1=pad_gate_cols(pad_rows(params["whh1"])).astype(jnp.bfloat16),
        b1=pad_gate_cols(params["b1"]),                               # f32
        w2=w2.astype(jnp.bfloat16),                                   # bf16
        b2=pad_gate_cols(params["b2"]),                               # f32
        wfc=pad_rows(params["wfc"]),                                  # f32
        bfc=params["bfc"],                                            # f32
    )


def lstm_model_ref(x, params):
    """Pure-JAX f32 reference of the same forward pass (eval-mode dropout)."""
    B, T, _ = x.shape
    H = HIDDEN_SIZE

    def run_layer(xs_btI, wih, whh, b):
        def step(carry, x_t):
            h, c = carry
            gates = x_t @ wih + h @ whh + b[0]
            i = jax.nn.sigmoid(gates[:, :H])
            f = jax.nn.sigmoid(gates[:, H:2 * H])
            g = jnp.tanh(gates[:, 2 * H:3 * H])
            o = jax.nn.sigmoid(gates[:, 3 * H:])
            c = f * c + i * g
            h = o * jnp.tanh(c)
            return (h, c), h
        init = (jnp.zeros((B, H), jnp.float32), jnp.zeros((B, H), jnp.float32))
        _, ys = jax.lax.scan(step, init, jnp.transpose(xs_btI, (1, 0, 2)))
        return jnp.transpose(ys, (1, 0, 2))  # back to (B, T, H)

    y1 = run_layer(x, params["wih1"], params["whh1"], params["b1"])
    y2 = run_layer(y1, params["wih2"], params["whh2"], params["b2"])
    return y2[:, -1, :] @ params["wfc"] + params["bfc"]


if __name__ == "__main__":
    key = jax.random.PRNGKey(0)
    kx, kp = jax.random.split(key)
    B, T = 2, 8
    x = jax.random.normal(kx, (B, T, INPUT_SIZE), jnp.float32)
    params = init_params(kp)
    padded = pad_params(params)       # one-time lane-aligned bf16 layout

    out = jax.block_until_ready(lstm_model_forward(x, padded))
    ref = jax.block_until_ready(lstm_model_ref(x, params))

    assert out.shape == (B, OUTPUT_SIZE)
    # bf16 recurrent weights -> ~1e-2-level deviation from the f32 reference.
    np.testing.assert_allclose(np.asarray(out), np.asarray(ref),
                               rtol=5e-2, atol=5e-2)
    print("KERNEL_OK")
</pallas_src>

<mosaic_0001>
module attributes {stable_mosaic.version = 11 : i64} {
  func.func @lstm_model_kernel(%arg0: memref<64x12xf32, #tpu.memory_space<vmem>>, %arg1: memref<12x512xf32, #tpu.memory_space<vmem>>, %arg2: memref<128x512xbf16, #tpu.memory_space<vmem>>, %arg3: memref<1x512xf32, #tpu.memory_space<vmem>>, %arg4: memref<256x512xbf16, #tpu.memory_space<vmem>>, %arg5: memref<1x512xf32, #tpu.memory_space<vmem>>, %arg6: memref<128x1xf32, #tpu.memory_space<vmem>>, %arg7: memref<1x1xf32, #tpu.memory_space<vmem>>, %arg8: memref<8x1xf32, #tpu.memory_space<vmem>>) attributes {dimension_semantics = [], scalar_prefetch = 0 : i64, scratch_operands = 0 : i64, tpu.core_type = #tpu.core_type<tc>} {
    %c0 = arith.constant 0 : index
    %c0_0 = arith.constant 0 : index
    %0 = vector.load %arg0[%c0, %c0_0] : memref<64x12xf32, #tpu.memory_space<vmem>>, vector<64x12xf32>
    %c0_1 = arith.constant 0 : index
    %c0_2 = arith.constant 0 : index
    %1 = vector.load %arg1[%c0_1, %c0_2] : memref<12x512xf32, #tpu.memory_space<vmem>>, vector<12x512xf32>
    %cst = arith.constant dense<0.000000e+00> : vector<64x512xf32>
    %2 = tpu.matmul %0, %1, %cst {dimension_numbers = #tpu.dot_dimension_numbers<[1], [0], [0], [1], [0, 0, 1, 1], [], []>} : vector<64x12xf32>, vector<12x512xf32>, vector<64x512xf32> -> vector<64x512xf32>
    %c0_3 = arith.constant 0 : index
    %c0_4 = arith.constant 0 : index
    %3 = vector.load %arg3[%c0_3, %c0_4] : memref<1x512xf32, #tpu.memory_space<vmem>>, vector<1x512xf32>
    %4 = vector.broadcast %3 : vector<1x512xf32> to vector<64x512xf32>
    %5 = arith.addf %2, %4 : vector<64x512xf32>
    %cst_5 = arith.constant 0.000000e+00 : f32
    %6 = vector.broadcast %cst_5 : f32 to vector<8x128xf32>
    %cst_6 = arith.constant 0.000000e+00 : bf16
    %7 = vector.broadcast %cst_6 : bf16 to vector<8x128xbf16>
    %c0_7 = arith.constant 0 : index
    %c0_8 = arith.constant 0 : index
    %8 = vector.load %arg5[%c0_7, %c0_8] : memref<1x512xf32, #tpu.memory_space<vmem>>, vector<1x512xf32>
    %9 = vector.shape_cast %8 : vector<1x512xf32> to vector<1x512xf32>
    %10 = vector.broadcast %9 : vector<1x512xf32> to vector<8x512xf32>
    %11 = vector.extract_strided_slice %5 {offsets = [0, 0], sizes = [8, 512], strides = [1, 1]} : vector<64x512xf32> to vector<8x512xf32>
    %c0_9 = arith.constant 0 : index
    %c0_10 = arith.constant 0 : index
    %12 = vector.load %arg2[%c0_9, %c0_10] : memref<128x512xbf16, #tpu.memory_space<vmem>>, vector<128x512xbf16>
    %cst_11 = arith.constant dense<0.000000e+00> : vector<8x512xf32>
    %13 = tpu.matmul %7, %12, %cst_11 {dimension_numbers = #tpu.dot_dimension_numbers<[1], [0], [0], [1], [0, 0, 1, 1], [], []>} : vector<8x128xbf16>, vector<128x512xbf16>, vector<8x512xf32> -> vector<8x512xf32>
    %14 = arith.addf %11, %13 : vector<8x512xf32>
    %15 = vector.extract_strided_slice %14 {offsets = [0, 0], sizes = [8, 128], strides = [1, 1]} : vector<8x512xf32> to vector<8x128xf32>
    %16 = arith.negf %15 : vector<8x128xf32>
    %17 = math.exp %16 : vector<8x128xf32>
    %cst_12 = arith.constant 1.000000e+00 : f32
    %18 = vector.broadcast %cst_12 : f32 to vector<8x128xf32>
    %19 = arith.addf %18, %17 : vector<8x128xf32>
    %20 = arith.divf %18, %19 : vector<8x128xf32>
    %21 = vector.extract_strided_slice %14 {offsets = [0, 128], sizes = [8, 128], strides = [1, 1]} : vector<8x512xf32> to vector<8x128xf32>
    %22 = arith.negf %21 : vector<8x128xf32>
    %23 = math.exp %22 : vector<8x128xf32>
    %cst_13 = arith.constant 1.000000e+00 : f32
    %24 = vector.broadcast %cst_13 : f32 to vector<8x128xf32>
    %25 = arith.addf %24, %23 : vector<8x128xf32>
    %26 = arith.divf %24, %25 : vector<8x128xf32>
    %27 = vector.extract_strided_slice %14 {offsets = [0, 256], sizes = [8, 128], strides = [1, 1]} : vector<8x512xf32> to vector<8x128xf32>
    %28 = math.tanh %27 : vector<8x128xf32>
    %29 = vector.extract_strided_slice %14 {offsets = [0, 384], sizes = [8, 128], strides = [1, 1]} : vector<8x512xf32> to vector<8x128xf32>
    %30 = arith.negf %29 : vector<8x128xf32>
    %31 = math.exp %30 : vector<8x128xf32>
    %cst_14 = arith.constant 1.000000e+00 : f32
    %32 = vector.broadcast %cst_14 : f32 to vector<8x128xf32>
    %33 = arith.addf %32, %31 : vector<8x128xf32>
    %34 = arith.divf %32, %33 : vector<8x128xf32>
    %35 = arith.mulf %26, %6 : vector<8x128xf32>
    %36 = arith.mulf %20, %28 : vector<8x128xf32>
    %37 = arith.addf %35, %36 : vector<8x128xf32>
    %38 = math.tanh %37 : vector<8x128xf32>
    %39 = arith.mulf %34, %38 : vector<8x128xf32>
    %40 = arith.truncf %39 : vector<8x128xf32> to vector<8x128xbf16>
    %41 = tpu.concatenate %40, %7 in 1 : vector<8x128xbf16>, vector<8x128xbf16> -> vector<8x256xbf16>
    %c0_15 = arith.constant 0 : index
    %c0_16 = arith.constant 0 : index
    %42 = vector.load %arg4[%c0_15, %c0_16] : memref<256x512xbf16, #tpu.memory_space<vmem>>, vector<256x512xbf16>
    %cst_17 = arith.constant dense<0.000000e+00> : vector<8x512xf32>
    %43 = tpu.matmul %41, %42, %cst_17 {dimension_numbers = #tpu.dot_dimension_numbers<[1], [0], [0], [1], [0, 0, 1, 1], [], []>} : vector<8x256xbf16>, vector<256x512xbf16>, vector<8x512xf32> -> vector<8x512xf32>
    %44 = arith.addf %43, %10 : vector<8x512xf32>
    %45 = vector.extract_strided_slice %44 {offsets = [0, 0], sizes = [8, 128], strides = [1, 1]} : vector<8x512xf32> to vector<8x128xf32>
    %46 = arith.negf %45 : vector<8x128xf32>
    %47 = math.exp %46 : vector<8x128xf32>
    %cst_18 = arith.constant 1.000000e+00 : f32
    %48 = vector.broadcast %cst_18 : f32 to vector<8x128xf32>
    %49 = arith.addf %48, %47 : vector<8x128xf32>
    %50 = arith.divf %48, %49 : vector<8x128xf32>
    %51 = vector.extract_strided_slice %44 {offsets = [0, 128], sizes = [8, 128], strides = [1, 1]} : vector<8x512xf32> to vector<8x128xf32>
    %52 = arith.negf %51 : vector<8x128xf32>
    %53 = math.exp %52 : vector<8x128xf32>
    %cst_19 = arith.constant 1.000000e+00 : f32
    %54 = vector.broadcast %cst_19 : f32 to vector<8x128xf32>
    %55 = arith.addf %54, %53 : vector<8x128xf32>
    %56 = arith.divf %54, %55 : vector<8x128xf32>
    %57 = vector.extract_strided_slice %44 {offsets = [0, 256], sizes = [8, 128], strides = [1, 1]} : vector<8x512xf32> to vector<8x128xf32>
    %58 = math.tanh %57 : vector<8x128xf32>
    %59 = vector.extract_strided_slice %44 {offsets = [0, 384], sizes = [8, 128], strides = [1, 1]} : vector<8x512xf32> to vector<8x128xf32>
    %60 = arith.negf %59 : vector<8x128xf32>
    %61 = math.exp %60 : vector<8x128xf32>
    %cst_20 = arith.constant 1.000000e+00 : f32
    %62 = vector.broadcast %cst_20 : f32 to vector<8x128xf32>
    %63 = arith.addf %62, %61 : vector<8x128xf32>
    %64 = arith.divf %62, %63 : vector<8x128xf32>
    %65 = arith.mulf %56, %6 : vector<8x128xf32>
    %66 = arith.mulf %50, %58 : vector<8x128xf32>
    %67 = arith.addf %65, %66 : vector<8x128xf32>
    %68 = math.tanh %67 : vector<8x128xf32>
    %69 = arith.mulf %64, %68 : vector<8x128xf32>
    %70 = arith.truncf %69 : vector<8x128xf32> to vector<8x128xbf16>
    %71 = vector.extract_strided_slice %5 {offsets = [8, 0], sizes = [8, 512], strides = [1, 1]} : vector<64x512xf32> to vector<8x512xf32>
    %c0_21 = arith.constant 0 : index
    %c0_22 = arith.constant 0 : index
    %72 = vector.load %arg2[%c0_21, %c0_22] : memref<128x512xbf16, #tpu.memory_space<vmem>>, vector<128x512xbf16>
    %cst_23 = arith.constant dense<0.000000e+00> : vector<8x512xf32>
    %73 = tpu.matmul %40, %72, %cst_23 {dimension_numbers = #tpu.dot_dimension_numbers<[1], [0], [0], [1], [0, 0, 1, 1], [], []>} : vector<8x128xbf16>, vector<128x512xbf16>, vector<8x512xf32> -> vector<8x512xf32>
    %74 = arith.addf %71, %73 : vector<8x512xf32>
    %75 = vector.extract_strided_slice %74 {offsets = [0, 0], sizes = [8, 128], strides = [1, 1]} : vector<8x512xf32> to vector<8x128xf32>
    %76 = arith.negf %75 : vector<8x128xf32>
    %77 = math.exp %76 : vector<8x128xf32>
    %cst_24 = arith.constant 1.000000e+00 : f32
    %78 = vector.broadcast %cst_24 : f32 to vector<8x128xf32>
    %79 = arith.addf %78, %77 : vector<8x128xf32>
    %80 = arith.divf %78, %79 : vector<8x128xf32>
    %81 = vector.extract_strided_slice %74 {offsets = [0, 128], sizes = [8, 128], strides = [1, 1]} : vector<8x512xf32> to vector<8x128xf32>
    %82 = arith.negf %81 : vector<8x128xf32>
    %83 = math.exp %82 : vector<8x128xf32>
    %cst_25 = arith.constant 1.000000e+00 : f32
    %84 = vector.broadcast %cst_25 : f32 to vector<8x128xf32>
    %85 = arith.addf %84, %83 : vector<8x128xf32>
    %86 = arith.divf %84, %85 : vector<8x128xf32>
    %87 = vector.extract_strided_slice %74 {offsets = [0, 256], sizes = [8, 128], strides = [1, 1]} : vector<8x512xf32> to vector<8x128xf32>
    %88 = math.tanh %87 : vector<8x128xf32>
    %89 = vector.extract_strided_slice %74 {offsets = [0, 384], sizes = [8, 128], strides = [1, 1]} : vector<8x512xf32> to vector<8x128xf32>
    %90 = arith.negf %89 : vector<8x128xf32>
    %91 = math.exp %90 : vector<8x128xf32>
    %cst_26 = arith.constant 1.000000e+00 : f32
    %92 = vector.broadcast %cst_26 : f32 to vector<8x128xf32>
    %93 = arith.addf %92, %91 : vector<8x128xf32>
    %94 = arith.divf %92, %93 : vector<8x128xf32>
    %95 = arith.mulf %86, %37 : vector<8x128xf32>
    %96 = arith.mulf %80, %88 : vector<8x128xf32>
    %97 = arith.addf %95, %96 : vector<8x128xf32>
    %98 = math.tanh %97 : vector<8x128xf32>
    %99 = arith.mulf %94, %98 : vector<8x128xf32>
    %100 = arith.truncf %99 : vector<8x128xf32> to vector<8x128xbf16>
    %101 = tpu.concatenate %100, %70 in 1 : vector<8x128xbf16>, vector<8x128xbf16> -> vector<8x256xbf16>
    %c0_27 = arith.constant 0 : index
    %c0_28 = arith.constant 0 : index
    %102 = vector.load %arg4[%c0_27, %c0_28] : memref<256x512xbf16, #tpu.memory_space<vmem>>, vector<256x512xbf16>
    %cst_29 = arith.constant dense<0.000000e+00> : vector<8x512xf32>
    %103 = tpu.matmul %101, %102, %cst_29 {dimension_numbers = #tpu.dot_dimension_numbers<[1], [0], [0], [1], [0, 0, 1, 1], [], []>} : vector<8x256xbf16>, vector<256x512xbf16>, vector<8x512xf32> -> vector<8x512xf32>
    %104 = arith.addf %103, %10 : vector<8x512xf32>
    %105 = vector.extract_strided_slice %104 {offsets = [0, 0], sizes = [8, 128], strides = [1, 1]} : vector<8x512xf32> to vector<8x128xf32>
    %106 = arith.negf %105 : vector<8x128xf32>
    %107 = math.exp %106 : vector<8x128xf32>
    %cst_30 = arith.constant 1.000000e+00 : f32
    %108 = vector.broadcast %cst_30 : f32 to vector<8x128xf32>
    %109 = arith.addf %108, %107 : vector<8x128xf32>
    %110 = arith.divf %108, %109 : vector<8x128xf32>
    %111 = vector.extract_strided_slice %104 {offsets = [0, 128], sizes = [8, 128], strides = [1, 1]} : vector<8x512xf32> to vector<8x128xf32>
    %112 = arith.negf %111 : vector<8x128xf32>
    %113 = math.exp %112 : vector<8x128xf32>
    %cst_31 = arith.constant 1.000000e+00 : f32
    %114 = vector.broadcast %cst_31 : f32 to vector<8x128xf32>
    %115 = arith.addf %114, %113 : vector<8x128xf32>
    %116 = arith.divf %114, %115 : vector<8x128xf32>
    %117 = vector.extract_strided_slice %104 {offsets = [0, 256], sizes = [8, 128], strides = [1, 1]} : vector<8x512xf32> to vector<8x128xf32>
    %118 = math.tanh %117 : vector<8x128xf32>
    %119 = vector.extract_strided_slice %104 {offsets = [0, 384], sizes = [8, 128], strides = [1, 1]} : vector<8x512xf32> to vector<8x128xf32>
    %120 = arith.negf %119 : vector<8x128xf32>
    %121 = math.exp %120 : vector<8x128xf32>
    %cst_32 = arith.constant 1.000000e+00 : f32
    %122 = vector.broadcast %cst_32 : f32 to vector<8x128xf32>
    %123 = arith.addf %122, %121 : vector<8x128xf32>
    %124 = arith.divf %122, %123 : vector<8x128xf32>
    %125 = arith.mulf %116, %67 : vector<8x128xf32>
    %126 = arith.mulf %110, %118 : vector<8x128xf32>
    %127 = arith.addf %125, %126 : vector<8x128xf32>
    %128 = math.tanh %127 : vector<8x128xf32>
    %129 = arith.mulf %124, %128 : vector<8x128xf32>
    %130 = arith.truncf %129 : vector<8x128xf32> to vector<8x128xbf16>
    %131 = vector.extract_strided_slice %5 {offsets = [16, 0], sizes = [8, 512], strides = [1, 1]} : vector<64x512xf32> to vector<8x512xf32>
    %c0_33 = arith.constant 0 : index
    %c0_34 = arith.constant 0 : index
    %132 = vector.load %arg2[%c0_33, %c0_34] : memref<128x512xbf16, #tpu.memory_space<vmem>>, vector<128x512xbf16>
    %cst_35 = arith.constant dense<0.000000e+00> : vector<8x512xf32>
    %133 = tpu.matmul %100, %132, %cst_35 {dimension_numbers = #tpu.dot_dimension_numbers<[1], [0], [0], [1], [0, 0, 1, 1], [], []>} : vector<8x128xbf16>, vector<128x512xbf16>, vector<8x512xf32> -> vector<8x512xf32>
    %134 = arith.addf %131, %133 : vector<8x512xf32>
    %135 = vector.extract_strided_slice %134 {offsets = [0, 0], sizes = [8, 128], strides = [1, 1]} : vector<8x512xf32> to vector<8x128xf32>
    %136 = arith.negf %135 : vector<8x128xf32>
    %137 = math.exp %136 : vector<8x128xf32>
    %cst_36 = arith.constant 1.000000e+00 : f32
    %138 = vector.broadcast %cst_36 : f32 to vector<8x128xf32>
    %139 = arith.addf %138, %137 : vector<8x128xf32>
    %140 = arith.divf %138, %139 : vector<8x128xf32>
    %141 = vector.extract_strided_slice %134 {offsets = [0, 128], sizes = [8, 128], strides = [1, 1]} : vector<8x512xf32> to vector<8x128xf32>
    %142 = arith.negf %141 : vector<8x128xf32>
    %143 = math.exp %142 : vector<8x128xf32>
    %cst_37 = arith.constant 1.000000e+00 : f32
    %144 = vector.broadcast %cst_37 : f32 to vector<8x128xf32>
    %145 = arith.addf %144, %143 : vector<8x128xf32>
    %146 = arith.divf %144, %145 : vector<8x128xf32>
    %147 = vector.extract_strided_slice %134 {offsets = [0, 256], sizes = [8, 128], strides = [1, 1]} : vector<8x512xf32> to vector<8x128xf32>
    %148 = math.tanh %147 : vector<8x128xf32>
    %149 = vector.extract_strided_slice %134 {offsets = [0, 384], sizes = [8, 128], strides = [1, 1]} : vector<8x512xf32> to vector<8x128xf32>
    %150 = arith.negf %149 : vector<8x128xf32>
    %151 = math.exp %150 : vector<8x128xf32>
    %cst_38 = arith.constant 1.000000e+00 : f32
    %152 = vector.broadcast %cst_38 : f32 to vector<8x128xf32>
    %153 = arith.addf %152, %151 : vector<8x128xf32>
    %154 = arith.divf %152, %153 : vector<8x128xf32>
    %155 = arith.mulf %146, %97 : vector<8x128xf32>
    %156 = arith.mulf %140, %148 : vector<8x128xf32>
    %157 = arith.addf %155, %156 : vector<8x128xf32>
    %158 = math.tanh %157 : vector<8x128xf32>
    %159 = arith.mulf %154, %158 : vector<8x128xf32>
    %160 = arith.truncf %159 : vector<8x128xf32> to vector<8x128xbf16>
    %161 = tpu.concatenate %160, %130 in 1 : vector<8x128xbf16>, vector<8x128xbf16> -> vector<8x256xbf16>
    %c0_39 = arith.constant 0 : index
    %c0_40 = arith.constant 0 : index
    %162 = vector.load %arg4[%c0_39, %c0_40] : memref<256x512xbf16, #tpu.memory_space<vmem>>, vector<256x512xbf16>
    %cst_41 = arith.constant dense<0.000000e+00> : vector<8x512xf32>
    %163 = tpu.matmul %161, %162, %cst_41 {dimension_numbers = #tpu.dot_dimension_numbers<[1], [0], [0], [1], [0, 0, 1, 1], [], []>} : vector<8x256xbf16>, vector<256x512xbf16>, vector<8x512xf32> -> vector<8x512xf32>
    %164 = arith.addf %163, %10 : vector<8x512xf32>
    %165 = vector.extract_strided_slice %164 {offsets = [0, 0], sizes = [8, 128], strides = [1, 1]} : vector<8x512xf32> to vector<8x128xf32>
    %166 = arith.negf %165 : vector<8x128xf32>
    %167 = math.exp %166 : vector<8x128xf32>
    %cst_42 = arith.constant 1.000000e+00 : f32
    %168 = vector.broadcast %cst_42 : f32 to vector<8x128xf32>
    %169 = arith.addf %168, %167 : vector<8x128xf32>
    %170 = arith.divf %168, %169 : vector<8x128xf32>
    %171 = vector.extract_strided_slice %164 {offsets = [0, 128], sizes = [8, 128], strides = [1, 1]} : vector<8x512xf32> to vector<8x128xf32>
    %172 = arith.negf %171 : vector<8x128xf32>
    %173 = math.exp %172 : vector<8x128xf32>
    %cst_43 = arith.constant 1.000000e+00 : f32
    %174 = vector.broadcast %cst_43 : f32 to vector<8x128xf32>
    %175 = arith.addf %174, %173 : vector<8x128xf32>
    %176 = arith.divf %174, %175 : vector<8x128xf32>
    %177 = vector.extract_strided_slice %164 {offsets = [0, 256], sizes = [8, 128], strides = [1, 1]} : vector<8x512xf32> to vector<8x128xf32>
    %178 = math.tanh %177 : vector<8x128xf32>
    %179 = vector.extract_strided_slice %164 {offsets = [0, 384], sizes = [8, 128], strides = [1, 1]} : vector<8x512xf32> to vector<8x128xf32>
    %180 = arith.negf %179 : vector<8x128xf32>
    %181 = math.exp %180 : vector<8x128xf32>
    %cst_44 = arith.constant 1.000000e+00 : f32
    %182 = vector.broadcast %cst_44 : f32 to vector<8x128xf32>
    %183 = arith.addf %182, %181 : vector<8x128xf32>
    %184 = arith.divf %182, %183 : vector<8x128xf32>
    %185 = arith.mulf %176, %127 : vector<8x128xf32>
    %186 = arith.mulf %170, %178 : vector<8x128xf32>
    %187 = arith.addf %185, %186 : vector<8x128xf32>
    %188 = math.tanh %187 : vector<8x128xf32>
    %189 = arith.mulf %184, %188 : vector<8x128xf32>
    %190 = arith.truncf %189 : vector<8x128xf32> to vector<8x128xbf16>
    %191 = vector.extract_strided_slice %5 {offsets = [24, 0], sizes = [8, 512], strides = [1, 1]} : vector<64x512xf32> to vector<8x512xf32>
    %c0_45 = arith.constant 0 : index
    %c0_46 = arith.constant 0 : index
    %192 = vector.load %arg2[%c0_45, %c0_46] : memref<128x512xbf16, #tpu.memory_space<vmem>>, vector<128x512xbf16>
    %cst_47 = arith.constant dense<0.000000e+00> : vector<8x512xf32>
    %193 = tpu.matmul %160, %192, %cst_47 {dimension_numbers = #tpu.dot_dimension_numbers<[1], [0], [0], [1], [0, 0, 1, 1], [], []>} : vector<8x128xbf16>, vector<128x512xbf16>, vector<8x512xf32> -> vector<8x512xf32>
    %194 = arith.addf %191, %193 : vector<8x512xf32>
    %195 = vector.extract_strided_slice %194 {offsets = [0, 0], sizes = [8, 128], strides = [1, 1]} : vector<8x512xf32> to vector<8x128xf32>
    %196 = arith.negf %195 : vector<8x128xf32>
    %197 = math.exp %196 : vector<8x128xf32>
    %cst_48 = arith.constant 1.000000e+00 : f32
    %198 = vector.broadcast %cst_48 : f32 to vector<8x128xf32>
    %199 = arith.addf %198, %197 : vector<8x128xf32>
    %200 = arith.divf %198, %199 : vector<8x128xf32>
    %201 = vector.extract_strided_slice %194 {offsets = [0, 128], sizes = [8, 128], strides = [1, 1]} : vector<8x512xf32> to vector<8x128xf32>
    %202 = arith.negf %201 : vector<8x128xf32>
    %203 = math.exp %202 : vector<8x128xf32>
    %cst_49 = arith.constant 1.000000e+00 : f32
    %204 = vector.broadcast %cst_49 : f32 to vector<8x128xf32>
    %205 = arith.addf %204, %203 : vector<8x128xf32>
    %206 = arith.divf %204, %205 : vector<8x128xf32>
    %207 = vector.extract_strided_slice %194 {offsets = [0, 256], sizes = [8, 128], strides = [1, 1]} : vector<8x512xf32> to vector<8x128xf32>
    %208 = math.tanh %207 : vector<8x128xf32>
    %209 = vector.extract_strided_slice %194 {offsets = [0, 384], sizes = [8, 128], strides = [1, 1]} : vector<8x512xf32> to vector<8x128xf32>
    %210 = arith.negf %209 : vector<8x128xf32>
    %211 = math.exp %210 : vector<8x128xf32>
    %cst_50 = arith.constant 1.000000e+00 : f32
    %212 = vector.broadcast %cst_50 : f32 to vector<8x128xf32>
    %213 = arith.addf %212, %211 : vector<8x128xf32>
    %214 = arith.divf %212, %213 : vector<8x128xf32>
    %215 = arith.mulf %206, %157 : vector<8x128xf32>
    %216 = arith.mulf %200, %208 : vector<8x128xf32>
    %217 = arith.addf %215, %216 : vector<8x128xf32>
    %218 = math.tanh %217 : vector<8x128xf32>
    %219 = arith.mulf %214, %218 : vector<8x128xf32>
    %220 = arith.truncf %219 : vector<8x128xf32> to vector<8x128xbf16>
    %221 = tpu.concatenate %220, %190 in 1 : vector<8x128xbf16>, vector<8x128xbf16> -> vector<8x256xbf16>
    %c0_51 = arith.constant 0 : index
    %c0_52 = arith.constant 0 : index
    %222 = vector.load %arg4[%c0_51, %c0_52] : memref<256x512xbf16, #tpu.memory_space<vmem>>, vector<256x512xbf16>
    %cst_53 = arith.constant dense<0.000000e+00> : vector<8x512xf32>
    %223 = tpu.matmul %221, %222, %cst_53 {dimension_numbers = #tpu.dot_dimension_numbers<[1], [0], [0], [1], [0, 0, 1, 1], [], []>} : vector<8x256xbf16>, vector<256x512xbf16>, vector<8x512xf32> -> vector<8x512xf32>
    %224 = arith.addf %223, %10 : vector<8x512xf32>
    %225 = vector.extract_strided_slice %224 {offsets = [0, 0], sizes = [8, 128], strides = [1, 1]} : vector<8x512xf32> to vector<8x128xf32>
    %226 = arith.negf %225 : vector<8x128xf32>
    %227 = math.exp %226 : vector<8x128xf32>
    %cst_54 = arith.constant 1.000000e+00 : f32
    %228 = vector.broadcast %cst_54 : f32 to vector<8x128xf32>
    %229 = arith.addf %228, %227 : vector<8x128xf32>
    %230 = arith.divf %228, %229 : vector<8x128xf32>
    %231 = vector.extract_strided_slice %224 {offsets = [0, 128], sizes = [8, 128], strides = [1, 1]} : vector<8x512xf32> to vector<8x128xf32>
    %232 = arith.negf %231 : vector<8x128xf32>
    %233 = math.exp %232 : vector<8x128xf32>
    %cst_55 = arith.constant 1.000000e+00 : f32
    %234 = vector.broadcast %cst_55 : f32 to vector<8x128xf32>
    %235 = arith.addf %234, %233 : vector<8x128xf32>
    %236 = arith.divf %234, %235 : vector<8x128xf32>
    %237 = vector.extract_strided_slice %224 {offsets = [0, 256], sizes = [8, 128], strides = [1, 1]} : vector<8x512xf32> to vector<8x128xf32>
    %238 = math.tanh %237 : vector<8x128xf32>
    %239 = vector.extract_strided_slice %224 {offsets = [0, 384], sizes = [8, 128], strides = [1, 1]} : vector<8x512xf32> to vector<8x128xf32>
    %240 = arith.negf %239 : vector<8x128xf32>
    %241 = math.exp %240 : vector<8x128xf32>
    %cst_56 = arith.constant 1.000000e+00 : f32
    %242 = vector.broadcast %cst_56 : f32 to vector<8x128xf32>
    %243 = arith.addf %242, %241 : vector<8x128xf32>
    %244 = arith.divf %242, %243 : vector<8x128xf32>
    %245 = arith.mulf %236, %187 : vector<8x128xf32>
    %246 = arith.mulf %230, %238 : vector<8x128xf32>
    %247 = arith.addf %245, %246 : vector<8x128xf32>
    %248 = math.tanh %247 : vector<8x128xf32>
    %249 = arith.mulf %244, %248 : vector<8x128xf32>
    %250 = arith.truncf %249 : vector<8x128xf32> to vector<8x128xbf16>
    %251 = vector.extract_strided_slice %5 {offsets = [32, 0], sizes = [8, 512], strides = [1, 1]} : vector<64x512xf32> to vector<8x512xf32>
    %c0_57 = arith.constant 0 : index
    %c0_58 = arith.constant 0 : index
    %252 = vector.load %arg2[%c0_57, %c0_58] : memref<128x512xbf16, #tpu.memory_space<vmem>>, vector<128x512xbf16>
    %cst_59 = arith.constant dense<0.000000e+00> : vector<8x512xf32>
    %253 = tpu.matmul %220, %252, %cst_59 {dimension_numbers = #tpu.dot_dimension_numbers<[1], [0], [0], [1], [0, 0, 1, 1], [], []>} : vector<8x128xbf16>, vector<128x512xbf16>, vector<8x512xf32> -> vector<8x512xf32>
    %254 = arith.addf %251, %253 : vector<8x512xf32>
    %255 = vector.extract_strided_slice %254 {offsets = [0, 0], sizes = [8, 128], strides = [1, 1]} : vector<8x512xf32> to vector<8x128xf32>
    %256 = arith.negf %255 : vector<8x128xf32>
    %257 = math.exp %256 : vector<8x128xf32>
    %cst_60 = arith.constant 1.000000e+00 : f32
    %258 = vector.broadcast %cst_60 : f32 to vector<8x128xf32>
    %259 = arith.addf %258, %257 : vector<8x128xf32>
    %260 = arith.divf %258, %259 : vector<8x128xf32>
    %261 = vector.extract_strided_slice %254 {offsets = [0, 128], sizes = [8, 128], strides = [1, 1]} : vector<8x512xf32> to vector<8x128xf32>
    %262 = arith.negf %261 : vector<8x128xf32>
    %263 = math.exp %262 : vector<8x128xf32>
    %cst_61 = arith.constant 1.000000e+00 : f32
    %264 = vector.broadcast %cst_61 : f32 to vector<8x128xf32>
    %265 = arith.addf %264, %263 : vector<8x128xf32>
    %266 = arith.divf %264, %265 : vector<8x128xf32>
    %267 = vector.extract_strided_slice %254 {offsets = [0, 256], sizes = [8, 128], strides = [1, 1]} : vector<8x512xf32> to vector<8x128xf32>
    %268 = math.tanh %267 : vector<8x128xf32>
    %269 = vector.extract_strided_slice %254 {offsets = [0, 384], sizes = [8, 128], strides = [1, 1]} : vector<8x512xf32> to vector<8x128xf32>
    %270 = arith.negf %269 : vector<8x128xf32>
    %271 = math.exp %270 : vector<8x128xf32>
    %cst_62 = arith.constant 1.000000e+00 : f32
    %272 = vector.broadcast %cst_62 : f32 to vector<8x128xf32>
    %273 = arith.addf %272, %271 : vector<8x128xf32>
    %274 = arith.divf %272, %273 : vector<8x128xf32>
    %275 = arith.mulf %266, %217 : vector<8x128xf32>
    %276 = arith.mulf %260, %268 : vector<8x128xf32>
    %277 = arith.addf %275, %276 : vector<8x128xf32>
    %278 = math.tanh %277 : vector<8x128xf32>
    %279 = arith.mulf %274, %278 : vector<8x128xf32>
    %280 = arith.truncf %279 : vector<8x128xf32> to vector<8x128xbf16>
    %281 = tpu.concatenate %280, %250 in 1 : vector<8x128xbf16>, vector<8x128xbf16> -> vector<8x256xbf16>
    %c0_63 = arith.constant 0 : index
    %c0_64 = arith.constant 0 : index
    %282 = vector.load %arg4[%c0_63, %c0_64] : memref<256x512xbf16, #tpu.memory_space<vmem>>, vector<256x512xbf16>
    %cst_65 = arith.constant dense<0.000000e+00> : vector<8x512xf32>
    %283 = tpu.matmul %281, %282, %cst_65 {dimension_numbers = #tpu.dot_dimension_numbers<[1], [0], [0], [1], [0, 0, 1, 1], [], []>} : vector<8x256xbf16>, vector<256x512xbf16>, vector<8x512xf32> -> vector<8x512xf32>
    %284 = arith.addf %283, %10 : vector<8x512xf32>
    %285 = vector.extract_strided_slice %284 {offsets = [0, 0], sizes = [8, 128], strides = [1, 1]} : vector<8x512xf32> to vector<8x128xf32>
    %286 = arith.negf %285 : vector<8x128xf32>
    %287 = math.exp %286 : vector<8x128xf32>
    %cst_66 = arith.constant 1.000000e+00 : f32
    %288 = vector.broadcast %cst_66 : f32 to vector<8x128xf32>
    %289 = arith.addf %288, %287 : vector<8x128xf32>
    %290 = arith.divf %288, %289 : vector<8x128xf32>
    %291 = vector.extract_strided_slice %284 {offsets = [0, 128], sizes = [8, 128], strides = [1, 1]} : vector<8x512xf32> to vector<8x128xf32>
    %292 = arith.negf %291 : vector<8x128xf32>
    %293 = math.exp %292 : vector<8x128xf32>
    %cst_67 = arith.constant 1.000000e+00 : f32
    %294 = vector.broadcast %cst_67 : f32 to vector<8x128xf32>
    %295 = arith.addf %294, %293 : vector<8x128xf32>
    %296 = arith.divf %294, %295 : vector<8x128xf32>
    %297 = vector.extract_strided_slice %284 {offsets = [0, 256], sizes = [8, 128], strides = [1, 1]} : vector<8x512xf32> to vector<8x128xf32>
    %298 = math.tanh %297 : vector<8x128xf32>
    %299 = vector.extract_strided_slice %284 {offsets = [0, 384], sizes = [8, 128], strides = [1, 1]} : vector<8x512xf32> to vector<8x128xf32>
    %300 = arith.negf %299 : vector<8x128xf32>
    %301 = math.exp %300 : vector<8x128xf32>
    %cst_68 = arith.constant 1.000000e+00 : f32
    %302 = vector.broadcast %cst_68 : f32 to vector<8x128xf32>
    %303 = arith.addf %302, %301 : vector<8x128xf32>
    %304 = arith.divf %302, %303 : vector<8x128xf32>
    %305 = arith.mulf %296, %247 : vector<8x128xf32>
    %306 = arith.mulf %290, %298 : vector<8x128xf32>
    %307 = arith.addf %305, %306 : vector<8x128xf32>
    %308 = math.tanh %307 : vector<8x128xf32>
    %309 = arith.mulf %304, %308 : vector<8x128xf32>
    %310 = arith.truncf %309 : vector<8x128xf32> to vector<8x128xbf16>
    %311 = vector.extract_strided_slice %5 {offsets = [40, 0], sizes = [8, 512], strides = [1, 1]} : vector<64x512xf32> to vector<8x512xf32>
    %c0_69 = arith.constant 0 : index
    %c0_70 = arith.constant 0 : index
    %312 = vector.load %arg2[%c0_69, %c0_70] : memref<128x512xbf16, #tpu.memory_space<vmem>>, vector<128x512xbf16>
    %cst_71 = arith.constant dense<0.000000e+00> : vector<8x512xf32>
    %313 = tpu.matmul %280, %312, %cst_71 {dimension_numbers = #tpu.dot_dimension_numbers<[1], [0], [0], [1], [0, 0, 1, 1], [], []>} : vector<8x128xbf16>, vector<128x512xbf16>, vector<8x512xf32> -> vector<8x512xf32>
    %314 = arith.addf %311, %313 : vector<8x512xf32>
    %315 = vector.extract_strided_slice %314 {offsets = [0, 0], sizes = [8, 128], strides = [1, 1]} : vector<8x512xf32> to vector<8x128xf32>
    %316 = arith.negf %315 : vector<8x128xf32>
    %317 = math.exp %316 : vector<8x128xf32>
    %cst_72 = arith.constant 1.000000e+00 : f32
    %318 = vector.broadcast %cst_72 : f32 to vector<8x128xf32>
    %319 = arith.addf %318, %317 : vector<8x128xf32>
    %320 = arith.divf %318, %319 : vector<8x128xf32>
    %321 = vector.extract_strided_slice %314 {offsets = [0, 128], sizes = [8, 128], strides = [1, 1]} : vector<8x512xf32> to vector<8x128xf32>
    %322 = arith.negf %321 : vector<8x128xf32>
    %323 = math.exp %322 : vector<8x128xf32>
    %cst_73 = arith.constant 1.000000e+00 : f32
    %324 = vector.broadcast %cst_73 : f32 to vector<8x128xf32>
    %325 = arith.addf %324, %323 : vector<8x128xf32>
    %326 = arith.divf %324, %325 : vector<8x128xf32>
    %327 = vector.extract_strided_slice %314 {offsets = [0, 256], sizes = [8, 128], strides = [1, 1]} : vector<8x512xf32> to vector<8x128xf32>
    %328 = math.tanh %327 : vector<8x128xf32>
    %329 = vector.extract_strided_slice %314 {offsets = [0, 384], sizes = [8, 128], strides = [1, 1]} : vector<8x512xf32> to vector<8x128xf32>
    %330 = arith.negf %329 : vector<8x128xf32>
    %331 = math.exp %330 : vector<8x128xf32>
    %cst_74 = arith.constant 1.000000e+00 : f32
    %332 = vector.broadcast %cst_74 : f32 to vector<8x128xf32>
    %333 = arith.addf %332, %331 : vector<8x128xf32>
    %334 = arith.divf %332, %333 : vector<8x128xf32>
    %335 = arith.mulf %326, %277 : vector<8x128xf32>
    %336 = arith.mulf %320, %328 : vector<8x128xf32>
    %337 = arith.addf %335, %336 : vector<8x128xf32>
    %338 = math.tanh %337 : vector<8x128xf32>
    %339 = arith.mulf %334, %338 : vector<8x128xf32>
    %340 = arith.truncf %339 : vector<8x128xf32> to vector<8x128xbf16>
    %341 = tpu.concatenate %340, %310 in 1 : vector<8x128xbf16>, vector<8x128xbf16> -> vector<8x256xbf16>
    %c0_75 = arith.constant 0 : index
    %c0_76 = arith.constant 0 : index
    %342 = vector.load %arg4[%c0_75, %c0_76] : memref<256x512xbf16, #tpu.memory_space<vmem>>, vector<256x512xbf16>
    %cst_77 = arith.constant dense<0.000000e+00> : vector<8x512xf32>
    %343 = tpu.matmul %341, %342, %cst_77 {dimension_numbers = #tpu.dot_dimension_numbers<[1], [0], [0], [1], [0, 0, 1, 1], [], []>} : vector<8x256xbf16>, vector<256x512xbf16>, vector<8x512xf32> -> vector<8x512xf32>
    %344 = arith.addf %343, %10 : vector<8x512xf32>
    %345 = vector.extract_strided_slice %344 {offsets = [0, 0], sizes = [8, 128], strides = [1, 1]} : vector<8x512xf32> to vector<8x128xf32>
    %346 = arith.negf %345 : vector<8x128xf32>
    %347 = math.exp %346 : vector<8x128xf32>
    %cst_78 = arith.constant 1.000000e+00 : f32
    %348 = vector.broadcast %cst_78 : f32 to vector<8x128xf32>
    %349 = arith.addf %348, %347 : vector<8x128xf32>
    %350 = arith.divf %348, %349 : vector<8x128xf32>
    %351 = vector.extract_strided_slice %344 {offsets = [0, 128], sizes = [8, 128], strides = [1, 1]} : vector<8x512xf32> to vector<8x128xf32>
    %352 = arith.negf %351 : vector<8x128xf32>
    %353 = math.exp %352 : vector<8x128xf32>
    %cst_79 = arith.constant 1.000000e+00 : f32
    %354 = vector.broadcast %cst_79 : f32 to vector<8x128xf32>
    %355 = arith.addf %354, %353 : vector<8x128xf32>
    %356 = arith.divf %354, %355 : vector<8x128xf32>
    %357 = vector.extract_strided_slice %344 {offsets = [0, 256], sizes = [8, 128], strides = [1, 1]} : vector<8x512xf32> to vector<8x128xf32>
    %358 = math.tanh %357 : vector<8x128xf32>
    %359 = vector.extract_strided_slice %344 {offsets = [0, 384], sizes = [8, 128], strides = [1, 1]} : vector<8x512xf32> to vector<8x128xf32>
    %360 = arith.negf %359 : vector<8x128xf32>
    %361 = math.exp %360 : vector<8x128xf32>
    %cst_80 = arith.constant 1.000000e+00 : f32
    %362 = vector.broadcast %cst_80 : f32 to vector<8x128xf32>
    %363 = arith.addf %362, %361 : vector<8x128xf32>
    %364 = arith.divf %362, %363 : vector<8x128xf32>
    %365 = arith.mulf %356, %307 : vector<8x128xf32>
    %366 = arith.mulf %350, %358 : vector<8x128xf32>
    %367 = arith.addf %365, %366 : vector<8x128xf32>
    %368 = math.tanh %367 : vector<8x128xf32>
    %369 = arith.mulf %364, %368 : vector<8x128xf32>
    %370 = arith.truncf %369 : vector<8x128xf32> to vector<8x128xbf16>
    %371 = vector.extract_strided_slice %5 {offsets = [48, 0], sizes = [8, 512], strides = [1, 1]} : vector<64x512xf32> to vector<8x512xf32>
    %c0_81 = arith.constant 0 : index
    %c0_82 = arith.constant 0 : index
    %372 = vector.load %arg2[%c0_81, %c0_82] : memref<128x512xbf16, #tpu.memory_space<vmem>>, vector<128x512xbf16>
    %cst_83 = arith.constant dense<0.000000e+00> : vector<8x512xf32>
    %373 = tpu.matmul %340, %372, %cst_83 {dimension_numbers = #tpu.dot_dimension_numbers<[1], [0], [0], [1], [0, 0, 1, 1], [], []>} : vector<8x128xbf16>, vector<128x512xbf16>, vector<8x512xf32> -> vector<8x512xf32>
    %374 = arith.addf %371, %373 : vector<8x512xf32>
    %375 = vector.extract_strided_slice %374 {offsets = [0, 0], sizes = [8, 128], strides = [1, 1]} : vector<8x512xf32> to vector<8x128xf32>
    %376 = arith.negf %375 : vector<8x128xf32>
    %377 = math.exp %376 : vector<8x128xf32>
    %cst_84 = arith.constant 1.000000e+00 : f32
    %378 = vector.broadcast %cst_84 : f32 to vector<8x128xf32>
    %379 = arith.addf %378, %377 : vector<8x128xf32>
    %380 = arith.divf %378, %379 : vector<8x128xf32>
    %381 = vector.extract_strided_slice %374 {offsets = [0, 128], sizes = [8, 128], strides = [1, 1]} : vector<8x512xf32> to vector<8x128xf32>
    %382 = arith.negf %381 : vector<8x128xf32>
    %383 = math.exp %382 : vector<8x128xf32>
    %cst_85 = arith.constant 1.000000e+00 : f32
    %384 = vector.broadcast %cst_85 : f32 to vector<8x128xf32>
    %385 = arith.addf %384, %383 : vector<8x128xf32>
    %386 = arith.divf %384, %385 : vector<8x128xf32>
    %387 = vector.extract_strided_slice %374 {offsets = [0, 256], sizes = [8, 128], strides = [1, 1]} : vector<8x512xf32> to vector<8x128xf32>
    %388 = math.tanh %387 : vector<8x128xf32>
    %389 = vector.extract_strided_slice %374 {offsets = [0, 384], sizes = [8, 128], strides = [1, 1]} : vector<8x512xf32> to vector<8x128xf32>
    %390 = arith.negf %389 : vector<8x128xf32>
    %391 = math.exp %390 : vector<8x128xf32>
    %cst_86 = arith.constant 1.000000e+00 : f32
    %392 = vector.broadcast %cst_86 : f32 to vector<8x128xf32>
    %393 = arith.addf %392, %391 : vector<8x128xf32>
    %394 = arith.divf %392, %393 : vector<8x128xf32>
    %395 = arith.mulf %386, %337 : vector<8x128xf32>
    %396 = arith.mulf %380, %388 : vector<8x128xf32>
    %397 = arith.addf %395, %396 : vector<8x128xf32>
    %398 = math.tanh %397 : vector<8x128xf32>
    %399 = arith.mulf %394, %398 : vector<8x128xf32>
    %400 = arith.truncf %399 : vector<8x128xf32> to vector<8x128xbf16>
    %401 = tpu.concatenate %400, %370 in 1 : vector<8x128xbf16>, vector<8x128xbf16> -> vector<8x256xbf16>
    %c0_87 = arith.constant 0 : index
    %c0_88 = arith.constant 0 : index
    %402 = vector.load %arg4[%c0_87, %c0_88] : memref<256x512xbf16, #tpu.memory_space<vmem>>, vector<256x512xbf16>
    %cst_89 = arith.constant dense<0.000000e+00> : vector<8x512xf32>
    %403 = tpu.matmul %401, %402, %cst_89 {dimension_numbers = #tpu.dot_dimension_numbers<[1], [0], [0], [1], [0, 0, 1, 1], [], []>} : vector<8x256xbf16>, vector<256x512xbf16>, vector<8x512xf32> -> vector<8x512xf32>
    %404 = arith.addf %403, %10 : vector<8x512xf32>
    %405 = vector.extract_strided_slice %404 {offsets = [0, 0], sizes = [8, 128], strides = [1, 1]} : vector<8x512xf32> to vector<8x128xf32>
    %406 = arith.negf %405 : vector<8x128xf32>
    %407 = math.exp %406 : vector<8x128xf32>
    %cst_90 = arith.constant 1.000000e+00 : f32
    %408 = vector.broadcast %cst_90 : f32 to vector<8x128xf32>
    %409 = arith.addf %408, %407 : vector<8x128xf32>
    %410 = arith.divf %408, %409 : vector<8x128xf32>
    %411 = vector.extract_strided_slice %404 {offsets = [0, 128], sizes = [8, 128], strides = [1, 1]} : vector<8x512xf32> to vector<8x128xf32>
    %412 = arith.negf %411 : vector<8x128xf32>
    %413 = math.exp %412 : vector<8x128xf32>
    %cst_91 = arith.constant 1.000000e+00 : f32
    %414 = vector.broadcast %cst_91 : f32 to vector<8x128xf32>
    %415 = arith.addf %414, %413 : vector<8x128xf32>
    %416 = arith.divf %414, %415 : vector<8x128xf32>
    %417 = vector.extract_strided_slice %404 {offsets = [0, 256], sizes = [8, 128], strides = [1, 1]} : vector<8x512xf32> to vector<8x128xf32>
    %418 = math.tanh %417 : vector<8x128xf32>
    %419 = vector.extract_strided_slice %404 {offsets = [0, 384], sizes = [8, 128], strides = [1, 1]} : vector<8x512xf32> to vector<8x128xf32>
    %420 = arith.negf %419 : vector<8x128xf32>
    %421 = math.exp %420 : vector<8x128xf32>
    %cst_92 = arith.constant 1.000000e+00 : f32
    %422 = vector.broadcast %cst_92 : f32 to vector<8x128xf32>
    %423 = arith.addf %422, %421 : vector<8x128xf32>
    %424 = arith.divf %422, %423 : vector<8x128xf32>
    %425 = arith.mulf %416, %367 : vector<8x128xf32>
    %426 = arith.mulf %410, %418 : vector<8x128xf32>
    %427 = arith.addf %425, %426 : vector<8x128xf32>
    %428 = math.tanh %427 : vector<8x128xf32>
    %429 = arith.mulf %424, %428 : vector<8x128xf32>
    %430 = arith.truncf %429 : vector<8x128xf32> to vector<8x128xbf16>
    %431 = vector.extract_strided_slice %5 {offsets = [56, 0], sizes = [8, 512], strides = [1, 1]} : vector<64x512xf32> to vector<8x512xf32>
    %c0_93 = arith.constant 0 : index
    %c0_94 = arith.constant 0 : index
    %432 = vector.load %arg2[%c0_93, %c0_94] : memref<128x512xbf16, #tpu.memory_space<vmem>>, vector<128x512xbf16>
    %cst_95 = arith.constant dense<0.000000e+00> : vector<8x512xf32>
    %433 = tpu.matmul %400, %432, %cst_95 {dimension_numbers = #tpu.dot_dimension_numbers<[1], [0], [0], [1], [0, 0, 1, 1], [], []>} : vector<8x128xbf16>, vector<128x512xbf16>, vector<8x512xf32> -> vector<8x512xf32>
    %434 = arith.addf %431, %433 : vector<8x512xf32>
    %435 = vector.extract_strided_slice %434 {offsets = [0, 0], sizes = [8, 128], strides = [1, 1]} : vector<8x512xf32> to vector<8x128xf32>
    %436 = arith.negf %435 : vector<8x128xf32>
    %437 = math.exp %436 : vector<8x128xf32>
    %cst_96 = arith.constant 1.000000e+00 : f32
    %438 = vector.broadcast %cst_96 : f32 to vector<8x128xf32>
    %439 = arith.addf %438, %437 : vector<8x128xf32>
    %440 = arith.divf %438, %439 : vector<8x128xf32>
    %441 = vector.extract_strided_slice %434 {offsets = [0, 128], sizes = [8, 128], strides = [1, 1]} : vector<8x512xf32> to vector<8x128xf32>
    %442 = arith.negf %441 : vector<8x128xf32>
    %443 = math.exp %442 : vector<8x128xf32>
    %cst_97 = arith.constant 1.000000e+00 : f32
    %444 = vector.broadcast %cst_97 : f32 to vector<8x128xf32>
    %445 = arith.addf %444, %443 : vector<8x128xf32>
    %446 = arith.divf %444, %445 : vector<8x128xf32>
    %447 = vector.extract_strided_slice %434 {offsets = [0, 256], sizes = [8, 128], strides = [1, 1]} : vector<8x512xf32> to vector<8x128xf32>
    %448 = math.tanh %447 : vector<8x128xf32>
    %449 = vector.extract_strided_slice %434 {offsets = [0, 384], sizes = [8, 128], strides = [1, 1]} : vector<8x512xf32> to vector<8x128xf32>
    %450 = arith.negf %449 : vector<8x128xf32>
    %451 = math.exp %450 : vector<8x128xf32>
    %cst_98 = arith.constant 1.000000e+00 : f32
    %452 = vector.broadcast %cst_98 : f32 to vector<8x128xf32>
    %453 = arith.addf %452, %451 : vector<8x128xf32>
    %454 = arith.divf %452, %453 : vector<8x128xf32>
    %455 = arith.mulf %446, %397 : vector<8x128xf32>
    %456 = arith.mulf %440, %448 : vector<8x128xf32>
    %457 = arith.addf %455, %456 : vector<8x128xf32>
    %458 = math.tanh %457 : vector<8x128xf32>
    %459 = arith.mulf %454, %458 : vector<8x128xf32>
    %460 = arith.truncf %459 : vector<8x128xf32> to vector<8x128xbf16>
    %461 = tpu.concatenate %460, %430 in 1 : vector<8x128xbf16>, vector<8x128xbf16> -> vector<8x256xbf16>
    %c0_99 = arith.constant 0 : index
    %c0_100 = arith.constant 0 : index
    %462 = vector.load %arg4[%c0_99, %c0_100] : memref<256x512xbf16, #tpu.memory_space<vmem>>, vector<256x512xbf16>
    %cst_101 = arith.constant dense<0.000000e+00> : vector<8x512xf32>
    %463 = tpu.matmul %461, %462, %cst_101 {dimension_numbers = #tpu.dot_dimension_numbers<[1], [0], [0], [1], [0, 0, 1, 1], [], []>} : vector<8x256xbf16>, vector<256x512xbf16>, vector<8x512xf32> -> vector<8x512xf32>
    %464 = arith.addf %463, %10 : vector<8x512xf32>
    %465 = vector.extract_strided_slice %464 {offsets = [0, 0], sizes = [8, 128], strides = [1, 1]} : vector<8x512xf32> to vector<8x128xf32>
    %466 = arith.negf %465 : vector<8x128xf32>
    %467 = math.exp %466 : vector<8x128xf32>
    %cst_102 = arith.constant 1.000000e+00 : f32
    %468 = vector.broadcast %cst_102 : f32 to vector<8x128xf32>
    %469 = arith.addf %468, %467 : vector<8x128xf32>
    %470 = arith.divf %468, %469 : vector<8x128xf32>
    %471 = vector.extract_strided_slice %464 {offsets = [0, 128], sizes = [8, 128], strides = [1, 1]} : vector<8x512xf32> to vector<8x128xf32>
    %472 = arith.negf %471 : vector<8x128xf32>
    %473 = math.exp %472 : vector<8x128xf32>
    %cst_103 = arith.constant 1.000000e+00 : f32
    %474 = vector.broadcast %cst_103 : f32 to vector<8x128xf32>
    %475 = arith.addf %474, %473 : vector<8x128xf32>
    %476 = arith.divf %474, %475 : vector<8x128xf32>
    %477 = vector.extract_strided_slice %464 {offsets = [0, 256], sizes = [8, 128], strides = [1, 1]} : vector<8x512xf32> to vector<8x128xf32>
    %478 = math.tanh %477 : vector<8x128xf32>
    %479 = vector.extract_strided_slice %464 {offsets = [0, 384], sizes = [8, 128], strides = [1, 1]} : vector<8x512xf32> to vector<8x128xf32>
    %480 = arith.negf %479 : vector<8x128xf32>
    %481 = math.exp %480 : vector<8x128xf32>
    %cst_104 = arith.constant 1.000000e+00 : f32
    %482 = vector.broadcast %cst_104 : f32 to vector<8x128xf32>
    %483 = arith.addf %482, %481 : vector<8x128xf32>
    %484 = arith.divf %482, %483 : vector<8x128xf32>
    %485 = arith.mulf %476, %427 : vector<8x128xf32>
    %486 = arith.mulf %470, %478 : vector<8x128xf32>
    %487 = arith.addf %485, %486 : vector<8x128xf32>
    %488 = math.tanh %487 : vector<8x128xf32>
    %489 = arith.mulf %484, %488 : vector<8x128xf32>
    %c0_105 = arith.constant 0 : index
    %c0_106 = arith.constant 0 : index
    %490 = vector.load %arg6[%c0_105, %c0_106] : memref<128x1xf32, #tpu.memory_space<vmem>>, vector<128x1xf32>
    %cst_107 = arith.constant dense<0.000000e+00> : vector<8x1xf32>
    %491 = tpu.matmul %489, %490, %cst_107 {dimension_numbers = #tpu.dot_dimension_numbers<[1], [0], [0], [1], [0, 0, 1, 1], [], []>} : vector<8x128xf32>, vector<128x1xf32>, vector<8x1xf32> -> vector<8x1xf32>
    %c0_108 = arith.constant 0 : index
    %c0_109 = arith.constant 0 : index
    %492 = vector.load %arg7[%c0_108, %c0_109] : memref<1x1xf32, #tpu.memory_space<vmem>>, vector<1x1xf32>
    %493 = vector.broadcast %492 : vector<1x1xf32> to vector<8x1xf32>
    %494 = arith.addf %491, %493 : vector<8x1xf32>
    %c0_110 = arith.constant 0 : index
    %c0_111 = arith.constant 0 : index
    %495 = vector.load %arg8[%c0_110, %c0_111] : memref<8x1xf32, #tpu.memory_space<vmem>>, vector<8x1xf32>
    tpu.vector_store %arg8[%c0_110, %c0_111], %494 {strides = array<i32>} : memref<8x1xf32, #tpu.memory_space<vmem>>, vector<8x1xf32>,
    return
  }
}

</mosaic_0001>

<llo_original>
// kernel: tpu_custom_call.1
$region0: #{tpu_custom_call.1}
  #allocation0 [shape = 'u32[]', space=smem, size = 0x4, offset = 0x4, fixed_abs, tag = 'smem constant byte address 0x4 - core index']
  #allocation1 [shape = 'u32[144,128]{1,0:T(1,128)}', space=vmem, size = 0x12000, scoped, tag = 'internal scratch']
  #allocation2 [shape = 'f32[1,1]{1,0:T(1,128)S(1)}', space=vmem, size = 0x200, scoped, tag = 'scoped memory for tpu_custom_call.1']
  %s0 = inlined_call_operand.vmem [shape: f32[64,12], index: 0, kind: input, shape index: {}]
  %s1 = inlined_call_operand.vmem [shape: f32[12,512], index: 1, kind: input, shape index: {}]
  %s2 = inlined_call_operand.hbm [shape: bf16[128,512], index: 2, kind: input, shape index: {}]
  %s3 = inlined_call_operand.vmem [shape: f32[1,512], index: 3, kind: input, shape index: {}]
  %s4 = inlined_call_operand.hbm [shape: bf16[256,512], index: 4, kind: input, shape index: {}]
  %s5 = inlined_call_operand.vmem [shape: f32[1,512], index: 5, kind: input, shape index: {}]
  %s6 = inlined_call_operand.vmem [shape: f32[128,1], index: 6, kind: input, shape index: {}]
  %s7 = inlined_call_operand.<no memory space> [shape: f32[1,1], index: 7, kind: input, shape index: {}]
  %s8 = inlined_call_operand.vmem [shape: f32[8,1], index: 8, kind: output, shape index: {}]
  %s9 = sld [smem:[#allocation0]]
  $region50: #{tpu_custom_call.1} parent=0
    _
  %s11 = ssub.s32 1, %s9
  %s12 = scalar_select 0, %s11, %s9
  %v13 = vstv %s7
  %14 = vst [vmem:[#allocation2] sm:$0x1] %v13
  $region1: #{tpu_custom_call.1} parent=0
    #allocation3 [shape = 'u8[131072]{0}', space=vmem, size = 0x20000, scoped, tag = 'input window, operand 2, single buffered']
    #allocation4 [shape = 's32[1]{0}', space=sflag, size = 0x4, scoped, tag = 'scoped memory for tpu_custom_call.1']
    #allocation5 [shape = 'u8[262144]{0}', space=vmem, size = 0x40000, scoped, tag = 'input window, operand 4, single buffered']
    #allocation6 [shape = 's32[1]{0}', space=sflag, size = 0x4, scoped, tag = 'scoped memory for tpu_custom_call.1']
    %15 = vsyncpa [#allocation4], 0
    %16 = vsyncpa [#allocation6], 0
    // Predicated region
    $region2: #{tpu_custom_call.1} parent=1 // pred_check
      _
    $region3: #{tpu_custom_call.1} parent=1 // pred_check_branch
      %18 = sbr.rel (0) target = $region5
    $region4: #{tpu_custom_call.1} parent=1 // pred_region
      _
    $region5: #{tpu_custom_call.1} parent=1 // pred_fallthru
      _
    // Predicated region
    $region6: #{tpu_custom_call.1} parent=1 // pred_check
      _
    $region7: #{tpu_custom_call.1} parent=1 // pred_check_branch
      %20 = sbr.rel (0) target = $region9
    $region8: #{tpu_custom_call.1} parent=1 // pred_region
      _
    $region9: #{tpu_custom_call.1} parent=1 // pred_fallthru
      _
    // Predicated region
    $region10: #{tpu_custom_call.1} parent=1 // pred_check
      _
    $region11: #{tpu_custom_call.1} parent=1 // pred_check_branch
      %22 = sbr.rel (0) target = $region13
    $region12: #{tpu_custom_call.1} parent=1 // pred_region
      %s24 = ssub.s32 4096, 4096
      %25 = vsyncadd [#allocation4], %s24
      %s26 = sshll.u32 [#allocation3], 4
      %s27 = int_to_ptr.vmem [resolvable:$true] %s26
      %32 = dma.hbm_to_vmem [thread:$0]  %s2, 4096, %s27, [#allocation4], 256, 256, 16
    $region13: #{tpu_custom_call.1} parent=1 // pred_fallthru
      _
    // Predicated region
    $region14: #{tpu_custom_call.1} parent=1 // pred_check
      _
    $region15: #{tpu_custom_call.1} parent=1 // pred_check_branch
      %34 = sbr.rel (0) target = $region17
    $region16: #{tpu_custom_call.1} parent=1 // pred_region
      _
    $region17: #{tpu_custom_call.1} parent=1 // pred_fallthru
      _
    // Predicated region
    $region18: #{tpu_custom_call.1} parent=1 // pred_check
      _
    $region19: #{tpu_custom_call.1} parent=1 // pred_check_branch
      %36 = sbr.rel (0) target = $region21
    $region20: #{tpu_custom_call.1} parent=1 // pred_region
      %s38 = ssub.s32 8192, 8192
      %39 = vsyncadd [#allocation6], %s38
      %s40 = sshll.u32 [#allocation5], 4
      %s41 = int_to_ptr.vmem [resolvable:$true] %s40
      %46 = dma.hbm_to_vmem [thread:$0]  %s4, 8192, %s41, [#allocation6], 256, 256, 16
    $region21: #{tpu_custom_call.1} parent=1 // pred_fallthru
      _
    // Predicated region
    $region22: #{tpu_custom_call.1} parent=1 // pred_check
      _
    $region23: #{tpu_custom_call.1} parent=1 // pred_check_branch
      %48 = sbr.rel (0) target = $region25
    $region24: #{tpu_custom_call.1} parent=1 // pred_region
      _
    $region25: #{tpu_custom_call.1} parent=1 // pred_fallthru
      _
    // Predicated region
    $region26: #{tpu_custom_call.1} parent=1 // pred_check
      _
    $region27: #{tpu_custom_call.1} parent=1 // pred_check_branch
      %50 = sbr.rel (0) target = $region29
    $region28: #{tpu_custom_call.1} parent=1 // pred_region
      _
    $region29: #{tpu_custom_call.1} parent=1 // pred_fallthru
      _
    // Predicated region
    $region30: #{tpu_custom_call.1} parent=1 // pred_check
      _
    $region31: #{tpu_custom_call.1} parent=1 // pred_check_branch
      %52 = sbr.rel (0) target = $region33
    $region32: #{tpu_custom_call.1} parent=1 // pred_region
      _
    $region33: #{tpu_custom_call.1} parent=1 // pred_fallthru
      _
    // Predicated region
    $region34: #{tpu_custom_call.1} parent=1 // pred_check
      _
    $region35: #{tpu_custom_call.1} parent=1 // pred_check_branch
      %54 = sbr.rel (0) target = $region37
    $region36: #{tpu_custom_call.1} parent=1 // pred_region
      %55 = dma.done [#allocation4], 4096
    $region37: #{tpu_custom_call.1} parent=1 // pred_fallthru
      _
    // Predicated region
    $region38: #{tpu_custom_call.1} parent=1 // pred_check
      _
    $region39: #{tpu_custom_call.1} parent=1 // pred_check_branch
      %57 = sbr.rel (0) target = $region41
    $region40: #{tpu_custom_call.1} parent=1 // pred_region
      %58 = dma.done [#allocation6], 8192
    $region41: #{tpu_custom_call.1} parent=1 // pred_fallthru
      _
    %v60 = vld [vmem:[%s0] sm:$0xff]
    %v61 = vld [vmem:[%s0 + $0x8] sm:$0xff]
    %v62 = vld [vmem:[%s0 + $0x10] sm:$0xff]
    %v63 = vld [vmem:[%s0 + $0x18] sm:$0xff]
    %v64 = vld [vmem:[%s0 + $0x20] sm:$0xff]
    %v65 = vld [vmem:[%s0 + $0x28] sm:$0xff]
    %v66 = vld [vmem:[%s0 + $0x30] sm:$0xff]
    %v67 = vld [vmem:[%s0 + $0x38] sm:$0xff]
    %v68 = vld [vmem:[%s1] sm:$0xff]
    %v69 = vld [vmem:[%s1 + $0x8] sm:$0xff]
    %v70 = vld [vmem:[%s1 + $0x10] sm:$0xff]
    %v71 = vld [vmem:[%s1 + $0x18] sm:$0xff]
    %v72 = vld [vmem:[%s1 + $0x20] sm:$0xf]
    %v73 = vld [vmem:[%s1 + $0x28] sm:$0xf]
    %v74 = vld [vmem:[%s1 + $0x30] sm:$0xf]
    %v75 = vld [vmem:[%s1 + $0x38] sm:$0xf]
    %v76 = vld [vmem:[%s3] sm:$0xf]
    %v78 = vlaneseq
    %v79 = vshrl.u32 %v78, 7
    %v80 = vsub.s32 0, %v79
    %v81 = vrot.slane %v76, %v80
    %v82 = vlaneseq
    %v83 = vshrl.u32 %v82, 7
    %v84 = vsub.s32 1, %v83
    %v85 = vrot.slane %v76, %v84
    %v86 = vlaneseq
    %v87 = vshrl.u32 %v86, 7
    %v88 = vsub.s32 2, %v87
    %v89 = vrot.slane %v76, %v88
    %v90 = vlaneseq
    %v91 = vshrl.u32 %v90, 7
    %v92 = vsub.s32 3, %v91
    %v93 = vrot.slane %v76, %v92
    %vm98 = vcmask 97280
    %v100 = vsel %vm98, %v60, 0
    %v103 = vsel %vm98, %v61, 0
    %v106 = vsel %vm98, %v62, 0
    %v109 = vsel %vm98, %v63, 0
    %v112 = vsel %vm98, %v64, 0
    %v115 = vsel %vm98, %v65, 0
    %v118 = vsel %vm98, %v66, 0
    %v121 = vsel %vm98, %v67, 0
    %vm123 = vcmask 1043456
    %v125 = vsel %vm123, %v72, 0
    %v128 = vsel %vm123, %v73, 0
    %v131 = vsel %vm123, %v74, 0
    %v134 = vsel %vm123, %v75, 0
    %136 = vmatprep.subr.mxu0 %v69
    %137 = vmatpush1.msra.mxu0 %v68
    %138 = vmatprep.subr.mxu0 %v128
    %139 = vmatpush1.msra.mxu0 %v125
    %140 = vmatprep.subr.mxu0 0.0
    %141 = vmatpush1.msra.mxu0 0.0
    %142 = vmatprep.subr.mxu0 0.0
    %143 = vmatpush1.msra.mxu0 0.0
    %144 = vmatprep.subr.mxu0 0.0
    %145 = vmatpush1.msra.mxu0 0.0
    %146 = vmatprep.subr.mxu0 0.0
    %147 = vmatpush1.msra.mxu0 0.0
    %148 = vmatprep.subr.mxu0 0.0
    %149 = vmatpush1.msra.mxu0 0.0
    %150 = vmatprep.subr.mxu0 0.0
    %151 = vmatpush1.msra.mxu0 0.0
    %152 = vmatprep.subr.mxu0 0.0
    %153 = vmatpush1.msra.mxu0 0.0
    %154 = vmatprep.subr.mxu0 0.0
    %155 = vmatpush1.msra.mxu0 0.0
    %156 = vmatprep.subr.mxu0 0.0
    %157 = vmatpush1.msra.mxu0 0.0
    %158 = vmatprep.subr.mxu0 0.0
    %159 = vmatpush1.msra.mxu0 0.0
    %160 = vmatprep.subr.mxu0 0.0
    %161 = vmatpush1.msra.mxu0 0.0
    %162 = vmatprep.subr.mxu0 0.0
    %163 = vmatpush1.msra.mxu0 0.0
    %164 = vmatprep.subr.mxu0 0.0
    %165 = vmatpush1.msra.mxu0 0.0
    %166 = vmatprep.subr.mxu0 0.0
    %167 = vmatpush1.msra.mxu0 0.0
    %168 = vmatprep.subr.mxu0 0.0
    %169 = vmatpush1.msra.mxu0 0.0
    %170 = vmatprep.subr.mxu0 0.0
    %171 = vmatpush1.msra.mxu0 0.0
    %172 = vmatprep.subr.mxu0 0.0
    %173 = vmatpush1.msra.mxu0 0.0
    %174 = vmatprep.subr.mxu0 0.0
    %175 = vmatpush1.msra.mxu0 0.0
    %176 = vmatprep.subr.mxu0 0.0
    %177 = vmatpush1.msra.mxu0 0.0
    %178 = vmatprep.subr.mxu0 0.0
    %179 = vmatpush1.msra.mxu0 0.0
    %180 = vmatprep.subr.mxu0 0.0
    %181 = vmatpush1.msra.mxu0 0.0
    %182 = vmatprep.subr.mxu0 0.0
    %183 = vmatpush1.msra.mxu0 0.0
    %184 = vmatprep.subr.mxu0 0.0
    %185 = vmatpush1.msra.mxu0 0.0
    %186 = vmatprep.subr.mxu0 0.0
    %187 = vmatpush1.msra.mxu0 0.0
    %188 = vmatprep.subr.mxu0 0.0
    %189 = vmatpush1.msra.mxu0 0.0
    %190 = vmatprep.subr.mxu0 0.0
    %191 = vmatpush1.msra.mxu0 0.0
    %192 = vmatprep.subr.mxu0 0.0
    %193 = vmatpush1.msra.mxu0 0.0
    %194 = vmatprep.subr.mxu0 0.0
    %195 = vmatpush1.msra.mxu0 0.0
    %196 = vmatprep.subr.mxu0 0.0
    %197 = vmatpush1.msra.mxu0 0.0
    %198 = vmatprep.subr.mxu0 0.0
    %199 = vmatpush1.msra.mxu0 0.0
    %200 = vmatprep.mubr.f32.mxu0 0.0
    %201 = vmatmul.mubr.f32.gmra.mrb[0].mxu0 %v100
    %v202 = vpop.f32.mrb[0].mxu0
    %v203 = vadd.f32 %v81, %v202
    %v204 = vpop.f32.mrb[0].mxu0
    %v205 = vadd.f32 %v85, %v204
    %206 = vmatprep.mubr.f32.mxu0 0.0
    %207 = vmatmul.mubr.f32.gmra.mrb[0].mxu0 %v103
    %v208 = vpop.f32.mrb[0].mxu0
    %v209 = vadd.f32 %v81, %v208
    %v210 = vpop.f32.mrb[0].mxu0
    %v211 = vadd.f32 %v85, %v210
    %212 = vmatprep.mubr.f32.mxu0 0.0
    %213 = vmatmul.mubr.f32.gmra.mrb[0].mxu0 %v106
    %v214 = vpop.f32.mrb[0].mxu0
    %v215 = vadd.f32 %v81, %v214
    %v216 = vpop.f32.mrb[0].mxu0
    %v217 = vadd.f32 %v85, %v216
    %218 = vmatprep.mubr.f32.mxu0 0.0
    %219 = vmatmul.mubr.f32.gmra.mrb[0].mxu0 %v109
    %v220 = vpop.f32.mrb[0].mxu0
    %v221 = vadd.f32 %v81, %v220
    %v222 = vpop.f32.mrb[0].mxu0
    %v223 = vadd.f32 %v85, %v222
    %224 = vmatprep.mubr.f32.mxu0 0.0
    %225 = vmatmul.mubr.f32.gmra.mrb[0].mxu0 %v112
    %v226 = vpop.f32.mrb[0].mxu0
    %v227 = vadd.f32 %v81, %v226
    %v228 = vpop.f32.mrb[0].mxu0
    %v229 = vadd.f32 %v85, %v228
    %230 = vmatprep.mubr.f32.mxu0 0.0
    %231 = vmatmul.mubr.f32.gmra.mrb[0].mxu0 %v115
    %v232 = vpop.f32.mrb[0].mxu0
    %v233 = vadd.f32 %v81, %v232
    %v234 = vpop.f32.mrb[0].mxu0
    %v235 = vadd.f32 %v85, %v234
    %236 = vmatprep.mubr.f32.mxu0 0.0
    %237 = vmatmul.mubr.f32.gmra.mrb[0].mxu0 %v118
    %v238 = vpop.f32.mrb[0].mxu0
    %v239 = vadd.f32 %v81, %v238
    %v240 = vpop.f32.mrb[0].mxu0
    %v241 = vadd.f32 %v85, %v240
    %242 = vmatprep.mubr.f32.mxu0 0.0
    %243 = vmatmul.mubr.f32.gmra.mrb[0].mxu0 %v121
    %v244 = vpop.f32.mrb[0].mxu0
    %v245 = vadd.f32 %v81, %v244
    %v246 = vpop.f32.mrb[0].mxu0
    %v247 = vadd.f32 %v85, %v246
    %248 = vdwg.mxu0
    %249 = vmatprep.subr.mxu0 %v71
    %250 = vmatpush1.msra.mxu0 %v70
    %251 = vmatprep.subr.mxu0 %v134
    %252 = vmatpush1.msra.mxu0 %v131
    %253 = vmatprep.subr.mxu0 0.0
    %254 = vmatpush1.msra.mxu0 0.0
    %255 = vmatprep.subr.mxu0 0.0
    %256 = vmatpush1.msra.mxu0 0.0
    %257 = vmatprep.subr.mxu0 0.0
    %258 = vmatpush1.msra.mxu0 0.0
    %259 = vmatprep.subr.mxu0 0.0
    %260 = vmatpush1.msra.mxu0 0.0
    %261 = vmatprep.subr.mxu0 0.0
    %262 = vmatpush1.msra.mxu0 0.0
    %263 = vmatprep.subr.mxu0 0.0
    %264 = vmatpush1.msra.mxu0 0.0
    %265 = vmatprep.subr.mxu0 0.0
    %266 = vmatpush1.msra.mxu0 0.0
    %267 = vmatprep.subr.mxu0 0.0
    %268 = vmatpush1.msra.mxu0 0.0
    %269 = vmatprep.subr.mxu0 0.0
    %270 = vmatpush1.msra.mxu0 0.0
    %271 = vmatprep.subr.mxu0 0.0
    %272 = vmatpush1.msra.mxu0 0.0
    %273 = vmatprep.subr.mxu0 0.0
    %274 = vmatpush1.msra.mxu0 0.0
    %275 = vmatprep.subr.mxu0 0.0
    %276 = vmatpush1.msra.mxu0 0.0
    %277 = vmatprep.subr.mxu0 0.0
    %278 = vmatpush1.msra.mxu0 0.0
    %279 = vmatprep.subr.mxu0 0.0
    %280 = vmatpush1.msra.mxu0 0.0
    %281 = vmatprep.subr.mxu0 0.0
    %282 = vmatpush1.msra.mxu0 0.0
    %283 = vmatprep.subr.mxu0 0.0
    %284 = vmatpush1.msra.mxu0 0.0
    %285 = vmatprep.subr.mxu0 0.0
    %286 = vmatpush1.msra.mxu0 0.0
    %287 = vmatprep.subr.mxu0 0.0
    %288 = vmatpush1.msra.mxu0 0.0
    %289 = vmatprep.subr.mxu0 0.0
    %290 = vmatpush1.msra.mxu0 0.0
    %291 = vmatprep.subr.mxu0 0.0
    %292 = vmatpush1.msra.mxu0 0.0
    %293 = vmatprep.subr.mxu0 0.0
    %294 = vmatpush1.msra.mxu0 0.0
    %295 = vmatprep.subr.mxu0 0.0
    %296 = vmatpush1.msra.mxu0 0.0
    %297 = vmatprep.subr.mxu0 0.0
    %298 = vmatpush1.msra.mxu0 0.0
    %299 = vmatprep.subr.mxu0 0.0
    %300 = vmatpush1.msra.mxu0 0.0
    %301 = vmatprep.subr.mxu0 0.0
    %302 = vmatpush1.msra.mxu0 0.0
    %303 = vmatprep.subr.mxu0 0.0
    %304 = vmatpush1.msra.mxu0 0.0
    %305 = vmatprep.subr.mxu0 0.0
    %306 = vmatpush1.msra.mxu0 0.0
    %307 = vmatprep.subr.mxu0 0.0
    %308 = vmatpush1.msra.mxu0 0.0
    %309 = vmatprep.subr.mxu0 0.0
    %310 = vmatpush1.msra.mxu0 0.0
    %311 = vmatprep.subr.mxu0 0.0
    %312 = vmatpush1.msra.mxu0 0.0
    %313 = vmatprep.mubr.f32.mxu0 0.0
    %314 = vmatmul.mubr.f32.gmra.mrb[0].mxu0 %v100
    %v315 = vpop.f32.mrb[0].mxu0
    %v316 = vadd.f32 %v89, %v315
    %v317 = vpop.f32.mrb[0].mxu0
    %v318 = vadd.f32 %v93, %v317
    %319 = vmatprep.mubr.f32.mxu0 0.0
    %320 = vmatmul.mubr.f32.gmra.mrb[0].mxu0 %v103
    %v321 = vpop.f32.mrb[0].mxu0
    %v322 = vadd.f32 %v89, %v321
    %v323 = vpop.f32.mrb[0].mxu0
    %v324 = vadd.f32 %v93, %v323
    %325 = vmatprep.mubr.f32.mxu0 0.0
    %326 = vmatmul.mubr.f32.gmra.mrb[0].mxu0 %v106
    %v327 = vpop.f32.mrb[0].mxu0
    %v328 = vadd.f32 %v89, %v327
    %v329 = vpop.f32.mrb[0].mxu0
    %v330 = vadd.f32 %v93, %v329
    %331 = vmatprep.mubr.f32.mxu0 0.0
    %332 = vmatmul.mubr.f32.gmra.mrb[0].mxu0 %v109
    %v333 = vpop.f32.mrb[0].mxu0
    %v334 = vadd.f32 %v89, %v333
    %v335 = vpop.f32.mrb[0].mxu0
    %v336 = vadd.f32 %v93, %v335
    %337 = vmatprep.mubr.f32.mxu0 0.0
    %338 = vmatmul.mubr.f32.gmra.mrb[0].mxu0 %v112
    %v339 = vpop.f32.mrb[0].mxu0
    %v340 = vadd.f32 %v89, %v339
    %v341 = vpop.f32.mrb[0].mxu0
    %v342 = vadd.f32 %v93, %v341
    %343 = vmatprep.mubr.f32.mxu0 0.0
    %344 = vmatmul.mubr.f32.gmra.mrb[0].mxu0 %v115
    %v345 = vpop.f32.mrb[0].mxu0
    %v346 = vadd.f32 %v89, %v345
    %v347 = vpop.f32.mrb[0].mxu0
    %v348 = vadd.f32 %v93, %v347
    %349 = vmatprep.mubr.f32.mxu0 0.0
    %350 = vmatmul.mubr.f32.gmra.mrb[0].mxu0 %v118
    %v351 = vpop.f32.mrb[0].mxu0
    %v352 = vadd.f32 %v89, %v351
    %v353 = vpop.f32.mrb[0].mxu0
    %v354 = vadd.f32 %v93, %v353
    %355 = vmatprep.mubr.f32.mxu0 0.0
    %356 = vmatmul.mubr.f32.gmra.mrb[0].mxu0 %v121
    %v357 = vpop.f32.mrb[0].mxu0
    %v358 = vadd.f32 %v89, %v357
    %v359 = vpop.f32.mrb[0].mxu0
    %v360 = vadd.f32 %v93, %v359
    %361 = vdwg.mxu0
    %v362 = vld [vmem:[%s5] sm:$0xf]
    %v364 = vlaneseq
    %v365 = vshrl.u32 %v364, 7
    %v366 = vsub.s32 0, %v365
    %v367 = vrot.slane %v362, %v366
    %v368 = vlaneseq
    %v369 = vshrl.u32 %v368, 7
    %v370 = vsub.s32 1, %v369
    %v371 = vrot.slane %v362, %v370
    %v372 = vlaneseq
    %v373 = vshrl.u32 %v372, 7
    %v374 = vsub.s32 2, %v373
    %v375 = vrot.slane %v362, %v374
    %v376 = vlaneseq
    %v377 = vshrl.u32 %v376, 7
    %v378 = vsub.s32 3, %v377
    %v379 = vrot.slane %v362, %v378
    %v384 = vld [vmem:[#allocation3] sm:$0xff]
    %v385 = vld [vmem:[#allocation3 + $0x8] sm:$0xff]
    %v386 = vld [vmem:[#allocation3 + $0x10] sm:$0xff]
    %v387 = vld [vmem:[#allocation3 + $0x18] sm:$0xff]
    %v388 = vld [vmem:[#allocation3 + $0x20] sm:$0xff]
    %v389 = vld [vmem:[#allocation3 + $0x28] sm:$0xff]
    %v390 = vld [vmem:[#allocation3 + $0x30] sm:$0xff]
    %v391 = vld [vmem:[#allocation3 + $0x38] sm:$0xff]
    %v392 = vld [vmem:[#allocation3 + $0x40] sm:$0xff]
    %v393 = vld [vmem:[#allocation3 + $0x48] sm:$0xff]
    %v394 = vld [vmem:[#allocation3 + $0x50] sm:$0xff]
    %v395 = vld [vmem:[#allocation3 + $0x58] sm:$0xff]
    %v396 = vld [vmem:[#allocation3 + $0x60] sm:$0xff]
    %v397 = vld [vmem:[#allocation3 + $0x68] sm:$0xff]
    %v398 = vld [vmem:[#allocation3 + $0x70] sm:$0xff]
    %v399 = vld [vmem:[#allocation3 + $0x78] sm:$0xff]
    %v400 = vld [vmem:[#allocation3 + $0x80] sm:$0xff]
    %v401 = vld [vmem:[#allocation3 + $0x88] sm:$0xff]
    %v402 = vld [vmem:[#allocation3 + $0x90] sm:$0xff]
    %v403 = vld [vmem:[#allocation3 + $0x98] sm:$0xff]
    %v404 = vld [vmem:[#allocation3 + $0xa0] sm:$0xff]
    %v405 = vld [vmem:[#allocation3 + $0xa8] sm:$0xff]
    %v406 = vld [vmem:[#allocation3 + $0xb0] sm:$0xff]
    %v407 = vld [vmem:[#allocation3 + $0xb8] sm:$0xff]
    %v408 = vld [vmem:[#allocation3 + $0xc0] sm:$0xff]
    %v409 = vld [vmem:[#allocation3 + $0xc8] sm:$0xff]
    %v410 = vld [vmem:[#allocation3 + $0xd0] sm:$0xff]
    %v411 = vld [vmem:[#allocation3 + $0xd8] sm:$0xff]
    %v412 = vld [vmem:[#allocation3 + $0xe0] sm:$0xff]
    %v413 = vld [vmem:[#allocation3 + $0xe8] sm:$0xff]
    %v414 = vld [vmem:[#allocation3 + $0xf0] sm:$0xff]
    %v415 = vld [vmem:[#allocation3 + $0xf8] sm:$0xff]
    %v448 = vunpack.c.l.b16 %v384
    %v449 = vunpack.c.h.b16 %v384
    %v450 = vunpack.c.l.b16 %v385
    %v451 = vunpack.c.h.b16 %v385
    %v452 = vunpack.c.l.b16 %v386
    %v453 = vunpack.c.h.b16 %v386
    %v454 = vunpack.c.l.b16 %v387
    %v455 = vunpack.c.h.b16 %v387
    %v456 = vunpack.c.l.b16 %v388
    %v457 = vunpack.c.h.b16 %v388
    %v458 = vunpack.c.l.b16 %v389
    %v459 = vunpack.c.h.b16 %v389
    %v460 = vunpack.c.l.b16 %v390
    %v461 = vunpack.c.h.b16 %v390
    %v462 = vunpack.c.l.b16 %v391
    %v463 = vunpack.c.h.b16 %v391
    %v464 = vunpack.c.l.b16 %v392
    %v465 = vunpack.c.h.b16 %v392
    %v466 = vunpack.c.l.b16 %v393
    %v467 = vunpack.c.h.b16 %v393
    %v468 = vunpack.c.l.b16 %v394
    %v469 = vunpack.c.h.b16 %v394
    %v470 = vunpack.c.l.b16 %v395
    %v471 = vunpack.c.h.b16 %v395
    %v472 = vunpack.c.l.b16 %v396
    %v473 = vunpack.c.h.b16 %v396
    %v474 = vunpack.c.l.b16 %v397
    %v475 = vunpack.c.h.b16 %v397
    %v476 = vunpack.c.l.b16 %v398
    %v477 = vunpack.c.h.b16 %v398
    %v478 = vunpack.c.l.b16 %v399
    %v479 = vunpack.c.h.b16 %v399
    %v480 = vunpack.c.l.b16 %v400
    %v481 = vunpack.c.h.b16 %v400
    %v482 = vunpack.c.l.b16 %v401
    %v483 = vunpack.c.h.b16 %v401
    %v484 = vunpack.c.l.b16 %v402
    %v485 = vunpack.c.h.b16 %v402
    %v486 = vunpack.c.l.b16 %v403
    %v487 = vunpack.c.h.b16 %v403
    %v488 = vunpack.c.l.b16 %v404
    %v489 = vunpack.c.h.b16 %v404
    %v490 = vunpack.c.l.b16 %v405
    %v491 = vunpack.c.h.b16 %v405
    %v492 = vunpack.c.l.b16 %v406
    %v493 = vunpack.c.h.b16 %v406
    %v494 = vunpack.c.l.b16 %v407
    %v495 = vunpack.c.h.b16 %v407
    %v496 = vunpack.c.l.b16 %v408
    %v497 = vunpack.c.h.b16 %v408
    %v498 = vunpack.c.l.b16 %v409
    %v499 = vunpack.c.h.b16 %v409
    %v500 = vunpack.c.l.b16 %v410
    %v501 = vunpack.c.h.b16 %v410
    %v502 = vunpack.c.l.b16 %v411
    %v503 = vunpack.c.h.b16 %v411
    %v504 = vunpack.c.l.b16 %v412
    %v505 = vunpack.c.h.b16 %v412
    %v506 = vunpack.c.l.b16 %v413
    %v507 = vunpack.c.h.b16 %v413
    %v508 = vunpack.c.l.b16 %v414
    %v509 = vunpack.c.h.b16 %v414
    %v510 = vunpack.c.l.b16 %v415
    %v511 = vunpack.c.h.b16 %v415
    %v512 = vpack.c.b16 %v452, %v448
    %v513 = vpack.c.b16 %v453, %v449
    %v514 = vpack.c.b16 %v454, %v450
    %v515 = vpack.c.b16 %v455, %v451
    %v516 = vpack.c.b16 %v460, %v456
    %v517 = vpack.c.b16 %v461, %v457
    %v518 = vpack.c.b16 %v462, %v458
    %v519 = vpack.c.b16 %v463, %v459
    %v520 = vpack.c.b16 %v468, %v464
    %v521 = vpack.c.b16 %v469, %v465
    %v522 = vpack.c.b16 %v470, %v466
    %v523 = vpack.c.b16 %v471, %v467
    %v524 = vpack.c.b16 %v476, %v472
    %v525 = vpack.c.b16 %v477, %v473
    %v526 = vpack.c.b16 %v478, %v474
    %v527 = vpack.c.b16 %v479, %v475
    %v528 = vpack.c.b16 %v484, %v480
    %v529 = vpack.c.b16 %v485, %v481
    %v530 = vpack.c.b16 %v486, %v482
    %v531 = vpack.c.b16 %v487, %v483
    %v532 = vpack.c.b16 %v492, %v488
    %v533 = vpack.c.b16 %v493, %v489
    %v534 = vpack.c.b16 %v494, %v490
    %v535 = vpack.c.b16 %v495, %v491
    %v536 = vpack.c.b16 %v500, %v496
    %v537 = vpack.c.b16 %v501, %v497
    %v538 = vpack.c.b16 %v502, %v498
    %v539 = vpack.c.b16 %v503, %v499
    %v540 = vpack.c.b16 %v508, %v504
    %v541 = vpack.c.b16 %v509, %v505
    %v542 = vpack.c.b16 %v510, %v506
    %v543 = vpack.c.b16 %v511, %v507
    %576 = vmatprep.subr.bf16.mxu0 %v513
    %577 = vmatpush1.bf16.msra.mxu0 %v512
    %578 = vmatprep.subr.bf16.mxu0 %v517
    %579 = vmatpush1.bf16.msra.mxu0 %v516
    %580 = vmatprep.subr.bf16.mxu0 %v521
    %581 = vmatpush1.bf16.msra.mxu0 %v520
    %582 = vmatprep.subr.bf16.mxu0 %v525
    %583 = vmatpush1.bf16.msra.mxu0 %v524
    %584 = vmatprep.subr.bf16.mxu0 %v529
    %585 = vmatpush1.bf16.msra.mxu0 %v528
    %586 = vmatprep.subr.bf16.mxu0 %v533
    %587 = vmatpush1.bf16.msra.mxu0 %v532
    %588 = vmatprep.subr.bf16.mxu0 %v537
    %589 = vmatpush1.bf16.msra.mxu0 %v536
    %590 = vmatprep.subr.bf16.mxu0 %v541
    %591 = vmatpush1.bf16.msra.mxu0 %v540
    %592 = vmatprep.subr.bf16.mxu0 0
    %593 = vmatpush1.bf16.msra.mxu0 0
    %594 = vmatprep.subr.bf16.mxu0 0
    %595 = vmatpush1.bf16.msra.mxu0 0
    %596 = vmatprep.subr.bf16.mxu0 0
    %597 = vmatpush1.bf16.msra.mxu0 0
    %598 = vmatprep.subr.bf16.mxu0 0
    %599 = vmatpush1.bf16.msra.mxu0 0
    %600 = vmatprep.subr.bf16.mxu0 0
    %601 = vmatpush1.bf16.msra.mxu0 0
    %602 = vmatprep.subr.bf16.mxu0 0
    %603 = vmatpush1.bf16.msra.mxu0 0
    %604 = vmatprep.subr.bf16.mxu0 0
    %605 = vmatpush1.bf16.msra.mxu0 0
    %606 = vmatprep.subr.bf16.mxu0 0
    %607 = vmatpush1.bf16.msra.mxu0 0
    %608 = vmatprep.mubr.bf16.mxu0 0
    %609 = vmatmul.mubr.bf16.gmra.mrb[0].mxu0 0
    %v610 = vpop.f32.mrb[0].mxu0
    %v611 = vadd.f32 0.0, %v610
    %v612 = vpop.f32.mrb[0].mxu0
    %v613 = vadd.f32 0.0, %v612
    %v614 = vpop.f32.mrb[0].mxu0
    %v615 = vpop.f32.mrb[0].mxu0
    %616 = vdwg.mxu0
    %617 = vmatprep.subr.bf16.mxu0 %v515
    %618 = vmatpush1.bf16.msra.mxu0 %v514
    %619 = vmatprep.subr.bf16.mxu0 %v519
    %620 = vmatpush1.bf16.msra.mxu0 %v518
    %621 = vmatprep.subr.bf16.mxu0 %v523
    %622 = vmatpush1.bf16.msra.mxu0 %v522
    %623 = vmatprep.subr.bf16.mxu0 %v527
    %624 = vmatpush1.bf16.msra.mxu0 %v526
    %625 = vmatprep.subr.bf16.mxu0 %v531
    %626 = vmatpush1.bf16.msra.mxu0 %v530
    %627 = vmatprep.subr.bf16.mxu0 %v535
    %628 = vmatpush1.bf16.msra.mxu0 %v534
    %629 = vmatprep.subr.bf16.mxu0 %v539
    %630 = vmatpush1.bf16.msra.mxu0 %v538
    %631 = vmatprep.subr.bf16.mxu0 %v543
    %632 = vmatpush1.bf16.msra.mxu0 %v542
    %633 = vmatprep.subr.bf16.mxu0 0
    %634 = vmatpush1.bf16.msra.mxu0 0
    %635 = vmatprep.subr.bf16.mxu0 0
    %636 = vmatpush1.bf16.msra.mxu0 0
    %637 = vmatprep.subr.bf16.mxu0 0
    %638 = vmatpush1.bf16.msra.mxu0 0
    %639 = vmatprep.subr.bf16.mxu0 0
    %640 = vmatpush1.bf16.msra.mxu0 0
    %641 = vmatprep.subr.bf16.mxu0 0
    %642 = vmatpush1.bf16.msra.mxu0 0
    %643 = vmatprep.subr.bf16.mxu0 0
    %644 = vmatpush1.bf16.msra.mxu0 0
    %645 = vmatprep.subr.bf16.mxu0 0
    %646 = vmatpush1.bf16.msra.mxu0 0
    %647 = vmatprep.subr.bf16.mxu0 0
    %648 = vmatpush1.bf16.msra.mxu0 0
    %649 = vmatprep.mubr.bf16.mxu0 0
    %650 = vmatmul.mubr.bf16.gmra.mrb[0].mxu0 0
    %v651 = vpop.f32.mrb[0].mxu0
    %v652 = vadd.f32 0.0, %v651
    %v653 = vpop.f32.mrb[0].mxu0
    %v654 = vadd.f32 0.0, %v653
    %v655 = vpop.f32.mrb[0].mxu0
    %v656 = vpop.f32.mrb[0].mxu0
    %657 = vdwg.mxu0
    %v658 = vadd.f32 %v203, %v611
    %v659 = vadd.f32 %v205, %v613
    %v660 = vadd.f32 %v316, %v652
    %v661 = vadd.f32 %v318, %v654
    %v662 = vxor.u32 %v658, 2147483648
    %v663 = vmul.f32 %v662, 1.442695
    %v664 = vpow.pop %v663
    %v665 = vadd.f32 %v664, 1.0
    %v666 = vrcp.pop %v665
    %v667 = vmul.f32 1.0, %v666
    %v668 = vxor.u32 %v659, 2147483648
    %v669 = vmul.f32 %v668, 1.442695
    %v670 = vpow.pop %v669
    %v671 = vadd.f32 %v670, 1.0
    %v672 = vrcp.pop %v671
    %v673 = vmul.f32 1.0, %v672
    %v674 = vtanh.pop %v660
    %v675 = vxor.u32 %v661, 2147483648
    %v676 = vmul.f32 %v675, 1.442695
    %v677 = vpow.pop %v676
    %v678 = vadd.f32 %v677, 1.0
    %v679 = vrcp.pop %v678
    %v680 = vmul.f32 1.0, %v679
    %v681 = vmul.f32 %v673, 0.0
    %v682 = vmul.f32 %v667, %v674
    %v683 = vadd.f32 %v681, %v682
    %v684 = vtanh.pop %v683
    %v685 = vmul.f32 %v680, %v684
    %v686 = vpack.c.bf16 %v685, %v685
    %v687 = vld [vmem:[#allocation5] sm:$0xff]
    %v688 = vld [vmem:[#allocation5 + $0x8] sm:$0xff]
    %v689 = vld [vmem:[#allocation5 + $0x10] sm:$0xff]
    %v690 = vld [vmem:[#allocation5 + $0x18] sm:$0xff]
    %v691 = vld [vmem:[#allocation5 + $0x20] sm:$0xff]
    %v692 = vld [vmem:[#allocation5 + $0x28] sm:$0xff]
    %v693 = vld [vmem:[#allocation5 + $0x30] sm:$0xff]
    %v694 = vld [vmem:[#allocation5 + $0x38] sm:$0xff]
    %v695 = vld [vmem:[#allocation5 + $0x40] sm:$0xff]
    %v696 = vld [vmem:[#allocation5 + $0x48] sm:$0xff]
    %v697 = vld [vmem:[#allocation5 + $0x50] sm:$0xff]
    %v698 = vld [vmem:[#allocation5 + $0x58] sm:$0xff]
    %v699 = vld [vmem:[#allocation5 + $0x60] sm:$0xff]
    %v700 = vld [vmem:[#allocation5 + $0x68] sm:$0xff]
    %v701 = vld [vmem:[#allocation5 + $0x70] sm:$0xff]
    %v702 = vld [vmem:[#allocation5 + $0x78] sm:$0xff]
    %v703 = vld [vmem:[#allocation5 + $0x80] sm:$0xff]
    %v704 = vld [vmem:[#allocation5 + $0x88] sm:$0xff]
    %v705 = vld [vmem:[#allocation5 + $0x90] sm:$0xff]
    %v706 = vld [vmem:[#allocation5 + $0x98] sm:$0xff]
    %v707 = vld [vmem:[#allocation5 + $0xa0] sm:$0xff]
    %v708 = vld [vmem:[#allocation5 + $0xa8] sm:$0xff]
    %v709 = vld [vmem:[#allocation5 + $0xb0] sm:$0xff]
    %v710 = vld [vmem:[#allocation5 + $0xb8] sm:$0xff]
    %v711 = vld [vmem:[#allocation5 + $0xc0] sm:$0xff]
    %v712 = vld [vmem:[#allocation5 + $0xc8] sm:$0xff]
    %v713 = vld [vmem:[#allocation5 + $0xd0] sm:$0xff]
    %v714 = vld [vmem:[#allocation5 + $0xd8] sm:$0xff]
    %v715 = vld [vmem:[#allocation5 + $0xe0] sm:$0xff]
    %v716 = vld [vmem:[#allocation5 + $0xe8] sm:$0xff]
    %v717 = vld [vmem:[#allocation5 + $0xf0] sm:$0xff]
    %v718 = vld [vmem:[#allocation5 + $0xf8] sm:$0xff]
    %v719 = vld [vmem:[#allocation5 + $0x100] sm:$0xff]
    %v720 = vld [vmem:[#allocation5 + $0x108] sm:$0xff]
    %v721 = vld [vmem:[#allocation5 + $0x110] sm:$0xff]
    %v722 = vld [vmem:[#allocation5 + $0x118] sm:$0xff]
    %v723 = vld [vmem:[#allocation5 + $0x120] sm:$0xff]
    %v724 = vld [vmem:[#allocation5 + $0x128] sm:$0xff]
    %v725 = vld [vmem:[#allocation5 + $0x130] sm:$0xff]
    %v726 = vld [vmem:[#allocation5 + $0x138] sm:$0xff]
    %v727 = vld [vmem:[#allocation5 + $0x140] sm:$0xff]
    %v728 = vld [vmem:[#allocation5 + $0x148] sm:$0xff]
    %v729 = vld [vmem:[#allocation5 + $0x150] sm:$0xff]
    %v730 = vld [vmem:[#allocation5 + $0x158] sm:$0xff]
    %v731 = vld [vmem:[#allocation5 + $0x160] sm:$0xff]
    %v732 = vld [vmem:[#allocation5 + $0x168] sm:$0xff]
    %v733 = vld [vmem:[#allocation5 + $0x170] sm:$0xff]
    %v734 = vld [vmem:[#allocation5 + $0x178] sm:$0xff]
    %v735 = vld [vmem:[#allocation5 + $0x180] sm:$0xff]
    %v736 = vld [vmem:[#allocation5 + $0x188] sm:$0xff]
    %v737 = vld [vmem:[#allocation5 + $0x190] sm:$0xff]
    %v738 = vld [vmem:[#allocation5 + $0x198] sm:$0xff]
    %v739 = vld [vmem:[#allocation5 + $0x1a0] sm:$0xff]
    %v740 = vld [vmem:[#allocation5 + $0x1a8] sm:$0xff]
    %v741 = vld [vmem:[#allocation5 + $0x1b0] sm:$0xff]
    %v742 = vld [vmem:[#allocation5 + $0x1b8] sm:$0xff]
    %v743 = vld [vmem:[#allocation5 + $0x1c0] sm:$0xff]
    %v744 = vld [vmem:[#allocation5 + $0x1c8] sm:$0xff]
    %v745 = vld [vmem:[#allocation5 + $0x1d0] sm:$0xff]
    %v746 = vld [vmem:[#allocation5 + $0x1d8] sm:$0xff]
    %v747 = vld [vmem:[#allocation5 + $0x1e0] sm:$0xff]
    %v748 = vld [vmem:[#allocation5 + $0x1e8] sm:$0xff]
    %v749 = vld [vmem:[#allocation5 + $0x1f0] sm:$0xff]
    %v750 = vld [vmem:[#allocation5 + $0x1f8] sm:$0xff]
    %v815 = vunpack.c.l.b16 %v687
    %v816 = vunpack.c.h.b16 %v687
    %v817 = vunpack.c.l.b16 %v688
    %v818 = vunpack.c.h.b16 %v688
    %v819 = vunpack.c.l.b16 %v689
    %v820 = vunpack.c.h.b16 %v689
    %v821 = vunpack.c.l.b16 %v690
    %v822 = vunpack.c.h.b16 %v690
    %v823 = vunpack.c.l.b16 %v691
    %v824 = vunpack.c.h.b16 %v691
    %v825 = vunpack.c.l.b16 %v692
    %v826 = vunpack.c.h.b16 %v692
    %v827 = vunpack.c.l.b16 %v693
    %v828 = vunpack.c.h.b16 %v693
    %v829 = vunpack.c.l.b16 %v694
    %v830 = vunpack.c.h.b16 %v694
    %v831 = vunpack.c.l.b16 %v695
    %v832 = vunpack.c.h.b16 %v695
    %v833 = vunpack.c.l.b16 %v696
    %v834 = vunpack.c.h.b16 %v696
    %v835 = vunpack.c.l.b16 %v697
    %v836 = vunpack.c.h.b16 %v697
    %v837 = vunpack.c.l.b16 %v698
    %v838 = vunpack.c.h.b16 %v698
    %v839 = vunpack.c.l.b16 %v699
    %v840 = vunpack.c.h.b16 %v699
    %v841 = vunpack.c.l.b16 %v700
    %v842 = vunpack.c.h.b16 %v700
    %v843 = vunpack.c.l.b16 %v701
    %v844 = vunpack.c.h.b16 %v701
    %v845 = vunpack.c.l.b16 %v702
    %v846 = vunpack.c.h.b16 %v702
    %v847 = vunpack.c.l.b16 %v703
    %v848 = vunpack.c.h.b16 %v703
    %v849 = vunpack.c.l.b16 %v704
    %v850 = vunpack.c.h.b16 %v704
    %v851 = vunpack.c.l.b16 %v705
    %v852 = vunpack.c.h.b16 %v705
    %v853 = vunpack.c.l.b16 %v706
    %v854 = vunpack.c.h.b16 %v706
    %v855 = vunpack.c.l.b16 %v707
    %v856 = vunpack.c.h.b16 %v707
    %v857 = vunpack.c.l.b16 %v708
    %v858 = vunpack.c.h.b16 %v708
    %v859 = vunpack.c.l.b16 %v709
    %v860 = vunpack.c.h.b16 %v709
    %v861 = vunpack.c.l.b16 %v710
    %v862 = vunpack.c.h.b16 %v710
    %v863 = vunpack.c.l.b16 %v711
    %v864 = vunpack.c.h.b16 %v711
    %v865 = vunpack.c.l.b16 %v712
    %v866 = vunpack.c.h.b16 %v712
    %v867 = vunpack.c.l.b16 %v713
    %v868 = vunpack.c.h.b16 %v713
    %v869 = vunpack.c.l.b16 %v714
    %v870 = vunpack.c.h.b16 %v714
    %v871 = vunpack.c.l.b16 %v715
    %v872 = vunpack.c.h.b16 %v715
    %v873 = vunpack.c.l.b16 %v716
    %v874 = vunpack.c.h.b16 %v716
    %v875 = vunpack.c.l.b16 %v717
    %v876 = vunpack.c.h.b16 %v717
    %v877 = vunpack.c.l.b16 %v718
    %v878 = vunpack.c.h.b16 %v718
    %v879 = vunpack.c.l.b16 %v719
    %v880 = vunpack.c.h.b16 %v719
    %v881 = vunpack.c.l.b16 %v720
    %v882 = vunpack.c.h.b16 %v720
    %v883 = vunpack.c.l.b16 %v721
    %v884 = vunpack.c.h.b16 %v721
    %v885 = vunpack.c.l.b16 %v722
    %v886 = vunpack.c.h.b16 %v722
    %v887 = vunpack.c.l.b16 %v723
    %v888 = vunpack.c.h.b16 %v723
    %v889 = vunpack.c.l.b16 %v724
    %v890 = vunpack.c.h.b16 %v724
    %v891 = vunpack.c.l.b16 %v725
    %v892 = vunpack.c.h.b16 %v725
    %v893 = vunpack.c.l.b16 %v726
    %v894 = vunpack.c.h.b16 %v726
    %v895 = vunpack.c.l.b16 %v727
    %v896 = vunpack.c.h.b16 %v727
    %v897 = vunpack.c.l.b16 %v728
    %v898 = vunpack.c.h.b16 %v728
    %v899 = vunpack.c.l.b16 %v729
    %v900 = vunpack.c.h.b16 %v729
    %v901 = vunpack.c.l.b16 %v730
    %v902 = vunpack.c.h.b16 %v730
    %v903 = vunpack.c.l.b16 %v731
    %v904 = vunpack.c.h.b16 %v731
    %v905 = vunpack.c.l.b16 %v732
    %v906 = vunpack.c.h.b16 %v732
    %v907 = vunpack.c.l.b16 %v733
    %v908 = vunpack.c.h.b16 %v733
    %v909 = vunpack.c.l.b16 %v734
    %v910 = vunpack.c.h.b16 %v734
    %v911 = vunpack.c.l.b16 %v735
    %v912 = vunpack.c.h.b16 %v735
    %v913 = vunpack.c.l.b16 %v736
    %v914 = vunpack.c.h.b16 %v736
    %v915 = vunpack.c.l.b16 %v737
    %v916 = vunpack.c.h.b16 %v737
    %v917 = vunpack.c.l.b16 %v738
    %v918 = vunpack.c.h.b16 %v738
    %v919 = vunpack.c.l.b16 %v739
    %v920 = vunpack.c.h.b16 %v739
    %v921 = vunpack.c.l.b16 %v740
    %v922 = vunpack.c.h.b16 %v740
    %v923 = vunpack.c.l.b16 %v741
    %v924 = vunpack.c.h.b16 %v741
    %v925 = vunpack.c.l.b16 %v742
    %v926 = vunpack.c.h.b16 %v742
    %v927 = vunpack.c.l.b16 %v743
    %v928 = vunpack.c.h.b16 %v743
    %v929 = vunpack.c.l.b16 %v744
    %v930 = vunpack.c.h.b16 %v744
    %v931 = vunpack.c.l.b16 %v745
    %v932 = vunpack.c.h.b16 %v745
    %v933 = vunpack.c.l.b16 %v746
    %v934 = vunpack.c.h.b16 %v746
    %v935 = vunpack.c.l.b16 %v747
    %v936 = vunpack.c.h.b16 %v747
    %v937 = vunpack.c.l.b16 %v748
    %v938 = vunpack.c.h.b16 %v748
    %v939 = vunpack.c.l.b16 %v749
    %v940 = vunpack.c.h.b16 %v749
    %v941 = vunpack.c.l.b16 %v750
    %v942 = vunpack.c.h.b16 %v750
    %v943 = vpack.c.b16 %v819, %v815
    %v944 = vpack.c.b16 %v820, %v816
    %v945 = vpack.c.b16 %v821, %v817
    %v946 = vpack.c.b16 %v822, %v818
    %v947 = vpack.c.b16 %v827, %v823
    %v948 = vpack.c.b16 %v828, %v824
    %v949 = vpack.c.b16 %v829, %v825
    %v950 = vpack.c.b16 %v830, %v826
    %v951 = vpack.c.b16 %v835, %v831
    %v952 = vpack.c.b16 %v836, %v832
    %v953 = vpack.c.b16 %v837, %v833
    %v954 = vpack.c.b16 %v838, %v834
    %v955 = vpack.c.b16 %v843, %v839
    %v956 = vpack.c.b16 %v844, %v840
    %v957 = vpack.c.b16 %v845, %v841
    %v958 = vpack.c.b16 %v846, %v842
    %v959 = vpack.c.b16 %v851, %v847
    %v960 = vpack.c.b16 %v852, %v848
    %v961 = vpack.c.b16 %v853, %v849
    %v962 = vpack.c.b16 %v854, %v850
    %v963 = vpack.c.b16 %v859, %v855
    %v964 = vpack.c.b16 %v860, %v856
    %v965 = vpack.c.b16 %v861, %v857
    %v966 = vpack.c.b16 %v862, %v858
    %v967 = vpack.c.b16 %v867, %v863
    %v968 = vpack.c.b16 %v868, %v864
    %v969 = vpack.c.b16 %v869, %v865
    %v970 = vpack.c.b16 %v870, %v866
    %v971 = vpack.c.b16 %v875, %v871
    %v972 = vpack.c.b16 %v876, %v872
    %v973 = vpack.c.b16 %v877, %v873
    %v974 = vpack.c.b16 %v878, %v874
    %v975 = vpack.c.b16 %v883, %v879
    %v976 = vpack.c.b16 %v884, %v880
    %v977 = vpack.c.b16 %v885, %v881
    %v978 = vpack.c.b16 %v886, %v882
    %v979 = vpack.c.b16 %v891, %v887
    %v980 = vpack.c.b16 %v892, %v888
    %v981 = vpack.c.b16 %v893, %v889
    %v982 = vpack.c.b16 %v894, %v890
    %v983 = vpack.c.b16 %v899, %v895
    %v984 = vpack.c.b16 %v900, %v896
    %v985 = vpack.c.b16 %v901, %v897
    %v986 = vpack.c.b16 %v902, %v898
    %v987 = vpack.c.b16 %v907, %v903
    %v988 = vpack.c.b16 %v908, %v904
    %v989 = vpack.c.b16 %v909, %v905
    %v990 = vpack.c.b16 %v910, %v906
    %v991 = vpack.c.b16 %v915, %v911
    %v992 = vpack.c.b16 %v916, %v912
    %v993 = vpack.c.b16 %v917, %v913
    %v994 = vpack.c.b16 %v918, %v914
    %v995 = vpack.c.b16 %v923, %v919
    %v996 = vpack.c.b16 %v924, %v920
    %v997 = vpack.c.b16 %v925, %v921
    %v998 = vpack.c.b16 %v926, %v922
    %v999 = vpack.c.b16 %v931, %v927
    %v1000 = vpack.c.b16 %v932, %v928
    %v1001 = vpack.c.b16 %v933, %v929
    %v1002 = vpack.c.b16 %v934, %v930
    %v1003 = vpack.c.b16 %v939, %v935
    %v1004 = vpack.c.b16 %v940, %v936
    %v1005 = vpack.c.b16 %v941, %v937
    %v1006 = vpack.c.b16 %v942, %v938
    %1071 = vmatprep.subr.bf16.mxu0 %v944
    %1072 = vmatpush1.bf16.msra.mxu0 %v943
    %1073 = vmatprep.subr.bf16.mxu0 %v948
    %1074 = vmatpush1.bf16.msra.mxu0 %v947
    %1075 = vmatprep.subr.bf16.mxu0 %v952
    %1076 = vmatpush1.bf16.msra.mxu0 %v951
    %1077 = vmatprep.subr.bf16.mxu0 %v956
    %1078 = vmatpush1.bf16.msra.mxu0 %v955
    %1079 = vmatprep.subr.bf16.mxu0 %v960
    %1080 = vmatpush1.bf16.msra.mxu0 %v959
    %1081 = vmatprep.subr.bf16.mxu0 %v964
    %1082 = vmatpush1.bf16.msra.mxu0 %v963
    %1083 = vmatprep.subr.bf16.mxu0 %v968
    %1084 = vmatpush1.bf16.msra.mxu0 %v967
    %1085 = vmatprep.subr.bf16.mxu0 %v972
    %1086 = vmatpush1.bf16.msra.mxu0 %v971
    %1087 = vmatprep.subr.bf16.mxu0 %v976
    %1088 = vmatpush1.bf16.msra.mxu0 %v975
    %1089 = vmatprep.subr.bf16.mxu0 %v980
    %1090 = vmatpush1.bf16.msra.mxu0 %v979
    %1091 = vmatprep.subr.bf16.mxu0 %v984
    %1092 = vmatpush1.bf16.msra.mxu0 %v983
    %1093 = vmatprep.subr.bf16.mxu0 %v988
    %1094 = vmatpush1.bf16.msra.mxu0 %v987
    %1095 = vmatprep.subr.bf16.mxu0 %v992
    %1096 = vmatpush1.bf16.msra.mxu0 %v991
    %1097 = vmatprep.subr.bf16.mxu0 %v996
    %1098 = vmatpush1.bf16.msra.mxu0 %v995
    %1099 = vmatprep.subr.bf16.mxu0 %v1000
    %1100 = vmatpush1.bf16.msra.mxu0 %v999
    %1101 = vmatprep.subr.bf16.mxu0 %v1004
    %1102 = vmatpush1.bf16.msra.mxu0 %v1003
    %1103 = vmatprep.mubr.bf16.mxu0 0
    %1104 = vmatmul.mubr.bf16.gmra.mrb[0].mxu0 %v686
    %v1105 = vpop.f32.mrb[0].mxu0
    %v1106 = vadd.f32 %v367, %v1105
    %v1107 = vpop.f32.mrb[0].mxu0
    %v1108 = vadd.f32 %v371, %v1107
    %v1109 = vpop.f32.mrb[0].mxu0
    %v1110 = vpop.f32.mrb[0].mxu0
    %1111 = vdwg.mxu0
    %1112 = vmatprep.subr.bf16.mxu0 %v946
    %1113 = vmatpush1.bf16.msra.mxu0 %v945
    %1114 = vmatprep.subr.bf16.mxu0 %v950
    %1115 = vmatpush1.bf16.msra.mxu0 %v949
    %1116 = vmatprep.subr.bf16.mxu0 %v954
    %1117 = vmatpush1.bf16.msra.mxu0 %v953
    %1118 = vmatprep.subr.bf16.mxu0 %v958
    %1119 = vmatpush1.bf16.msra.mxu0 %v957
    %1120 = vmatprep.subr.bf16.mxu0 %v962
    %1121 = vmatpush1.bf16.msra.mxu0 %v961
    %1122 = vmatprep.subr.bf16.mxu0 %v966
    %1123 = vmatpush1.bf16.msra.mxu0 %v965
    %1124 = vmatprep.subr.bf16.mxu0 %v970
    %1125 = vmatpush1.bf16.msra.mxu0 %v969
    %1126 = vmatprep.subr.bf16.mxu0 %v974
    %1127 = vmatpush1.bf16.msra.mxu0 %v973
    %1128 = vmatprep.subr.bf16.mxu0 %v978
    %1129 = vmatpush1.bf16.msra.mxu0 %v977
    %1130 = vmatprep.subr.bf16.mxu0 %v982
    %1131 = vmatpush1.bf16.msra.mxu0 %v981
    %1132 = vmatprep.subr.bf16.mxu0 %v986
    %1133 = vmatpush1.bf16.msra.mxu0 %v985
    %1134 = vmatprep.subr.bf16.mxu0 %v990
    %1135 = vmatpush1.bf16.msra.mxu0 %v989
    %1136 = vmatprep.subr.bf16.mxu0 %v994
    %1137 = vmatpush1.bf16.msra.mxu0 %v993
    %1138 = vmatprep.subr.bf16.mxu0 %v998
    %1139 = vmatpush1.bf16.msra.mxu0 %v997
    %1140 = vmatprep.subr.bf16.mxu0 %v1002
    %1141 = vmatpush1.bf16.msra.mxu0 %v1001
    %1142 = vmatprep.subr.bf16.mxu0 %v1006
    %1143 = vmatpush1.bf16.msra.mxu0 %v1005
    %1144 = vmatprep.mubr.bf16.mxu0 0
    %1145 = vmatmul.mubr.bf16.gmra.mrb[0].mxu0 %v686
    %v1146 = vpop.f32.mrb[0].mxu0
    %v1147 = vadd.f32 %v375, %v1146
    %v1148 = vpop.f32.mrb[0].mxu0
    %v1149 = vadd.f32 %v379, %v1148
    %v1150 = vpop.f32.mrb[0].mxu0
    %v1151 = vpop.f32.mrb[0].mxu0
    %1152 = vdwg.mxu0
    %v1153 = vxor.u32 %v1106, 2147483648
    %v1154 = vmul.f32 %v1153, 1.442695
    %v1155 = vpow.pop %v1154
    %v1156 = vadd.f32 %v1155, 1.0
    %v1157 = vrcp.pop %v1156
    %v1158 = vmul.f32 1.0, %v1157
    %v1159 = vxor.u32 %v1108, 2147483648
    %v1160 = vmul.f32 %v1159, 1.442695
    %v1161 = vpow.pop %v1160
    %v1162 = vadd.f32 %v1161, 1.0
    %v1163 = vrcp.pop %v1162
    %v1164 = vmul.f32 1.0, %v1163
    %v1165 = vtanh.pop %v1147
    %v1166 = vxor.u32 %v1149, 2147483648
    %v1167 = vmul.f32 %v1166, 1.442695
    %v1168 = vpow.pop %v1167
    %v1169 = vadd.f32 %v1168, 1.0
    %v1170 = vrcp.pop %v1169
    %v1171 = vmul.f32 1.0, %v1170
    %v1172 = vmul.f32 %v1164, 0.0
    %v1173 = vmul.f32 %v1158, %v1165
    %v1174 = vadd.f32 %v1172, %v1173
    %v1175 = vtanh.pop %v1174
    %v1176 = vmul.f32 %v1171, %v1175
    %v1177 = vpack.c.bf16 %v1176, %v1176
    %1178 = vmatprep.subr.bf16.mxu0 %v513
    %1179 = vmatpush1.bf16.msra.mxu0 %v512
    %1180 = vmatprep.subr.bf16.mxu0 %v517
    %1181 = vmatpush1.bf16.msra.mxu0 %v516
    %1182 = vmatprep.subr.bf16.mxu0 %v521
    %1183 = vmatpush1.bf16.msra.mxu0 %v520
    %1184 = vmatprep.subr.bf16.mxu0 %v525
    %1185 = vmatpush1.bf16.msra.mxu0 %v524
    %1186 = vmatprep.subr.bf16.mxu0 %v529
    %1187 = vmatpush1.bf16.msra.mxu0 %v528
    %1188 = vmatprep.subr.bf16.mxu0 %v533
    %1189 = vmatpush1.bf16.msra.mxu0 %v532
    %1190 = vmatprep.subr.bf16.mxu0 %v537
    %1191 = vmatpush1.bf16.msra.mxu0 %v536
    %1192 = vmatprep.subr.bf16.mxu0 %v541
    %1193 = vmatpush1.bf16.msra.mxu0 %v540
    %1194 = vmatprep.subr.bf16.mxu0 0
    %1195 = vmatpush1.bf16.msra.mxu0 0
    %1196 = vmatprep.subr.bf16.mxu0 0
    %1197 = vmatpush1.bf16.msra.mxu0 0
    %1198 = vmatprep.subr.bf16.mxu0 0
    %1199 = vmatpush1.bf16.msra.mxu0 0
    %1200 = vmatprep.subr.bf16.mxu0 0
    %1201 = vmatpush1.bf16.msra.mxu0 0
    %1202 = vmatprep.subr.bf16.mxu0 0
    %1203 = vmatpush1.bf16.msra.mxu0 0
    %1204 = vmatprep.subr.bf16.mxu0 0
    %1205 = vmatpush1.bf16.msra.mxu0 0
    %1206 = vmatprep.subr.bf16.mxu0 0
    %1207 = vmatpush1.bf16.msra.mxu0 0
    %1208 = vmatprep.subr.bf16.mxu0 0
    %1209 = vmatpush1.bf16.msra.mxu0 0
    %1210 = vmatprep.mubr.bf16.mxu0 0
    %1211 = vmatmul.mubr.bf16.gmra.mrb[0].mxu0 %v686
    %v1212 = vpop.f32.mrb[0].mxu0
    %v1213 = vadd.f32 0.0, %v1212
    %v1214 = vpop.f32.mrb[0].mxu0
    %v1215 = vadd.f32 0.0, %v1214
    %v1216 = vpop.f32.mrb[0].mxu0
    %v1217 = vpop.f32.mrb[0].mxu0
    %1218 = vdwg.mxu0
    %1219 = vmatprep.subr.bf16.mxu0 %v515
    %1220 = vmatpush1.bf16.msra.mxu0 %v514
    %1221 = vmatprep.subr.bf16.mxu0 %v519
    %1222 = vmatpush1.bf16.msra.mxu0 %v518
    %1223 = vmatprep.subr.bf16.mxu0 %v523
    %1224 = vmatpush1.bf16.msra.mxu0 %v522
    %1225 = vmatprep.subr.bf16.mxu0 %v527
    %1226 = vmatpush1.bf16.msra.mxu0 %v526
    %1227 = vmatprep.subr.bf16.mxu0 %v531
    %1228 = vmatpush1.bf16.msra.mxu0 %v530
    %1229 = vmatprep.subr.bf16.mxu0 %v535
    %1230 = vmatpush1.bf16.msra.mxu0 %v534
    %1231 = vmatprep.subr.bf16.mxu0 %v539
    %1232 = vmatpush1.bf16.msra.mxu0 %v538
    %1233 = vmatprep.subr.bf16.mxu0 %v543
    %1234 = vmatpush1.bf16.msra.mxu0 %v542
    %1235 = vmatprep.subr.bf16.mxu0 0
    %1236 = vmatpush1.bf16.msra.mxu0 0
    %1237 = vmatprep.subr.bf16.mxu0 0
    %1238 = vmatpush1.bf16.msra.mxu0 0
    %1239 = vmatprep.subr.bf16.mxu0 0
    %1240 = vmatpush1.bf16.msra.mxu0 0
    %1241 = vmatprep.subr.bf16.mxu0 0
    %1242 = vmatpush1.bf16.msra.mxu0 0
    %1243 = vmatprep.subr.bf16.mxu0 0
    %1244 = vmatpush1.bf16.msra.mxu0 0
    %1245 = vmatprep.subr.bf16.mxu0 0
    %1246 = vmatpush1.bf16.msra.mxu0 0
    %1247 = vmatprep.subr.bf16.mxu0 0
    %1248 = vmatpush1.bf16.msra.mxu0 0
    %1249 = vmatprep.subr.bf16.mxu0 0
    %1250 = vmatpush1.bf16.msra.mxu0 0
    %1251 = vmatprep.mubr.bf16.mxu0 0
    %1252 = vmatmul.mubr.bf16.gmra.mrb[0].mxu0 %v686
    %v1253 = vpop.f32.mrb[0].mxu0
    %v1254 = vadd.f32 0.0, %v1253
    %v1255 = vpop.f32.mrb[0].mxu0
    %v1256 = vadd.f32 0.0, %v1255
    %v1257 = vpop.f32.mrb[0].mxu0
    %v1258 = vpop.f32.mrb[0].mxu0
    %1259 = vdwg.mxu0
    %v1260 = vadd.f32 %v209, %v1213
    %v1261 = vadd.f32 %v211, %v1215
    %v1262 = vadd.f32 %v322, %v1254
    %v1263 = vadd.f32 %v324, %v1256
    %v1264 = vxor.u32 %v1260, 2147483648
    %v1265 = vmul.f32 %v1264, 1.442695
    %v1266 = vpow.pop %v1265
    %v1267 = vadd.f32 %v1266, 1.0
    %v1268 = vrcp.pop %v1267
    %v1269 = vmul.f32 1.0, %v1268
    %v1270 = vxor.u32 %v1261, 2147483648
    %v1271 = vmul.f32 %v1270, 1.442695
    %v1272 = vpow.pop %v1271
    %v1273 = vadd.f32 %v1272, 1.0
    %v1274 = vrcp.pop %v1273
    %v1275 = vmul.f32 1.0, %v1274
    %v1276 = vtanh.pop %v1262
    %v1277 = vxor.u32 %v1263, 2147483648
    %v1278 = vmul.f32 %v1277, 1.442695
    %v1279 = vpow.pop %v1278
    %v1280 = vadd.f32 %v1279, 1.0
    %v1281 = vrcp.pop %v1280
    %v1282 = vmul.f32 1.0, %v1281
    %v1283 = vmul.f32 %v1275, %v683
    %v1284 = vmul.f32 %v1269, %v1276
    %v1285 = vadd.f32 %v1283, %v1284
    %v1286 = vtanh.pop %v1285
    %v1287 = vmul.f32 %v1282, %v1286
    %v1288 = vpack.c.bf16 %v1287, %v1287
    %1289 = vmatprep.subr.bf16.mxu0 %v944
    %1290 = vmatpush1.bf16.msra.mxu0 %v943
    %1291 = vmatprep.subr.bf16.mxu0 %v948
    %1292 = vmatpush1.bf16.msra.mxu0 %v947
    %1293 = vmatprep.subr.bf16.mxu0 %v952
    %1294 = vmatpush1.bf16.msra.mxu0 %v951
    %1295 = vmatprep.subr.bf16.mxu0 %v956
    %1296 = vmatpush1.bf16.msra.mxu0 %v955
    %1297 = vmatprep.subr.bf16.mxu0 %v960
    %1298 = vmatpush1.bf16.msra.mxu0 %v959
    %1299 = vmatprep.subr.bf16.mxu0 %v964
    %1300 = vmatpush1.bf16.msra.mxu0 %v963
    %1301 = vmatprep.subr.bf16.mxu0 %v968
    %1302 = vmatpush1.bf16.msra.mxu0 %v967
    %1303 = vmatprep.subr.bf16.mxu0 %v972
    %1304 = vmatpush1.bf16.msra.mxu0 %v971
    %1305 = vmatprep.subr.bf16.mxu0 %v976
    %1306 = vmatpush1.bf16.msra.mxu0 %v975
    %1307 = vmatprep.subr.bf16.mxu0 %v980
    %1308 = vmatpush1.bf16.msra.mxu0 %v979
    %1309 = vmatprep.subr.bf16.mxu0 %v984
    %1310 = vmatpush1.bf16.msra.mxu0 %v983
    %1311 = vmatprep.subr.bf16.mxu0 %v988
    %1312 = vmatpush1.bf16.msra.mxu0 %v987
    %1313 = vmatprep.subr.bf16.mxu0 %v992
    %1314 = vmatpush1.bf16.msra.mxu0 %v991
    %1315 = vmatprep.subr.bf16.mxu0 %v996
    %1316 = vmatpush1.bf16.msra.mxu0 %v995
    %1317 = vmatprep.subr.bf16.mxu0 %v1000
    %1318 = vmatpush1.bf16.msra.mxu0 %v999
    %1319 = vmatprep.subr.bf16.mxu0 %v1004
    %1320 = vmatpush1.bf16.msra.mxu0 %v1003
    %1321 = vmatprep.mubr.bf16.mxu0 %v1177
    %1322 = vmatmul.mubr.bf16.gmra.mrb[0].mxu0 %v1288
    %v1323 = vpop.f32.mrb[0].mxu0
    %v1324 = vadd.f32 %v367, %v1323
    %v1325 = vpop.f32.mrb[0].mxu0
    %v1326 = vadd.f32 %v371, %v1325
    %v1327 = vpop.f32.mrb[0].mxu0
    %v1328 = vpop.f32.mrb[0].mxu0
    %1329 = vdwg.mxu0
    %1330 = vmatprep.subr.bf16.mxu0 %v946
    %1331 = vmatpush1.bf16.msra.mxu0 %v945
    %1332 = vmatprep.subr.bf16.mxu0 %v950
    %1333 = vmatpush1.bf16.msra.mxu0 %v949
    %1334 = vmatprep.subr.bf16.mxu0 %v954
    %1335 = vmatpush1.bf16.msra.mxu0 %v953
    %1336 = vmatprep.subr.bf16.mxu0 %v958
    %1337 = vmatpush1.bf16.msra.mxu0 %v957
    %1338 = vmatprep.subr.bf16.mxu0 %v962
    %1339 = vmatpush1.bf16.msra.mxu0 %v961
    %1340 = vmatprep.subr.bf16.mxu0 %v966
    %1341 = vmatpush1.bf16.msra.mxu0 %v965
    %1342 = vmatprep.subr.bf16.mxu0 %v970
    %1343 = vmatpush1.bf16.msra.mxu0 %v969
    %1344 = vmatprep.subr.bf16.mxu0 %v974
    %1345 = vmatpush1.bf16.msra.mxu0 %v973
    %1346 = vmatprep.subr.bf16.mxu0 %v978
    %1347 = vmatpush1.bf16.msra.mxu0 %v977
    %1348 = vmatprep.subr.bf16.mxu0 %v982
    %1349 = vmatpush1.bf16.msra.mxu0 %v981
    %1350 = vmatprep.subr.bf16.mxu0 %v986
    %1351 = vmatpush1.bf16.msra.mxu0 %v985
    %1352 = vmatprep.subr.bf16.mxu0 %v990
    %1353 = vmatpush1.bf16.msra.mxu0 %v989
    %1354 = vmatprep.subr.bf16.mxu0 %v994
    %1355 = vmatpush1.bf16.msra.mxu0 %v993
    %1356 = vmatprep.subr.bf16.mxu0 %v998
    %1357 = vmatpush1.bf16.msra.mxu0 %v997
    %1358 = vmatprep.subr.bf16.mxu0 %v1002
    %1359 = vmatpush1.bf16.msra.mxu0 %v1001
    %1360 = vmatprep.subr.bf16.mxu0 %v1006
    %1361 = vmatpush1.bf16.msra.mxu0 %v1005
    %1362 = vmatprep.mubr.bf16.mxu0 %v1177
    %1363 = vmatmul.mubr.bf16.gmra.mrb[0].mxu0 %v1288
    %v1364 = vpop.f32.mrb[0].mxu0
    %v1365 = vadd.f32 %v375, %v1364
    %v1366 = vpop.f32.mrb[0].mxu0
    %v1367 = vadd.f32 %v379, %v1366
    %v1368 = vpop.f32.mrb[0].mxu0
    %v1369 = vpop.f32.mrb[0].mxu0
    %1370 = vdwg.mxu0
    %v1371 = vxor.u32 %v1324, 2147483648
    %v1372 = vmul.f32 %v1371, 1.442695
    %v1373 = vpow.pop %v1372
    %v1374 = vadd.f32 %v1373, 1.0
    %v1375 = vrcp.pop %v1374
    %v1376 = vmul.f32 1.0, %v1375
    %v1377 = vxor.u32 %v1326, 2147483648
    %v1378 = vmul.f32 %v1377, 1.442695
    %v1379 = vpow.pop %v1378
    %v1380 = vadd.f32 %v1379, 1.0
    %v1381 = vrcp.pop %v1380
    %v1382 = vmul.f32 1.0, %v1381
    %v1383 = vtanh.pop %v1365
    %v1384 = vxor.u32 %v1367, 2147483648
    %v1385 = vmul.f32 %v1384, 1.442695
    %v1386 = vpow.pop %v1385
    %v1387 = vadd.f32 %v1386, 1.0
    %v1388 = vrcp.pop %v1387
    %v1389 = vmul.f32 1.0, %v1388
    %v1390 = vmul.f32 %v1382, %v1174
    %v1391 = vmul.f32 %v1376, %v1383
    %v1392 = vadd.f32 %v1390, %v1391
    %v1393 = vtanh.pop %v1392
    %v1394 = vmul.f32 %v1389, %v1393
    %v1395 = vpack.c.bf16 %v1394, %v1394
    %1396 = vmatprep.subr.bf16.mxu0 %v513
    %1397 = vmatpush1.bf16.msra.mxu0 %v512
    %1398 = vmatprep.subr.bf16.mxu0 %v517
    %1399 = vmatpush1.bf16.msra.mxu0 %v516
    %1400 = vmatprep.subr.bf16.mxu0 %v521
    %1401 = vmatpush1.bf16.msra.mxu0 %v520
    %1402 = vmatprep.subr.bf16.mxu0 %v525
    %1403 = vmatpush1.bf16.msra.mxu0 %v524
    %1404 = vmatprep.subr.bf16.mxu0 %v529
    %1405 = vmatpush1.bf16.msra.mxu0 %v528
    %1406 = vmatprep.subr.bf16.mxu0 %v533
    %1407 = vmatpush1.bf16.msra.mxu0 %v532
    %1408 = vmatprep.subr.bf16.mxu0 %v537
    %1409 = vmatpush1.bf16.msra.mxu0 %v536
    %1410 = vmatprep.subr.bf16.mxu0 %v541
    %1411 = vmatpush1.bf16.msra.mxu0 %v540
    %1412 = vmatprep.subr.bf16.mxu0 0
    %1413 = vmatpush1.bf16.msra.mxu0 0
    %1414 = vmatprep.subr.bf16.mxu0 0
    %1415 = vmatpush1.bf16.msra.mxu0 0
    %1416 = vmatprep.subr.bf16.mxu0 0
    %1417 = vmatpush1.bf16.msra.mxu0 0
    %1418 = vmatprep.subr.bf16.mxu0 0
    %1419 = vmatpush1.bf16.msra.mxu0 0
    %1420 = vmatprep.subr.bf16.mxu0 0
    %1421 = vmatpush1.bf16.msra.mxu0 0
    %1422 = vmatprep.subr.bf16.mxu0 0
    %1423 = vmatpush1.bf16.msra.mxu0 0
    %1424 = vmatprep.subr.bf16.mxu0 0
    %1425 = vmatpush1.bf16.msra.mxu0 0
    %1426 = vmatprep.subr.bf16.mxu0 0
    %1427 = vmatpush1.bf16.msra.mxu0 0
    %1428 = vmatprep.mubr.bf16.mxu0 0
    %1429 = vmatmul.mubr.bf16.gmra.mrb[0].mxu0 %v1288
    %v1430 = vpop.f32.mrb[0].mxu0
    %v1431 = vadd.f32 0.0, %v1430
    %v1432 = vpop.f32.mrb[0].mxu0
    %v1433 = vadd.f32 0.0, %v1432
    %v1434 = vpop.f32.mrb[0].mxu0
    %v1435 = vpop.f32.mrb[0].mxu0
    %1436 = vdwg.mxu0
    %1437 = vmatprep.subr.bf16.mxu0 %v515
    %1438 = vmatpush1.bf16.msra.mxu0 %v514
    %1439 = vmatprep.subr.bf16.mxu0 %v519
    %1440 = vmatpush1.bf16.msra.mxu0 %v518
    %1441 = vmatprep.subr.bf16.mxu0 %v523
    %1442 = vmatpush1.bf16.msra.mxu0 %v522
    %1443 = vmatprep.subr.bf16.mxu0 %v527
    %1444 = vmatpush1.bf16.msra.mxu0 %v526
    %1445 = vmatprep.subr.bf16.mxu0 %v531
    %1446 = vmatpush1.bf16.msra.mxu0 %v530
    %1447 = vmatprep.subr.bf16.mxu0 %v535
    %1448 = vmatpush1.bf16.msra.mxu0 %v534
    %1449 = vmatprep.subr.bf16.mxu0 %v539
    %1450 = vmatpush1.bf16.msra.mxu0 %v538
    %1451 = vmatprep.subr.bf16.mxu0 %v543
    %1452 = vmatpush1.bf16.msra.mxu0 %v542
    %1453 = vmatprep.subr.bf16.mxu0 0
    %1454 = vmatpush1.bf16.msra.mxu0 0
    %1455 = vmatprep.subr.bf16.mxu0 0
    %1456 = vmatpush1.bf16.msra.mxu0 0
    %1457 = vmatprep.subr.bf16.mxu0 0
    %1458 = vmatpush1.bf16.msra.mxu0 0
    %1459 = vmatprep.subr.bf16.mxu0 0
    %1460 = vmatpush1.bf16.msra.mxu0 0
    %1461 = vmatprep.subr.bf16.mxu0 0
    %1462 = vmatpush1.bf16.msra.mxu0 0
    %1463 = vmatprep.subr.bf16.mxu0 0
    %1464 = vmatpush1.bf16.msra.mxu0 0
    %1465 = vmatprep.subr.bf16.mxu0 0
    %1466 = vmatpush1.bf16.msra.mxu0 0
    %1467 = vmatprep.subr.bf16.mxu0 0
    %1468 = vmatpush1.bf16.msra.mxu0 0
    %1469 = vmatprep.mubr.bf16.mxu0 0
    %1470 = vmatmul.mubr.bf16.gmra.mrb[0].mxu0 %v1288
    %v1471 = vpop.f32.mrb[0].mxu0
    %v1472 = vadd.f32 0.0, %v1471
    %v1473 = vpop.f32.mrb[0].mxu0
    %v1474 = vadd.f32 0.0, %v1473
    %v1475 = vpop.f32.mrb[0].mxu0
    %v1476 = vpop.f32.mrb[0].mxu0
    %1477 = vdwg.mxu0
    %v1478 = vadd.f32 %v215, %v1431
    %v1479 = vadd.f32 %v217, %v1433
    %v1480 = vadd.f32 %v328, %v1472
    %v1481 = vadd.f32 %v330, %v1474
    %v1482 = vxor.u32 %v1478, 2147483648
    %v1483 = vmul.f32 %v1482, 1.442695
    %v1484 = vpow.pop %v1483
    %v1485 = vadd.f32 %v1484, 1.0
    %v1486 = vrcp.pop %v1485
    %v1487 = vmul.f32 1.0, %v1486
    %v1488 = vxor.u32 %v1479, 2147483648
    %v1489 = vmul.f32 %v1488, 1.442695
    %v1490 = vpow.pop %v1489
    %v1491 = vadd.f32 %v1490, 1.0
    %v1492 = vrcp.pop %v1491
    %v1493 = vmul.f32 1.0, %v1492
    %v1494 = vtanh.pop %v1480
    %v1495 = vxor.u32 %v1481, 2147483648
    %v1496 = vmul.f32 %v1495, 1.442695
    %v1497 = vpow.pop %v1496
    %v1498 = vadd.f32 %v1497, 1.0
    %v1499 = vrcp.pop %v1498
    %v1500 = vmul.f32 1.0, %v1499
    %v1501 = vmul.f32 %v1493, %v1285
    %v1502 = vmul.f32 %v1487, %v1494
    %v1503 = vadd.f32 %v1501, %v1502
    %v1504 = vtanh.pop %v1503
    %v1505 = vmul.f32 %v1500, %v1504
    %v1506 = vpack.c.bf16 %v1505, %v1505
    %1507 = vmatprep.subr.bf16.mxu0 %v944
    %1508 = vmatpush1.bf16.msra.mxu0 %v943
    %1509 = vmatprep.subr.bf16.mxu0 %v948
    %1510 = vmatpush1.bf16.msra.mxu0 %v947
    %1511 = vmatprep.subr.bf16.mxu0 %v952
    %1512 = vmatpush1.bf16.msra.mxu0 %v951
    %1513 = vmatprep.subr.bf16.mxu0 %v956
    %1514 = vmatpush1.bf16.msra.mxu0 %v955
    %1515 = vmatprep.subr.bf16.mxu0 %v960
    %1516 = vmatpush1.bf16.msra.mxu0 %v959
    %1517 = vmatprep.subr.bf16.mxu0 %v964
    %1518 = vmatpush1.bf16.msra.mxu0 %v963
    %1519 = vmatprep.subr.bf16.mxu0 %v968
    %1520 = vmatpush1.bf16.msra.mxu0 %v967
    %1521 = vmatprep.subr.bf16.mxu0 %v972
    %1522 = vmatpush1.bf16.msra.mxu0 %v971
    %1523 = vmatprep.subr.bf16.mxu0 %v976
    %1524 = vmatpush1.bf16.msra.mxu0 %v975
    %1525 = vmatprep.subr.bf16.mxu0 %v980
    %1526 = vmatpush1.bf16.msra.mxu0 %v979
    %1527 = vmatprep.subr.bf16.mxu0 %v984
    %1528 = vmatpush1.bf16.msra.mxu0 %v983
    %1529 = vmatprep.subr.bf16.mxu0 %v988
    %1530 = vmatpush1.bf16.msra.mxu0 %v987
    %1531 = vmatprep.subr.bf16.mxu0 %v992
    %1532 = vmatpush1.bf16.msra.mxu0 %v991
    %1533 = vmatprep.subr.bf16.mxu0 %v996
    %1534 = vmatpush1.bf16.msra.mxu0 %v995
    %1535 = vmatprep.subr.bf16.mxu0 %v1000
    %1536 = vmatpush1.bf16.msra.mxu0 %v999
    %1537 = vmatprep.subr.bf16.mxu0 %v1004
    %1538 = vmatpush1.bf16.msra.mxu0 %v1003
    %1539 = vmatprep.mubr.bf16.mxu0 %v1395
    %1540 = vmatmul.mubr.bf16.gmra.mrb[0].mxu0 %v1506
    %v1541 = vpop.f32.mrb[0].mxu0
    %v1542 = vadd.f32 %v367, %v1541
    %v1543 = vpop.f32.mrb[0].mxu0
    %v1544 = vadd.f32 %v371, %v1543
    %v1545 = vpop.f32.mrb[0].mxu0
    %v1546 = vpop.f32.mrb[0].mxu0
    %1547 = vdwg.mxu0
    %1548 = vmatprep.subr.bf16.mxu0 %v946
    %1549 = vmatpush1.bf16.msra.mxu0 %v945
    %1550 = vmatprep.subr.bf16.mxu0 %v950
    %1551 = vmatpush1.bf16.msra.mxu0 %v949
    %1552 = vmatprep.subr.bf16.mxu0 %v954
    %1553 = vmatpush1.bf16.msra.mxu0 %v953
    %1554 = vmatprep.subr.bf16.mxu0 %v958
    %1555 = vmatpush1.bf16.msra.mxu0 %v957
    %1556 = vmatprep.subr.bf16.mxu0 %v962
    %1557 = vmatpush1.bf16.msra.mxu0 %v961
    %1558 = vmatprep.subr.bf16.mxu0 %v966
    %1559 = vmatpush1.bf16.msra.mxu0 %v965
    %1560 = vmatprep.subr.bf16.mxu0 %v970
    %1561 = vmatpush1.bf16.msra.mxu0 %v969
    %1562 = vmatprep.subr.bf16.mxu0 %v974
    %1563 = vmatpush1.bf16.msra.mxu0 %v973
    %1564 = vmatprep.subr.bf16.mxu0 %v978
    %1565 = vmatpush1.bf16.msra.mxu0 %v977
    %1566 = vmatprep.subr.bf16.mxu0 %v982
    %1567 = vmatpush1.bf16.msra.mxu0 %v981
    %1568 = vmatprep.subr.bf16.mxu0 %v986
    %1569 = vmatpush1.bf16.msra.mxu0 %v985
    %1570 = vmatprep.subr.bf16.mxu0 %v990
    %1571 = vmatpush1.bf16.msra.mxu0 %v989
    %1572 = vmatprep.subr.bf16.mxu0 %v994
    %1573 = vmatpush1.bf16.msra.mxu0 %v993
    %1574 = vmatprep.subr.bf16.mxu0 %v998
    %1575 = vmatpush1.bf16.msra.mxu0 %v997
    %1576 = vmatprep.subr.bf16.mxu0 %v1002
    %1577 = vmatpush1.bf16.msra.mxu0 %v1001
    %1578 = vmatprep.subr.bf16.mxu0 %v1006
    %1579 = vmatpush1.bf16.msra.mxu0 %v1005
    %1580 = vmatprep.mubr.bf16.mxu0 %v1395
    %1581 = vmatmul.mubr.bf16.gmra.mrb[0].mxu0 %v1506
    %v1582 = vpop.f32.mrb[0].mxu0
    %v1583 = vadd.f32 %v375, %v1582
    %v1584 = vpop.f32.mrb[0].mxu0
    %v1585 = vadd.f32 %v379, %v1584
    %v1586 = vpop.f32.mrb[0].mxu0
    %v1587 = vpop.f32.mrb[0].mxu0
    %1588 = vdwg.mxu0
    %v1589 = vxor.u32 %v1542, 2147483648
    %v1590 = vmul.f32 %v1589, 1.442695
    %v1591 = vpow.pop %v1590
    %v1592 = vadd.f32 %v1591, 1.0
    %v1593 = vrcp.pop %v1592
    %v1594 = vmul.f32 1.0, %v1593
    %v1595 = vxor.u32 %v1544, 2147483648
    %v1596 = vmul.f32 %v1595, 1.442695
    %v1597 = vpow.pop %v1596
    %v1598 = vadd.f32 %v1597, 1.0
    %v1599 = vrcp.pop %v1598
    %v1600 = vmul.f32 1.0, %v1599
    %v1601 = vtanh.pop %v1583
    %v1602 = vxor.u32 %v1585, 2147483648
    %v1603 = vmul.f32 %v1602, 1.442695
    %v1604 = vpow.pop %v1603
    %v1605 = vadd.f32 %v1604, 1.0
    %v1606 = vrcp.pop %v1605
    %v1607 = vmul.f32 1.0, %v1606
    %v1608 = vmul.f32 %v1600, %v1392
    %v1609 = vmul.f32 %v1594, %v1601
    %v1610 = vadd.f32 %v1608, %v1609
    %v1611 = vtanh.pop %v1610
    %v1612 = vmul.f32 %v1607, %v1611
    %v1613 = vpack.c.bf16 %v1612, %v1612
    %1614 = vmatprep.subr.bf16.mxu0 %v513
    %1615 = vmatpush1.bf16.msra.mxu0 %v512
    %1616 = vmatprep.subr.bf16.mxu0 %v517
    %1617 = vmatpush1.bf16.msra.mxu0 %v516
    %1618 = vmatprep.subr.bf16.mxu0 %v521
    %1619 = vmatpush1.bf16.msra.mxu0 %v520
    %1620 = vmatprep.subr.bf16.mxu0 %v525
    %1621 = vmatpush1.bf16.msra.mxu0 %v524
    %1622 = vmatprep.subr.bf16.mxu0 %v529
    %1623 = vmatpush1.bf16.msra.mxu0 %v528
    %1624 = vmatprep.subr.bf16.mxu0 %v533
    %1625 = vmatpush1.bf16.msra.mxu0 %v532
    %1626 = vmatprep.subr.bf16.mxu0 %v537
    %1627 = vmatpush1.bf16.msra.mxu0 %v536
    %1628 = vmatprep.subr.bf16.mxu0 %v541
    %1629 = vmatpush1.bf16.msra.mxu0 %v540
    %1630 = vmatprep.subr.bf16.mxu0 0
    %1631 = vmatpush1.bf16.msra.mxu0 0
    %1632 = vmatprep.subr.bf16.mxu0 0
    %1633 = vmatpush1.bf16.msra.mxu0 0
    %1634 = vmatprep.subr.bf16.mxu0 0
    %1635 = vmatpush1.bf16.msra.mxu0 0
    %1636 = vmatprep.subr.bf16.mxu0 0
    %1637 = vmatpush1.bf16.msra.mxu0 0
    %1638 = vmatprep.subr.bf16.mxu0 0
    %1639 = vmatpush1.bf16.msra.mxu0 0
    %1640 = vmatprep.subr.bf16.mxu0 0
    %1641 = vmatpush1.bf16.msra.mxu0 0
    %1642 = vmatprep.subr.bf16.mxu0 0
    %1643 = vmatpush1.bf16.msra.mxu0 0
    %1644 = vmatprep.subr.bf16.mxu0 0
    %1645 = vmatpush1.bf16.msra.mxu0 0
    %1646 = vmatprep.mubr.bf16.mxu0 0
    %1647 = vmatmul.mubr.bf16.gmra.mrb[0].mxu0 %v1506
    %v1648 = vpop.f32.mrb[0].mxu0
    %v1649 = vadd.f32 0.0, %v1648
    %v1650 = vpop.f32.mrb[0].mxu0
    %v1651 = vadd.f32 0.0, %v1650
    %v1652 = vpop.f32.mrb[0].mxu0
    %v1653 = vpop.f32.mrb[0].mxu0
    %1654 = vdwg.mxu0
    %1655 = vmatprep.subr.bf16.mxu0 %v515
    %1656 = vmatpush1.bf16.msra.mxu0 %v514
    %1657 = vmatprep.subr.bf16.mxu0 %v519
    %1658 = vmatpush1.bf16.msra.mxu0 %v518
    %1659 = vmatprep.subr.bf16.mxu0 %v523
    %1660 = vmatpush1.bf16.msra.mxu0 %v522
    %1661 = vmatprep.subr.bf16.mxu0 %v527
    %1662 = vmatpush1.bf16.msra.mxu0 %v526
    %1663 = vmatprep.subr.bf16.mxu0 %v531
    %1664 = vmatpush1.bf16.msra.mxu0 %v530
    %1665 = vmatprep.subr.bf16.mxu0 %v535
    %1666 = vmatpush1.bf16.msra.mxu0 %v534
    %1667 = vmatprep.subr.bf16.mxu0 %v539
    %1668 = vmatpush1.bf16.msra.mxu0 %v538
    %1669 = vmatprep.subr.bf16.mxu0 %v543
    %1670 = vmatpush1.bf16.msra.mxu0 %v542
    %1671 = vmatprep.subr.bf16.mxu0 0
    %1672 = vmatpush1.bf16.msra.mxu0 0
    %1673 = vmatprep.subr.bf16.mxu0 0
    %1674 = vmatpush1.bf16.msra.mxu0 0
    %1675 = vmatprep.subr.bf16.mxu0 0
    %1676 = vmatpush1.bf16.msra.mxu0 0
    %1677 = vmatprep.subr.bf16.mxu0 0
    %1678 = vmatpush1.bf16.msra.mxu0 0
    %1679 = vmatprep.subr.bf16.mxu0 0
    %1680 = vmatpush1.bf16.msra.mxu0 0
    %1681 = vmatprep.subr.bf16.mxu0 0
    %1682 = vmatpush1.bf16.msra.mxu0 0
    %1683 = vmatprep.subr.bf16.mxu0 0
    %1684 = vmatpush1.bf16.msra.mxu0 0
    %1685 = vmatprep.subr.bf16.mxu0 0
    %1686 = vmatpush1.bf16.msra.mxu0 0
    %1687 = vmatprep.mubr.bf16.mxu0 0
    %1688 = vmatmul.mubr.bf16.gmra.mrb[0].mxu0 %v1506
    %v1689 = vpop.f32.mrb[0].mxu0
    %v1690 = vadd.f32 0.0, %v1689
    %v1691 = vpop.f32.mrb[0].mxu0
    %v1692 = vadd.f32 0.0, %v1691
    %v1693 = vpop.f32.mrb[0].mxu0
    %v1694 = vpop.f32.mrb[0].mxu0
    %1695 = vdwg.mxu0
    %v1696 = vadd.f32 %v221, %v1649
    %v1697 = vadd.f32 %v223, %v1651
    %v1698 = vadd.f32 %v334, %v1690
    %v1699 = vadd.f32 %v336, %v1692
    %v1700 = vxor.u32 %v1696, 2147483648
    %v1701 = vmul.f32 %v1700, 1.442695
    %v1702 = vpow.pop %v1701
    %v1703 = vadd.f32 %v1702, 1.0
    %v1704 = vrcp.pop %v1703
    %v1705 = vmul.f32 1.0, %v1704
    %v1706 = vxor.u32 %v1697, 2147483648
    %v1707 = vmul.f32 %v1706, 1.442695
    %v1708 = vpow.pop %v1707
    %v1709 = vadd.f32 %v1708, 1.0
    %v1710 = vrcp.pop %v1709
    %v1711 = vmul.f32 1.0, %v1710
    %v1712 = vtanh.pop %v1698
    %v1713 = vxor.u32 %v1699, 2147483648
    %v1714 = vmul.f32 %v1713, 1.442695
    %v1715 = vpow.pop %v1714
    %v1716 = vadd.f32 %v1715, 1.0
    %v1717 = vrcp.pop %v1716
    %v1718 = vmul.f32 1.0, %v1717
    %v1719 = vmul.f32 %v1711, %v1503
    %v1720 = vmul.f32 %v1705, %v1712
    %v1721 = vadd.f32 %v1719, %v1720
    %v1722 = vtanh.pop %v1721
    %v1723 = vmul.f32 %v1718, %v1722
    %v1724 = vpack.c.bf16 %v1723, %v1723
    %1725 = vmatprep.subr.bf16.mxu0 %v944
    %1726 = vmatpush1.bf16.msra.mxu0 %v943
    %1727 = vmatprep.subr.bf16.mxu0 %v948
    %1728 = vmatpush1.bf16.msra.mxu0 %v947
    %1729 = vmatprep.subr.bf16.mxu0 %v952
    %1730 = vmatpush1.bf16.msra.mxu0 %v951
    %1731 = vmatprep.subr.bf16.mxu0 %v956
    %1732 = vmatpush1.bf16.msra.mxu0 %v955
    %1733 = vmatprep.subr.bf16.mxu0 %v960
    %1734 = vmatpush1.bf16.msra.mxu0 %v959
    %1735 = vmatprep.subr.bf16.mxu0 %v964
    %1736 = vmatpush1.bf16.msra.mxu0 %v963
    %1737 = vmatprep.subr.bf16.mxu0 %v968
    %1738 = vmatpush1.bf16.msra.mxu0 %v967
    %1739 = vmatprep.subr.bf16.mxu0 %v972
    %1740 = vmatpush1.bf16.msra.mxu0 %v971
    %1741 = vmatprep.subr.bf16.mxu0 %v976
    %1742 = vmatpush1.bf16.msra.mxu0 %v975
    %1743 = vmatprep.subr.bf16.mxu0 %v980
    %1744 = vmatpush1.bf16.msra.mxu0 %v979
    %1745 = vmatprep.subr.bf16.mxu0 %v984
    %1746 = vmatpush1.bf16.msra.mxu0 %v983
    %1747 = vmatprep.subr.bf16.mxu0 %v988
    %1748 = vmatpush1.bf16.msra.mxu0 %v987
    %1749 = vmatprep.subr.bf16.mxu0 %v992
    %1750 = vmatpush1.bf16.msra.mxu0 %v991
    %1751 = vmatprep.subr.bf16.mxu0 %v996
    %1752 = vmatpush1.bf16.msra.mxu0 %v995
    %1753 = vmatprep.subr.bf16.mxu0 %v1000
    %1754 = vmatpush1.bf16.msra.mxu0 %v999
    %1755 = vmatprep.subr.bf16.mxu0 %v1004
    %1756 = vmatpush1.bf16.msra.mxu0 %v1003
    %1757 = vmatprep.mubr.bf16.mxu0 %v1613
    %1758 = vmatmul.mubr.bf16.gmra.mrb[0].mxu0 %v1724
    %v1759 = vpop.f32.mrb[0].mxu0
    %v1760 = vadd.f32 %v367, %v1759
    %v1761 = vpop.f32.mrb[0].mxu0
    %v1762 = vadd.f32 %v371, %v1761
    %v1763 = vpop.f32.mrb[0].mxu0
    %v1764 = vpop.f32.mrb[0].mxu0
    %1765 = vdwg.mxu0
    %1766 = vmatprep.subr.bf16.mxu0 %v946
    %1767 = vmatpush1.bf16.msra.mxu0 %v945
    %1768 = vmatprep.subr.bf16.mxu0 %v950
    %1769 = vmatpush1.bf16.msra.mxu0 %v949
    %1770 = vmatprep.subr.bf16.mxu0 %v954
    %1771 = vmatpush1.bf16.msra.mxu0 %v953
    %1772 = vmatprep.subr.bf16.mxu0 %v958
    %1773 = vmatpush1.bf16.msra.mxu0 %v957
    %1774 = vmatprep.subr.bf16.mxu0 %v962
    %1775 = vmatpush1.bf16.msra.mxu0 %v961
    %1776 = vmatprep.subr.bf16.mxu0 %v966
    %1777 = vmatpush1.bf16.msra.mxu0 %v965
    %1778 = vmatprep.subr.bf16.mxu0 %v970
    %1779 = vmatpush1.bf16.msra.mxu0 %v969
    %1780 = vmatprep.subr.bf16.mxu0 %v974
    %1781 = vmatpush1.bf16.msra.mxu0 %v973
    %1782 = vmatprep.subr.bf16.mxu0 %v978
    %1783 = vmatpush1.bf16.msra.mxu0 %v977
    %1784 = vmatprep.subr.bf16.mxu0 %v982
    %1785 = vmatpush1.bf16.msra.mxu0 %v981
    %1786 = vmatprep.subr.bf16.mxu0 %v986
    %1787 = vmatpush1.bf16.msra.mxu0 %v985
    %1788 = vmatprep.subr.bf16.mxu0 %v990
    %1789 = vmatpush1.bf16.msra.mxu0 %v989
    %1790 = vmatprep.subr.bf16.mxu0 %v994
    %1791 = vmatpush1.bf16.msra.mxu0 %v993
    %1792 = vmatprep.subr.bf16.mxu0 %v998
    %1793 = vmatpush1.bf16.msra.mxu0 %v997
    %1794 = vmatprep.subr.bf16.mxu0 %v1002
    %1795 = vmatpush1.bf16.msra.mxu0 %v1001
    %1796 = vmatprep.subr.bf16.mxu0 %v1006
    %1797 = vmatpush1.bf16.msra.mxu0 %v1005
    %1798 = vmatprep.mubr.bf16.mxu0 %v1613
    %1799 = vmatmul.mubr.bf16.gmra.mrb[0].mxu0 %v1724
    %v1800 = vpop.f32.mrb[0].mxu0
    %v1801 = vadd.f32 %v375, %v1800
    %v1802 = vpop.f32.mrb[0].mxu0
    %v1803 = vadd.f32 %v379, %v1802
    %v1804 = vpop.f32.mrb[0].mxu0
    %v1805 = vpop.f32.mrb[0].mxu0
    %1806 = vdwg.mxu0
    %v1807 = vxor.u32 %v1760, 2147483648
    %v1808 = vmul.f32 %v1807, 1.442695
    %v1809 = vpow.pop %v1808
    %v1810 = vadd.f32 %v1809, 1.0
    %v1811 = vrcp.pop %v1810
    %v1812 = vmul.f32 1.0, %v1811
    %v1813 = vxor.u32 %v1762, 2147483648
    %v1814 = vmul.f32 %v1813, 1.442695
    %v1815 = vpow.pop %v1814
    %v1816 = vadd.f32 %v1815, 1.0
    %v1817 = vrcp.pop %v1816
    %v1818 = vmul.f32 1.0, %v1817
    %v1819 = vtanh.pop %v1801
    %v1820 = vxor.u32 %v1803, 2147483648
    %v1821 = vmul.f32 %v1820, 1.442695
    %v1822 = vpow.pop %v1821
    %v1823 = vadd.f32 %v1822, 1.0
    %v1824 = vrcp.pop %v1823
    %v1825 = vmul.f32 1.0, %v1824
    %v1826 = vmul.f32 %v1818, %v1610
    %v1827 = vmul.f32 %v1812, %v1819
    %v1828 = vadd.f32 %v1826, %v1827
    %v1829 = vtanh.pop %v1828
    %v1830 = vmul.f32 %v1825, %v1829
    %v1831 = vpack.c.bf16 %v1830, %v1830
    %1832 = vmatprep.subr.bf16.mxu0 %v513
    %1833 = vmatpush1.bf16.msra.mxu0 %v512
    %1834 = vmatprep.subr.bf16.mxu0 %v517
    %1835 = vmatpush1.bf16.msra.mxu0 %v516
    %1836 = vmatprep.subr.bf16.mxu0 %v521
    %1837 = vmatpush1.bf16.msra.mxu0 %v520
    %1838 = vmatprep.subr.bf16.mxu0 %v525
    %1839 = vmatpush1.bf16.msra.mxu0 %v524
    %1840 = vmatprep.subr.bf16.mxu0 %v529
    %1841 = vmatpush1.bf16.msra.mxu0 %v528
    %1842 = vmatprep.subr.bf16.mxu0 %v533
    %1843 = vmatpush1.bf16.msra.mxu0 %v532
    %1844 = vmatprep.subr.bf16.mxu0 %v537
    %1845 = vmatpush1.bf16.msra.mxu0 %v536
    %1846 = vmatprep.subr.bf16.mxu0 %v541
    %1847 = vmatpush1.bf16.msra.mxu0 %v540
    %1848 = vmatprep.subr.bf16.mxu0 0
    %1849 = vmatpush1.bf16.msra.mxu0 0
    %1850 = vmatprep.subr.bf16.mxu0 0
    %1851 = vmatpush1.bf16.msra.mxu0 0
    %1852 = vmatprep.subr.bf16.mxu0 0
    %1853 = vmatpush1.bf16.msra.mxu0 0
    %1854 = vmatprep.subr.bf16.mxu0 0
    %1855 = vmatpush1.bf16.msra.mxu0 0
    %1856 = vmatprep.subr.bf16.mxu0 0
    %1857 = vmatpush1.bf16.msra.mxu0 0
    %1858 = vmatprep.subr.bf16.mxu0 0
    %1859 = vmatpush1.bf16.msra.mxu0 0
    %1860 = vmatprep.subr.bf16.mxu0 0
    %1861 = vmatpush1.bf16.msra.mxu0 0
    %1862 = vmatprep.subr.bf16.mxu0 0
    %1863 = vmatpush1.bf16.msra.mxu0 0
    %1864 = vmatprep.mubr.bf16.mxu0 0
    %1865 = vmatmul.mubr.bf16.gmra.mrb[0].mxu0 %v1724
    %v1866 = vpop.f32.mrb[0].mxu0
    %v1867 = vadd.f32 0.0, %v1866
    %v1868 = vpop.f32.mrb[0].mxu0
    %v1869 = vadd.f32 0.0, %v1868
    %v1870 = vpop.f32.mrb[0].mxu0
    %v1871 = vpop.f32.mrb[0].mxu0
    %1872 = vdwg.mxu0
    %1873 = vmatprep.subr.bf16.mxu0 %v515
    %1874 = vmatpush1.bf16.msra.mxu0 %v514
    %1875 = vmatprep.subr.bf16.mxu0 %v519
    %1876 = vmatpush1.bf16.msra.mxu0 %v518
    %1877 = vmatprep.subr.bf16.mxu0 %v523
    %1878 = vmatpush1.bf16.msra.mxu0 %v522
    %1879 = vmatprep.subr.bf16.mxu0 %v527
    %1880 = vmatpush1.bf16.msra.mxu0 %v526
    %1881 = vmatprep.subr.bf16.mxu0 %v531
    %1882 = vmatpush1.bf16.msra.mxu0 %v530
    %1883 = vmatprep.subr.bf16.mxu0 %v535
    %1884 = vmatpush1.bf16.msra.mxu0 %v534
    %1885 = vmatprep.subr.bf16.mxu0 %v539
    %1886 = vmatpush1.bf16.msra.mxu0 %v538
    %1887 = vmatprep.subr.bf16.mxu0 %v543
    %1888 = vmatpush1.bf16.msra.mxu0 %v542
    %1889 = vmatprep.subr.bf16.mxu0 0
    %1890 = vmatpush1.bf16.msra.mxu0 0
    %1891 = vmatprep.subr.bf16.mxu0 0
    %1892 = vmatpush1.bf16.msra.mxu0 0
    %1893 = vmatprep.subr.bf16.mxu0 0
    %1894 = vmatpush1.bf16.msra.mxu0 0
    %1895 = vmatprep.subr.bf16.mxu0 0
    %1896 = vmatpush1.bf16.msra.mxu0 0
    %1897 = vmatprep.subr.bf16.mxu0 0
    %1898 = vmatpush1.bf16.msra.mxu0 0
    %1899 = vmatprep.subr.bf16.mxu0 0
    %1900 = vmatpush1.bf16.msra.mxu0 0
    %1901 = vmatprep.subr.bf16.mxu0 0
    %1902 = vmatpush1.bf16.msra.mxu0 0
    %1903 = vmatprep.subr.bf16.mxu0 0
    %1904 = vmatpush1.bf16.msra.mxu0 0
    %1905 = vmatprep.mubr.bf16.mxu0 0
    %1906 = vmatmul.mubr.bf16.gmra.mrb[0].mxu0 %v1724
    %v1907 = vpop.f32.mrb[0].mxu0
    %v1908 = vadd.f32 0.0, %v1907
    %v1909 = vpop.f32.mrb[0].mxu0
    %v1910 = vadd.f32 0.0, %v1909
    %v1911 = vpop.f32.mrb[0].mxu0
    %v1912 = vpop.f32.mrb[0].mxu0
    %1913 = vdwg.mxu0
    %v1914 = vadd.f32 %v227, %v1867
    %v1915 = vadd.f32 %v229, %v1869
    %v1916 = vadd.f32 %v340, %v1908
    %v1917 = vadd.f32 %v342, %v1910
    %v1918 = vxor.u32 %v1914, 2147483648
    %v1919 = vmul.f32 %v1918, 1.442695
    %v1920 = vpow.pop %v1919
    %v1921 = vadd.f32 %v1920, 1.0
    %v1922 = vrcp.pop %v1921
    %v1923 = vmul.f32 1.0, %v1922
    %v1924 = vxor.u32 %v1915, 2147483648
    %v1925 = vmul.f32 %v1924, 1.442695
    %v1926 = vpow.pop %v1925
    %v1927 = vadd.f32 %v1926, 1.0
    %v1928 = vrcp.pop %v1927
    %v1929 = vmul.f32 1.0, %v1928
    %v1930 = vtanh.pop %v1916
    %v1931 = vxor.u32 %v1917, 2147483648
    %v1932 = vmul.f32 %v1931, 1.442695
    %v1933 = vpow.pop %v1932
    %v1934 = vadd.f32 %v1933, 1.0
    %v1935 = vrcp.pop %v1934
    %v1936 = vmul.f32 1.0, %v1935
    %v1937 = vmul.f32 %v1929, %v1721
    %v1938 = vmul.f32 %v1923, %v1930
    %v1939 = vadd.f32 %v1937, %v1938
    %v1940 = vtanh.pop %v1939
    %v1941 = vmul.f32 %v1936, %v1940
    %v1942 = vpack.c.bf16 %v1941, %v1941
    %1943 = vmatprep.subr.bf16.mxu0 %v944
    %1944 = vmatpush1.bf16.msra.mxu0 %v943
    %1945 = vmatprep.subr.bf16.mxu0 %v948
    %1946 = vmatpush1.bf16.msra.mxu0 %v947
    %1947 = vmatprep.subr.bf16.mxu0 %v952
    %1948 = vmatpush1.bf16.msra.mxu0 %v951
    %1949 = vmatprep.subr.bf16.mxu0 %v956
    %1950 = vmatpush1.bf16.msra.mxu0 %v955
    %1951 = vmatprep.subr.bf16.mxu0 %v960
    %1952 = vmatpush1.bf16.msra.mxu0 %v959
    %1953 = vmatprep.subr.bf16.mxu0 %v964
    %1954 = vmatpush1.bf16.msra.mxu0 %v963
    %1955 = vmatprep.subr.bf16.mxu0 %v968
    %1956 = vmatpush1.bf16.msra.mxu0 %v967
    %1957 = vmatprep.subr.bf16.mxu0 %v972
    %1958 = vmatpush1.bf16.msra.mxu0 %v971
    %1959 = vmatprep.subr.bf16.mxu0 %v976
    %1960 = vmatpush1.bf16.msra.mxu0 %v975
    %1961 = vmatprep.subr.bf16.mxu0 %v980
    %1962 = vmatpush1.bf16.msra.mxu0 %v979
    %1963 = vmatprep.subr.bf16.mxu0 %v984
    %1964 = vmatpush1.bf16.msra.mxu0 %v983
    %1965 = vmatprep.subr.bf16.mxu0 %v988
    %1966 = vmatpush1.bf16.msra.mxu0 %v987
    %1967 = vmatprep.subr.bf16.mxu0 %v992
    %1968 = vmatpush1.bf16.msra.mxu0 %v991
    %1969 = vmatprep.subr.bf16.mxu0 %v996
    %1970 = vmatpush1.bf16.msra.mxu0 %v995
    %1971 = vmatprep.subr.bf16.mxu0 %v1000
    %1972 = vmatpush1.bf16.msra.mxu0 %v999
    %1973 = vmatprep.subr.bf16.mxu0 %v1004
    %1974 = vmatpush1.bf16.msra.mxu0 %v1003
    %1975 = vmatprep.mubr.bf16.mxu0 %v1831
    %1976 = vmatmul.mubr.bf16.gmra.mrb[0].mxu0 %v1942
    %v1977 = vpop.f32.mrb[0].mxu0
    %v1978 = vadd.f32 %v367, %v1977
    %v1979 = vpop.f32.mrb[0].mxu0
    %v1980 = vadd.f32 %v371, %v1979
    %v1981 = vpop.f32.mrb[0].mxu0
    %v1982 = vpop.f32.mrb[0].mxu0
    %1983 = vdwg.mxu0
    %1984 = vmatprep.subr.bf16.mxu0 %v946
    %1985 = vmatpush1.bf16.msra.mxu0 %v945
    %1986 = vmatprep.subr.bf16.mxu0 %v950
    %1987 = vmatpush1.bf16.msra.mxu0 %v949
    %1988 = vmatprep.subr.bf16.mxu0 %v954
    %1989 = vmatpush1.bf16.msra.mxu0 %v953
    %1990 = vmatprep.subr.bf16.mxu0 %v958
    %1991 = vmatpush1.bf16.msra.mxu0 %v957
    %1992 = vmatprep.subr.bf16.mxu0 %v962
    %1993 = vmatpush1.bf16.msra.mxu0 %v961
    %1994 = vmatprep.subr.bf16.mxu0 %v966
    %1995 = vmatpush1.bf16.msra.mxu0 %v965
    %1996 = vmatprep.subr.bf16.mxu0 %v970
    %1997 = vmatpush1.bf16.msra.mxu0 %v969
    %1998 = vmatprep.subr.bf16.mxu0 %v974
    %1999 = vmatpush1.bf16.msra.mxu0 %v973
    %2000 = vmatprep.subr.bf16.mxu0 %v978
    %2001 = vmatpush1.bf16.msra.mxu0 %v977
    %2002 = vmatprep.subr.bf16.mxu0 %v982
    %2003 = vmatpush1.bf16.msra.mxu0 %v981
    %2004 = vmatprep.subr.bf16.mxu0 %v986
    %2005 = vmatpush1.bf16.msra.mxu0 %v985
    %2006 = vmatprep.subr.bf16.mxu0 %v990
    %2007 = vmatpush1.bf16.msra.mxu0 %v989
    %2008 = vmatprep.subr.bf16.mxu0 %v994
    %2009 = vmatpush1.bf16.msra.mxu0 %v993
    %2010 = vmatprep.subr.bf16.mxu0 %v998
    %2011 = vmatpush1.bf16.msra.mxu0 %v997
    %2012 = vmatprep.subr.bf16.mxu0 %v1002
    %2013 = vmatpush1.bf16.msra.mxu0 %v1001
    %2014 = vmatprep.subr.bf16.mxu0 %v1006
    %2015 = vmatpush1.bf16.msra.mxu0 %v1005
    %2016 = vmatprep.mubr.bf16.mxu0 %v1831
    %2017 = vmatmul.mubr.bf16.gmra.mrb[0].mxu0 %v1942
    %v2018 = vpop.f32.mrb[0].mxu0
    %v2019 = vadd.f32 %v375, %v2018
    %v2020 = vpop.f32.mrb[0].mxu0
    %v2021 = vadd.f32 %v379, %v2020
    %v2022 = vpop.f32.mrb[0].mxu0
    %v2023 = vpop.f32.mrb[0].mxu0
    %2024 = vdwg.mxu0
    %v2025 = vxor.u32 %v1978, 2147483648
    %v2026 = vmul.f32 %v2025, 1.442695
    %v2027 = vpow.pop %v2026
    %v2028 = vadd.f32 %v2027, 1.0
    %v2029 = vrcp.pop %v2028
    %v2030 = vmul.f32 1.0, %v2029
    %v2031 = vxor.u32 %v1980, 2147483648
    %v2032 = vmul.f32 %v2031, 1.442695
    %v2033 = vpow.pop %v2032
    %v2034 = vadd.f32 %v2033, 1.0
    %v2035 = vrcp.pop %v2034
    %v2036 = vmul.f32 1.0, %v2035
    %v2037 = vtanh.pop %v2019
    %v2038 = vxor.u32 %v2021, 2147483648
    %v2039 = vmul.f32 %v2038, 1.442695
    %v2040 = vpow.pop %v2039
    %v2041 = vadd.f32 %v2040, 1.0
    %v2042 = vrcp.pop %v2041
    %v2043 = vmul.f32 1.0, %v2042
    %v2044 = vmul.f32 %v2036, %v1828
    %v2045 = vmul.f32 %v2030, %v2037
    %v2046 = vadd.f32 %v2044, %v2045
    %v2047 = vtanh.pop %v2046
    %v2048 = vmul.f32 %v2043, %v2047
    %v2049 = vpack.c.bf16 %v2048, %v2048
    %2050 = vmatprep.subr.bf16.mxu0 %v513
    %2051 = vmatpush1.bf16.msra.mxu0 %v512
    %2052 = vmatprep.subr.bf16.mxu0 %v517
    %2053 = vmatpush1.bf16.msra.mxu0 %v516
    %2054 = vmatprep.subr.bf16.mxu0 %v521
    %2055 = vmatpush1.bf16.msra.mxu0 %v520
    %2056 = vmatprep.subr.bf16.mxu0 %v525
    %2057 = vmatpush1.bf16.msra.mxu0 %v524
    %2058 = vmatprep.subr.bf16.mxu0 %v529
    %2059 = vmatpush1.bf16.msra.mxu0 %v528
    %2060 = vmatprep.subr.bf16.mxu0 %v533
    %2061 = vmatpush1.bf16.msra.mxu0 %v532
    %2062 = vmatprep.subr.bf16.mxu0 %v537
    %2063 = vmatpush1.bf16.msra.mxu0 %v536
    %2064 = vmatprep.subr.bf16.mxu0 %v541
    %2065 = vmatpush1.bf16.msra.mxu0 %v540
    %2066 = vmatprep.subr.bf16.mxu0 0
    %2067 = vmatpush1.bf16.msra.mxu0 0
    %2068 = vmatprep.subr.bf16.mxu0 0
    %2069 = vmatpush1.bf16.msra.mxu0 0
    %2070 = vmatprep.subr.bf16.mxu0 0
    %2071 = vmatpush1.bf16.msra.mxu0 0
    %2072 = vmatprep.subr.bf16.mxu0 0
    %2073 = vmatpush1.bf16.msra.mxu0 0
    %2074 = vmatprep.subr.bf16.mxu0 0
    %2075 = vmatpush1.bf16.msra.mxu0 0
    %2076 = vmatprep.subr.bf16.mxu0 0
    %2077 = vmatpush1.bf16.msra.mxu0 0
    %2078 = vmatprep.subr.bf16.mxu0 0
    %2079 = vmatpush1.bf16.msra.mxu0 0
    %2080 = vmatprep.subr.bf16.mxu0 0
    %2081 = vmatpush1.bf16.msra.mxu0 0
    %2082 = vmatprep.mubr.bf16.mxu0 0
    %2083 = vmatmul.mubr.bf16.gmra.mrb[0].mxu0 %v1942
    %v2084 = vpop.f32.mrb[0].mxu0
    %v2085 = vadd.f32 0.0, %v2084
    %v2086 = vpop.f32.mrb[0].mxu0
    %v2087 = vadd.f32 0.0, %v2086
    %v2088 = vpop.f32.mrb[0].mxu0
    %v2089 = vpop.f32.mrb[0].mxu0
    %2090 = vdwg.mxu0
    %2091 = vmatprep.subr.bf16.mxu0 %v515
    %2092 = vmatpush1.bf16.msra.mxu0 %v514
    %2093 = vmatprep.subr.bf16.mxu0 %v519
    %2094 = vmatpush1.bf16.msra.mxu0 %v518
    %2095 = vmatprep.subr.bf16.mxu0 %v523
    %2096 = vmatpush1.bf16.msra.mxu0 %v522
    %2097 = vmatprep.subr.bf16.mxu0 %v527
    %2098 = vmatpush1.bf16.msra.mxu0 %v526
    %2099 = vmatprep.subr.bf16.mxu0 %v531
    %2100 = vmatpush1.bf16.msra.mxu0 %v530
    %2101 = vmatprep.subr.bf16.mxu0 %v535
    %2102 = vmatpush1.bf16.msra.mxu0 %v534
    %2103 = vmatprep.subr.bf16.mxu0 %v539
    %2104 = vmatpush1.bf16.msra.mxu0 %v538
    %2105 = vmatprep.subr.bf16.mxu0 %v543
    %2106 = vmatpush1.bf16.msra.mxu0 %v542
    %2107 = vmatprep.subr.bf16.mxu0 0
    %2108 = vmatpush1.bf16.msra.mxu0 0
    %2109 = vmatprep.subr.bf16.mxu0 0
    %2110 = vmatpush1.bf16.msra.mxu0 0
    %2111 = vmatprep.subr.bf16.mxu0 0
    %2112 = vmatpush1.bf16.msra.mxu0 0
    %2113 = vmatprep.subr.bf16.mxu0 0
    %2114 = vmatpush1.bf16.msra.mxu0 0
    %2115 = vmatprep.subr.bf16.mxu0 0
    %2116 = vmatpush1.bf16.msra.mxu0 0
    %2117 = vmatprep.subr.bf16.mxu0 0
    %2118 = vmatpush1.bf16.msra.mxu0 0
    %2119 = vmatprep.subr.bf16.mxu0 0
    %2120 = vmatpush1.bf16.msra.mxu0 0
    %2121 = vmatprep.subr.bf16.mxu0 0
    %2122 = vmatpush1.bf16.msra.mxu0 0
    %2123 = vmatprep.mubr.bf16.mxu0 0
    %2124 = vmatmul.mubr.bf16.gmra.mrb[0].mxu0 %v1942
    %v2125 = vpop.f32.mrb[0].mxu0
    %v2126 = vadd.f32 0.0, %v2125
    %v2127 = vpop.f32.mrb[0].mxu0
    %v2128 = vadd.f32 0.0, %v2127
    %v2129 = vpop.f32.mrb[0].mxu0
    %v2130 = vpop.f32.mrb[0].mxu0
    %2131 = vdwg.mxu0
    %v2132 = vadd.f32 %v233, %v2085
    %v2133 = vadd.f32 %v235, %v2087
    %v2134 = vadd.f32 %v346, %v2126
    %v2135 = vadd.f32 %v348, %v2128
    %v2136 = vxor.u32 %v2132, 2147483648
    %v2137 = vmul.f32 %v2136, 1.442695
    %v2138 = vpow.pop %v2137
    %v2139 = vadd.f32 %v2138, 1.0
    %v2140 = vrcp.pop %v2139
    %v2141 = vmul.f32 1.0, %v2140
    %v2142 = vxor.u32 %v2133, 2147483648
    %v2143 = vmul.f32 %v2142, 1.442695
    %v2144 = vpow.pop %v2143
    %v2145 = vadd.f32 %v2144, 1.0
    %v2146 = vrcp.pop %v2145
    %v2147 = vmul.f32 1.0, %v2146
    %v2148 = vtanh.pop %v2134
    %v2149 = vxor.u32 %v2135, 2147483648
    %v2150 = vmul.f32 %v2149, 1.442695
    %v2151 = vpow.pop %v2150
    %v2152 = vadd.f32 %v2151, 1.0
    %v2153 = vrcp.pop %v2152
    %v2154 = vmul.f32 1.0, %v2153
    %v2155 = vmul.f32 %v2147, %v1939
    %v2156 = vmul.f32 %v2141, %v2148
    %v2157 = vadd.f32 %v2155, %v2156
    %v2158 = vtanh.pop %v2157
    %v2159 = vmul.f32 %v2154, %v2158
    %v2160 = vpack.c.bf16 %v2159, %v2159
    %2161 = vmatprep.subr.bf16.mxu0 %v944
    %2162 = vmatpush1.bf16.msra.mxu0 %v943
    %2163 = vmatprep.subr.bf16.mxu0 %v948
    %2164 = vmatpush1.bf16.msra.mxu0 %v947
    %2165 = vmatprep.subr.bf16.mxu0 %v952
    %2166 = vmatpush1.bf16.msra.mxu0 %v951
    %2167 = vmatprep.subr.bf16.mxu0 %v956
    %2168 = vmatpush1.bf16.msra.mxu0 %v955
    %2169 = vmatprep.subr.bf16.mxu0 %v960
    %2170 = vmatpush1.bf16.msra.mxu0 %v959
    %2171 = vmatprep.subr.bf16.mxu0 %v964
    %2172 = vmatpush1.bf16.msra.mxu0 %v963
    %2173 = vmatprep.subr.bf16.mxu0 %v968
    %2174 = vmatpush1.bf16.msra.mxu0 %v967
    %2175 = vmatprep.subr.bf16.mxu0 %v972
    %2176 = vmatpush1.bf16.msra.mxu0 %v971
    %2177 = vmatprep.subr.bf16.mxu0 %v976
    %2178 = vmatpush1.bf16.msra.mxu0 %v975
    %2179 = vmatprep.subr.bf16.mxu0 %v980
    %2180 = vmatpush1.bf16.msra.mxu0 %v979
    %2181 = vmatprep.subr.bf16.mxu0 %v984
    %2182 = vmatpush1.bf16.msra.mxu0 %v983
    %2183 = vmatprep.subr.bf16.mxu0 %v988
    %2184 = vmatpush1.bf16.msra.mxu0 %v987
    %2185 = vmatprep.subr.bf16.mxu0 %v992
    %2186 = vmatpush1.bf16.msra.mxu0 %v991
    %2187 = vmatprep.subr.bf16.mxu0 %v996
    %2188 = vmatpush1.bf16.msra.mxu0 %v995
    %2189 = vmatprep.subr.bf16.mxu0 %v1000
    %2190 = vmatpush1.bf16.msra.mxu0 %v999
    %2191 = vmatprep.subr.bf16.mxu0 %v1004
    %2192 = vmatpush1.bf16.msra.mxu0 %v1003
    %2193 = vmatprep.mubr.bf16.mxu0 %v2049
    %2194 = vmatmul.mubr.bf16.gmra.mrb[0].mxu0 %v2160
    %v2195 = vpop.f32.mrb[0].mxu0
    %v2196 = vadd.f32 %v367, %v2195
    %v2197 = vpop.f32.mrb[0].mxu0
    %v2198 = vadd.f32 %v371, %v2197
    %v2199 = vpop.f32.mrb[0].mxu0
    %v2200 = vpop.f32.mrb[0].mxu0
    %2201 = vdwg.mxu0
    %2202 = vmatprep.subr.bf16.mxu0 %v946
    %2203 = vmatpush1.bf16.msra.mxu0 %v945
    %2204 = vmatprep.subr.bf16.mxu0 %v950
    %2205 = vmatpush1.bf16.msra.mxu0 %v949
    %2206 = vmatprep.subr.bf16.mxu0 %v954
    %2207 = vmatpush1.bf16.msra.mxu0 %v953
    %2208 = vmatprep.subr.bf16.mxu0 %v958
    %2209 = vmatpush1.bf16.msra.mxu0 %v957
    %2210 = vmatprep.subr.bf16.mxu0 %v962
    %2211 = vmatpush1.bf16.msra.mxu0 %v961
    %2212 = vmatprep.subr.bf16.mxu0 %v966
    %2213 = vmatpush1.bf16.msra.mxu0 %v965
    %2214 = vmatprep.subr.bf16.mxu0 %v970
    %2215 = vmatpush1.bf16.msra.mxu0 %v969
    %2216 = vmatprep.subr.bf16.mxu0 %v974
    %2217 = vmatpush1.bf16.msra.mxu0 %v973
    %2218 = vmatprep.subr.bf16.mxu0 %v978
    %2219 = vmatpush1.bf16.msra.mxu0 %v977
    %2220 = vmatprep.subr.bf16.mxu0 %v982
    %2221 = vmatpush1.bf16.msra.mxu0 %v981
    %2222 = vmatprep.subr.bf16.mxu0 %v986
    %2223 = vmatpush1.bf16.msra.mxu0 %v985
    %2224 = vmatprep.subr.bf16.mxu0 %v990
    %2225 = vmatpush1.bf16.msra.mxu0 %v989
    %2226 = vmatprep.subr.bf16.mxu0 %v994
    %2227 = vmatpush1.bf16.msra.mxu0 %v993
    %2228 = vmatprep.subr.bf16.mxu0 %v998
    %2229 = vmatpush1.bf16.msra.mxu0 %v997
    %2230 = vmatprep.subr.bf16.mxu0 %v1002
    %2231 = vmatpush1.bf16.msra.mxu0 %v1001
    %2232 = vmatprep.subr.bf16.mxu0 %v1006
    %2233 = vmatpush1.bf16.msra.mxu0 %v1005
    %2234 = vmatprep.mubr.bf16.mxu0 %v2049
    %2235 = vmatmul.mubr.bf16.gmra.mrb[0].mxu0 %v2160
    %v2236 = vpop.f32.mrb[0].mxu0
    %v2237 = vadd.f32 %v375, %v2236
    %v2238 = vpop.f32.mrb[0].mxu0
    %v2239 = vadd.f32 %v379, %v2238
    %v2240 = vpop.f32.mrb[0].mxu0
    %v2241 = vpop.f32.mrb[0].mxu0
    %2242 = vdwg.mxu0
    %v2243 = vxor.u32 %v2196, 2147483648
    %v2244 = vmul.f32 %v2243, 1.442695
    %v2245 = vpow.pop %v2244
    %v2246 = vadd.f32 %v2245, 1.0
    %v2247 = vrcp.pop %v2246
    %v2248 = vmul.f32 1.0, %v2247
    %v2249 = vxor.u32 %v2198, 2147483648
    %v2250 = vmul.f32 %v2249, 1.442695
    %v2251 = vpow.pop %v2250
    %v2252 = vadd.f32 %v2251, 1.0
    %v2253 = vrcp.pop %v2252
    %v2254 = vmul.f32 1.0, %v2253
    %v2255 = vtanh.pop %v2237
    %v2256 = vxor.u32 %v2239, 2147483648
    %v2257 = vmul.f32 %v2256, 1.442695
    %v2258 = vpow.pop %v2257
    %v2259 = vadd.f32 %v2258, 1.0
    %v2260 = vrcp.pop %v2259
    %v2261 = vmul.f32 1.0, %v2260
    %v2262 = vmul.f32 %v2254, %v2046
    %v2263 = vmul.f32 %v2248, %v2255
    %v2264 = vadd.f32 %v2262, %v2263
    %v2265 = vtanh.pop %v2264
    %v2266 = vmul.f32 %v2261, %v2265
    %v2267 = vpack.c.bf16 %v2266, %v2266
    %2268 = vmatprep.subr.bf16.mxu0 %v513
    %2269 = vmatpush1.bf16.msra.mxu0 %v512
    %2270 = vmatprep.subr.bf16.mxu0 %v517
    %2271 = vmatpush1.bf16.msra.mxu0 %v516
    %2272 = vmatprep.subr.bf16.mxu0 %v521
    %2273 = vmatpush1.bf16.msra.mxu0 %v520
    %2274 = vmatprep.subr.bf16.mxu0 %v525
    %2275 = vmatpush1.bf16.msra.mxu0 %v524
    %2276 = vmatprep.subr.bf16.mxu0 %v529
    %2277 = vmatpush1.bf16.msra.mxu0 %v528
    %2278 = vmatprep.subr.bf16.mxu0 %v533
    %2279 = vmatpush1.bf16.msra.mxu0 %v532
    %2280 = vmatprep.subr.bf16.mxu0 %v537
    %2281 = vmatpush1.bf16.msra.mxu0 %v536
    %2282 = vmatprep.subr.bf16.mxu0 %v541
    %2283 = vmatpush1.bf16.msra.mxu0 %v540
    %2284 = vmatprep.subr.bf16.mxu0 0
    %2285 = vmatpush1.bf16.msra.mxu0 0
    %2286 = vmatprep.subr.bf16.mxu0 0
    %2287 = vmatpush1.bf16.msra.mxu0 0
    %2288 = vmatprep.subr.bf16.mxu0 0
    %2289 = vmatpush1.bf16.msra.mxu0 0
    %2290 = vmatprep.subr.bf16.mxu0 0
    %2291 = vmatpush1.bf16.msra.mxu0 0
    %2292 = vmatprep.subr.bf16.mxu0 0
    %2293 = vmatpush1.bf16.msra.mxu0 0
    %2294 = vmatprep.subr.bf16.mxu0 0
    %2295 = vmatpush1.bf16.msra.mxu0 0
    %2296 = vmatprep.subr.bf16.mxu0 0
    %2297 = vmatpush1.bf16.msra.mxu0 0
    %2298 = vmatprep.subr.bf16.mxu0 0
    %2299 = vmatpush1.bf16.msra.mxu0 0
    %2300 = vmatprep.mubr.bf16.mxu0 0
    %2301 = vmatmul.mubr.bf16.gmra.mrb[0].mxu0 %v2160
    %v2302 = vpop.f32.mrb[0].mxu0
    %v2303 = vadd.f32 0.0, %v2302
    %v2304 = vpop.f32.mrb[0].mxu0
    %v2305 = vadd.f32 0.0, %v2304
    %v2306 = vpop.f32.mrb[0].mxu0
    %v2307 = vpop.f32.mrb[0].mxu0
    %2308 = vdwg.mxu0
    %2309 = vmatprep.subr.bf16.mxu0 %v515
    %2310 = vmatpush1.bf16.msra.mxu0 %v514
    %2311 = vmatprep.subr.bf16.mxu0 %v519
    %2312 = vmatpush1.bf16.msra.mxu0 %v518
    %2313 = vmatprep.subr.bf16.mxu0 %v523
    %2314 = vmatpush1.bf16.msra.mxu0 %v522
    %2315 = vmatprep.subr.bf16.mxu0 %v527
    %2316 = vmatpush1.bf16.msra.mxu0 %v526
    %2317 = vmatprep.subr.bf16.mxu0 %v531
    %2318 = vmatpush1.bf16.msra.mxu0 %v530
    %2319 = vmatprep.subr.bf16.mxu0 %v535
    %2320 = vmatpush1.bf16.msra.mxu0 %v534
    %2321 = vmatprep.subr.bf16.mxu0 %v539
    %2322 = vmatpush1.bf16.msra.mxu0 %v538
    %2323 = vmatprep.subr.bf16.mxu0 %v543
    %2324 = vmatpush1.bf16.msra.mxu0 %v542
    %2325 = vmatprep.subr.bf16.mxu0 0
    %2326 = vmatpush1.bf16.msra.mxu0 0
    %2327 = vmatprep.subr.bf16.mxu0 0
    %2328 = vmatpush1.bf16.msra.mxu0 0
    %2329 = vmatprep.subr.bf16.mxu0 0
    %2330 = vmatpush1.bf16.msra.mxu0 0
    %2331 = vmatprep.subr.bf16.mxu0 0
    %2332 = vmatpush1.bf16.msra.mxu0 0
    %2333 = vmatprep.subr.bf16.mxu0 0
    %2334 = vmatpush1.bf16.msra.mxu0 0
    %2335 = vmatprep.subr.bf16.mxu0 0
    %2336 = vmatpush1.bf16.msra.mxu0 0
    %2337 = vmatprep.subr.bf16.mxu0 0
    %2338 = vmatpush1.bf16.msra.mxu0 0
    %2339 = vmatprep.subr.bf16.mxu0 0
    %2340 = vmatpush1.bf16.msra.mxu0 0
    %2341 = vmatprep.mubr.bf16.mxu0 0
    %2342 = vmatmul.mubr.bf16.gmra.mrb[0].mxu0 %v2160
    %v2343 = vpop.f32.mrb[0].mxu0
    %v2344 = vadd.f32 0.0, %v2343
    %v2345 = vpop.f32.mrb[0].mxu0
    %v2346 = vadd.f32 0.0, %v2345
    %v2347 = vpop.f32.mrb[0].mxu0
    %v2348 = vpop.f32.mrb[0].mxu0
    %2349 = vdwg.mxu0
    %v2350 = vadd.f32 %v239, %v2303
    %v2351 = vadd.f32 %v241, %v2305
    %v2352 = vadd.f32 %v352, %v2344
    %v2353 = vadd.f32 %v354, %v2346
    %v2354 = vxor.u32 %v2350, 2147483648
    %v2355 = vmul.f32 %v2354, 1.442695
    %v2356 = vpow.pop %v2355
    %v2357 = vadd.f32 %v2356, 1.0
    %v2358 = vrcp.pop %v2357
    %v2359 = vmul.f32 1.0, %v2358
    %v2360 = vxor.u32 %v2351, 2147483648
    %v2361 = vmul.f32 %v2360, 1.442695
    %v2362 = vpow.pop %v2361
    %v2363 = vadd.f32 %v2362, 1.0
    %v2364 = vrcp.pop %v2363
    %v2365 = vmul.f32 1.0, %v2364
    %v2366 = vtanh.pop %v2352
    %v2367 = vxor.u32 %v2353, 2147483648
    %v2368 = vmul.f32 %v2367, 1.442695
    %v2369 = vpow.pop %v2368
    %v2370 = vadd.f32 %v2369, 1.0
    %v2371 = vrcp.pop %v2370
    %v2372 = vmul.f32 1.0, %v2371
    %v2373 = vmul.f32 %v2365, %v2157
    %v2374 = vmul.f32 %v2359, %v2366
    %v2375 = vadd.f32 %v2373, %v2374
    %v2376 = vtanh.pop %v2375
    %v2377 = vmul.f32 %v2372, %v2376
    %v2378 = vpack.c.bf16 %v2377, %v2377
    %2379 = vmatprep.subr.bf16.mxu0 %v944
    %2380 = vmatpush1.bf16.msra.mxu0 %v943
    %2381 = vmatprep.subr.bf16.mxu0 %v948
    %2382 = vmatpush1.bf16.msra.mxu0 %v947
    %2383 = vmatprep.subr.bf16.mxu0 %v952
    %2384 = vmatpush1.bf16.msra.mxu0 %v951
    %2385 = vmatprep.subr.bf16.mxu0 %v956
    %2386 = vmatpush1.bf16.msra.mxu0 %v955
    %2387 = vmatprep.subr.bf16.mxu0 %v960
    %2388 = vmatpush1.bf16.msra.mxu0 %v959
    %2389 = vmatprep.subr.bf16.mxu0 %v964
    %2390 = vmatpush1.bf16.msra.mxu0 %v963
    %2391 = vmatprep.subr.bf16.mxu0 %v968
    %2392 = vmatpush1.bf16.msra.mxu0 %v967
    %2393 = vmatprep.subr.bf16.mxu0 %v972
    %2394 = vmatpush1.bf16.msra.mxu0 %v971
    %2395 = vmatprep.subr.bf16.mxu0 %v976
    %2396 = vmatpush1.bf16.msra.mxu0 %v975
    %2397 = vmatprep.subr.bf16.mxu0 %v980
    %2398 = vmatpush1.bf16.msra.mxu0 %v979
    %2399 = vmatprep.subr.bf16.mxu0 %v984
    %2400 = vmatpush1.bf16.msra.mxu0 %v983
    %2401 = vmatprep.subr.bf16.mxu0 %v988
    %2402 = vmatpush1.bf16.msra.mxu0 %v987
    %2403 = vmatprep.subr.bf16.mxu0 %v992
    %2404 = vmatpush1.bf16.msra.mxu0 %v991
    %2405 = vmatprep.subr.bf16.mxu0 %v996
    %2406 = vmatpush1.bf16.msra.mxu0 %v995
    %2407 = vmatprep.subr.bf16.mxu0 %v1000
    %2408 = vmatpush1.bf16.msra.mxu0 %v999
    %2409 = vmatprep.subr.bf16.mxu0 %v1004
    %2410 = vmatpush1.bf16.msra.mxu0 %v1003
    %2411 = vmatprep.mubr.bf16.mxu0 %v2267
    %2412 = vmatmul.mubr.bf16.gmra.mrb[0].mxu0 %v2378
    %v2413 = vpop.f32.mrb[0].mxu0
    %v2414 = vadd.f32 %v367, %v2413
    %v2415 = vpop.f32.mrb[0].mxu0
    %v2416 = vadd.f32 %v371, %v2415
    %v2417 = vpop.f32.mrb[0].mxu0
    %v2418 = vpop.f32.mrb[0].mxu0
    %2419 = vdwg.mxu0
    %2420 = vmatprep.subr.bf16.mxu0 %v946
    %2421 = vmatpush1.bf16.msra.mxu0 %v945
    %2422 = vmatprep.subr.bf16.mxu0 %v950
    %2423 = vmatpush1.bf16.msra.mxu0 %v949
    %2424 = vmatprep.subr.bf16.mxu0 %v954
    %2425 = vmatpush1.bf16.msra.mxu0 %v953
    %2426 = vmatprep.subr.bf16.mxu0 %v958
    %2427 = vmatpush1.bf16.msra.mxu0 %v957
    %2428 = vmatprep.subr.bf16.mxu0 %v962
    %2429 = vmatpush1.bf16.msra.mxu0 %v961
    %2430 = vmatprep.subr.bf16.mxu0 %v966
    %2431 = vmatpush1.bf16.msra.mxu0 %v965
    %2432 = vmatprep.subr.bf16.mxu0 %v970
    %2433 = vmatpush1.bf16.msra.mxu0 %v969
    %2434 = vmatprep.subr.bf16.mxu0 %v974
    %2435 = vmatpush1.bf16.msra.mxu0 %v973
    %2436 = vmatprep.subr.bf16.mxu0 %v978
    %2437 = vmatpush1.bf16.msra.mxu0 %v977
    %2438 = vmatprep.subr.bf16.mxu0 %v982
    %2439 = vmatpush1.bf16.msra.mxu0 %v981
    %2440 = vmatprep.subr.bf16.mxu0 %v986
    %2441 = vmatpush1.bf16.msra.mxu0 %v985
    %2442 = vmatprep.subr.bf16.mxu0 %v990
    %2443 = vmatpush1.bf16.msra.mxu0 %v989
    %2444 = vmatprep.subr.bf16.mxu0 %v994
    %2445 = vmatpush1.bf16.msra.mxu0 %v993
    %2446 = vmatprep.subr.bf16.mxu0 %v998
    %2447 = vmatpush1.bf16.msra.mxu0 %v997
    %2448 = vmatprep.subr.bf16.mxu0 %v1002
    %2449 = vmatpush1.bf16.msra.mxu0 %v1001
    %2450 = vmatprep.subr.bf16.mxu0 %v1006
    %2451 = vmatpush1.bf16.msra.mxu0 %v1005
    %2452 = vmatprep.mubr.bf16.mxu0 %v2267
    %2453 = vmatmul.mubr.bf16.gmra.mrb[0].mxu0 %v2378
    %v2454 = vpop.f32.mrb[0].mxu0
    %v2455 = vadd.f32 %v375, %v2454
    %v2456 = vpop.f32.mrb[0].mxu0
    %v2457 = vadd.f32 %v379, %v2456
    %v2458 = vpop.f32.mrb[0].mxu0
    %v2459 = vpop.f32.mrb[0].mxu0
    %2460 = vdwg.mxu0
    %v2461 = vxor.u32 %v2414, 2147483648
    %v2462 = vmul.f32 %v2461, 1.442695
    %v2463 = vpow.pop %v2462
    %v2464 = vadd.f32 %v2463, 1.0
    %v2465 = vrcp.pop %v2464
    %v2466 = vmul.f32 1.0, %v2465
    %v2467 = vxor.u32 %v2416, 2147483648
    %v2468 = vmul.f32 %v2467, 1.442695
    %v2469 = vpow.pop %v2468
    %v2470 = vadd.f32 %v2469, 1.0
    %v2471 = vrcp.pop %v2470
    %v2472 = vmul.f32 1.0, %v2471
    %v2473 = vtanh.pop %v2455
    %v2474 = vxor.u32 %v2457, 2147483648
    %v2475 = vmul.f32 %v2474, 1.442695
    %v2476 = vpow.pop %v2475
    %v2477 = vadd.f32 %v2476, 1.0
    %v2478 = vrcp.pop %v2477
    %v2479 = vmul.f32 1.0, %v2478
    %v2480 = vmul.f32 %v2472, %v2264
    %v2481 = vmul.f32 %v2466, %v2473
    %v2482 = vadd.f32 %v2480, %v2481
    %v2483 = vtanh.pop %v2482
    %v2484 = vmul.f32 %v2479, %v2483
    %v2485 = vpack.c.bf16 %v2484, %v2484
    %2486 = vmatprep.subr.bf16.mxu0 %v513
    %2487 = vmatpush1.bf16.msra.mxu0 %v512
    %2488 = vmatprep.subr.bf16.mxu0 %v517
    %2489 = vmatpush1.bf16.msra.mxu0 %v516
    %2490 = vmatprep.subr.bf16.mxu0 %v521
    %2491 = vmatpush1.bf16.msra.mxu0 %v520
    %2492 = vmatprep.subr.bf16.mxu0 %v525
    %2493 = vmatpush1.bf16.msra.mxu0 %v524
    %2494 = vmatprep.subr.bf16.mxu0 %v529
    %2495 = vmatpush1.bf16.msra.mxu0 %v528
    %2496 = vmatprep.subr.bf16.mxu0 %v533
    %2497 = vmatpush1.bf16.msra.mxu0 %v532
    %2498 = vmatprep.subr.bf16.mxu0 %v537
    %2499 = vmatpush1.bf16.msra.mxu0 %v536
    %2500 = vmatprep.subr.bf16.mxu0 %v541
    %2501 = vmatpush1.bf16.msra.mxu0 %v540
    %2502 = vmatprep.subr.bf16.mxu0 0
    %2503 = vmatpush1.bf16.msra.mxu0 0
    %2504 = vmatprep.subr.bf16.mxu0 0
    %2505 = vmatpush1.bf16.msra.mxu0 0
    %2506 = vmatprep.subr.bf16.mxu0 0
    %2507 = vmatpush1.bf16.msra.mxu0 0
    %2508 = vmatprep.subr.bf16.mxu0 0
    %2509 = vmatpush1.bf16.msra.mxu0 0
    %2510 = vmatprep.subr.bf16.mxu0 0
    %2511 = vmatpush1.bf16.msra.mxu0 0
    %2512 = vmatprep.subr.bf16.mxu0 0
    %2513 = vmatpush1.bf16.msra.mxu0 0
    %2514 = vmatprep.subr.bf16.mxu0 0
    %2515 = vmatpush1.bf16.msra.mxu0 0
    %2516 = vmatprep.subr.bf16.mxu0 0
    %2517 = vmatpush1.bf16.msra.mxu0 0
    %2518 = vmatprep.mubr.bf16.mxu0 0
    %2519 = vmatmul.mubr.bf16.gmra.mrb[0].mxu0 %v2378
    %v2520 = vpop.f32.mrb[0].mxu0
    %v2521 = vadd.f32 0.0, %v2520
    %v2522 = vpop.f32.mrb[0].mxu0
    %v2523 = vadd.f32 0.0, %v2522
    %v2524 = vpop.f32.mrb[0].mxu0
    %v2525 = vpop.f32.mrb[0].mxu0
    %2526 = vdwg.mxu0
    %2527 = vmatprep.subr.bf16.mxu0 %v515
    %2528 = vmatpush1.bf16.msra.mxu0 %v514
    %2529 = vmatprep.subr.bf16.mxu0 %v519
    %2530 = vmatpush1.bf16.msra.mxu0 %v518
    %2531 = vmatprep.subr.bf16.mxu0 %v523
    %2532 = vmatpush1.bf16.msra.mxu0 %v522
    %2533 = vmatprep.subr.bf16.mxu0 %v527
    %2534 = vmatpush1.bf16.msra.mxu0 %v526
    %2535 = vmatprep.subr.bf16.mxu0 %v531
    %2536 = vmatpush1.bf16.msra.mxu0 %v530
    %2537 = vmatprep.subr.bf16.mxu0 %v535
    %2538 = vmatpush1.bf16.msra.mxu0 %v534
    %2539 = vmatprep.subr.bf16.mxu0 %v539
    %2540 = vmatpush1.bf16.msra.mxu0 %v538
    %2541 = vmatprep.subr.bf16.mxu0 %v543
    %2542 = vmatpush1.bf16.msra.mxu0 %v542
    %2543 = vmatprep.subr.bf16.mxu0 0
    %2544 = vmatpush1.bf16.msra.mxu0 0
    %2545 = vmatprep.subr.bf16.mxu0 0
    %2546 = vmatpush1.bf16.msra.mxu0 0
    %2547 = vmatprep.subr.bf16.mxu0 0
    %2548 = vmatpush1.bf16.msra.mxu0 0
    %2549 = vmatprep.subr.bf16.mxu0 0
    %2550 = vmatpush1.bf16.msra.mxu0 0
    %2551 = vmatprep.subr.bf16.mxu0 0
    %2552 = vmatpush1.bf16.msra.mxu0 0
    %2553 = vmatprep.subr.bf16.mxu0 0
    %2554 = vmatpush1.bf16.msra.mxu0 0
    %2555 = vmatprep.subr.bf16.mxu0 0
    %2556 = vmatpush1.bf16.msra.mxu0 0
    %2557 = vmatprep.subr.bf16.mxu0 0
    %2558 = vmatpush1.bf16.msra.mxu0 0
    %2559 = vmatprep.mubr.bf16.mxu0 0
    %2560 = vmatmul.mubr.bf16.gmra.mrb[0].mxu0 %v2378
    %v2561 = vpop.f32.mrb[0].mxu0
    %v2562 = vadd.f32 0.0, %v2561
    %v2563 = vpop.f32.mrb[0].mxu0
    %v2564 = vadd.f32 0.0, %v2563
    %v2565 = vpop.f32.mrb[0].mxu0
    %v2566 = vpop.f32.mrb[0].mxu0
    %2567 = vdwg.mxu0
    %v2568 = vadd.f32 %v245, %v2521
    %v2569 = vadd.f32 %v247, %v2523
    %v2570 = vadd.f32 %v358, %v2562
    %v2571 = vadd.f32 %v360, %v2564
    %v2572 = vxor.u32 %v2568, 2147483648
    %v2573 = vmul.f32 %v2572, 1.442695
    %v2574 = vpow.pop %v2573
    %v2575 = vadd.f32 %v2574, 1.0
    %v2576 = vrcp.pop %v2575
    %v2577 = vmul.f32 1.0, %v2576
    %v2578 = vxor.u32 %v2569, 2147483648
    %v2579 = vmul.f32 %v2578, 1.442695
    %v2580 = vpow.pop %v2579
    %v2581 = vadd.f32 %v2580, 1.0
    %v2582 = vrcp.pop %v2581
    %v2583 = vmul.f32 1.0, %v2582
    %v2584 = vtanh.pop %v2570
    %v2585 = vxor.u32 %v2571, 2147483648
    %v2586 = vmul.f32 %v2585, 1.442695
    %v2587 = vpow.pop %v2586
    %v2588 = vadd.f32 %v2587, 1.0
    %v2589 = vrcp.pop %v2588
    %v2590 = vmul.f32 1.0, %v2589
    %v2591 = vmul.f32 %v2583, %v2375
    %v2592 = vmul.f32 %v2577, %v2584
    %v2593 = vadd.f32 %v2591, %v2592
    %v2594 = vtanh.pop %v2593
    %v2595 = vmul.f32 %v2590, %v2594
    %v2596 = vpack.c.bf16 %v2595, %v2595
    %2597 = vmatprep.subr.bf16.mxu0 %v944
    %2598 = vmatpush1.bf16.msra.mxu0 %v943
    %2599 = vmatprep.subr.bf16.mxu0 %v948
    %2600 = vmatpush1.bf16.msra.mxu0 %v947
    %2601 = vmatprep.subr.bf16.mxu0 %v952
    %2602 = vmatpush1.bf16.msra.mxu0 %v951
    %2603 = vmatprep.subr.bf16.mxu0 %v956
    %2604 = vmatpush1.bf16.msra.mxu0 %v955
    %2605 = vmatprep.subr.bf16.mxu0 %v960
    %2606 = vmatpush1.bf16.msra.mxu0 %v959
    %2607 = vmatprep.subr.bf16.mxu0 %v964
    %2608 = vmatpush1.bf16.msra.mxu0 %v963
    %2609 = vmatprep.subr.bf16.mxu0 %v968
    %2610 = vmatpush1.bf16.msra.mxu0 %v967
    %2611 = vmatprep.subr.bf16.mxu0 %v972
    %2612 = vmatpush1.bf16.msra.mxu0 %v971
    %2613 = vmatprep.subr.bf16.mxu0 %v976
    %2614 = vmatpush1.bf16.msra.mxu0 %v975
    %2615 = vmatprep.subr.bf16.mxu0 %v980
    %2616 = vmatpush1.bf16.msra.mxu0 %v979
    %2617 = vmatprep.subr.bf16.mxu0 %v984
    %2618 = vmatpush1.bf16.msra.mxu0 %v983
    %2619 = vmatprep.subr.bf16.mxu0 %v988
    %2620 = vmatpush1.bf16.msra.mxu0 %v987
    %2621 = vmatprep.subr.bf16.mxu0 %v992
    %2622 = vmatpush1.bf16.msra.mxu0 %v991
    %2623 = vmatprep.subr.bf16.mxu0 %v996
    %2624 = vmatpush1.bf16.msra.mxu0 %v995
    %2625 = vmatprep.subr.bf16.mxu0 %v1000
    %2626 = vmatpush1.bf16.msra.mxu0 %v999
    %2627 = vmatprep.subr.bf16.mxu0 %v1004
    %2628 = vmatpush1.bf16.msra.mxu0 %v1003
    %2629 = vmatprep.mubr.bf16.mxu0 %v2485
    %2630 = vmatmul.mubr.bf16.gmra.mrb[0].mxu0 %v2596
    %v2631 = vpop.f32.mrb[0].mxu0
    %v2632 = vadd.f32 %v367, %v2631
    %v2633 = vpop.f32.mrb[0].mxu0
    %v2634 = vadd.f32 %v371, %v2633
    %v2635 = vpop.f32.mrb[0].mxu0
    %v2636 = vpop.f32.mrb[0].mxu0
    %2637 = vdwg.mxu0
    %2638 = vmatprep.subr.bf16.mxu0 %v946
    %2639 = vmatpush1.bf16.msra.mxu0 %v945
    %2640 = vmatprep.subr.bf16.mxu0 %v950
    %2641 = vmatpush1.bf16.msra.mxu0 %v949
    %2642 = vmatprep.subr.bf16.mxu0 %v954
    %2643 = vmatpush1.bf16.msra.mxu0 %v953
    %2644 = vmatprep.subr.bf16.mxu0 %v958
    %2645 = vmatpush1.bf16.msra.mxu0 %v957
    %2646 = vmatprep.subr.bf16.mxu0 %v962
    %2647 = vmatpush1.bf16.msra.mxu0 %v961
    %2648 = vmatprep.subr.bf16.mxu0 %v966
    %2649 = vmatpush1.bf16.msra.mxu0 %v965
    %2650 = vmatprep.subr.bf16.mxu0 %v970
    %2651 = vmatpush1.bf16.msra.mxu0 %v969
    %2652 = vmatprep.subr.bf16.mxu0 %v974
    %2653 = vmatpush1.bf16.msra.mxu0 %v973
    %2654 = vmatprep.subr.bf16.mxu0 %v978
    %2655 = vmatpush1.bf16.msra.mxu0 %v977
    %2656 = vmatprep.subr.bf16.mxu0 %v982
    %2657 = vmatpush1.bf16.msra.mxu0 %v981
    %2658 = vmatprep.subr.bf16.mxu0 %v986
    %2659 = vmatpush1.bf16.msra.mxu0 %v985
    %2660 = vmatprep.subr.bf16.mxu0 %v990
    %2661 = vmatpush1.bf16.msra.mxu0 %v989
    %2662 = vmatprep.subr.bf16.mxu0 %v994
    %2663 = vmatpush1.bf16.msra.mxu0 %v993
    %2664 = vmatprep.subr.bf16.mxu0 %v998
    %2665 = vmatpush1.bf16.msra.mxu0 %v997
    %2666 = vmatprep.subr.bf16.mxu0 %v1002
    %2667 = vmatpush1.bf16.msra.mxu0 %v1001
    %2668 = vmatprep.subr.bf16.mxu0 %v1006
    %2669 = vmatpush1.bf16.msra.mxu0 %v1005
    %2670 = vmatprep.mubr.bf16.mxu0 %v2485
    %2671 = vmatmul.mubr.bf16.gmra.mrb[0].mxu0 %v2596
    %v2672 = vpop.f32.mrb[0].mxu0
    %v2673 = vadd.f32 %v375, %v2672
    %v2674 = vpop.f32.mrb[0].mxu0
    %v2675 = vadd.f32 %v379, %v2674
    %v2676 = vpop.f32.mrb[0].mxu0
    %v2677 = vpop.f32.mrb[0].mxu0
    %2678 = vdwg.mxu0
    %v2679 = vxor.u32 %v2632, 2147483648
    %v2680 = vmul.f32 %v2679, 1.442695
    %v2681 = vpow.pop %v2680
    %v2682 = vadd.f32 %v2681, 1.0
    %v2683 = vrcp.pop %v2682
    %v2684 = vmul.f32 1.0, %v2683
    %v2685 = vxor.u32 %v2634, 2147483648
    %v2686 = vmul.f32 %v2685, 1.442695
    %v2687 = vpow.pop %v2686
    %v2688 = vadd.f32 %v2687, 1.0
    %v2689 = vrcp.pop %v2688
    %v2690 = vmul.f32 1.0, %v2689
    %v2691 = vtanh.pop %v2673
    %v2692 = vxor.u32 %v2675, 2147483648
    %v2693 = vmul.f32 %v2692, 1.442695
    %v2694 = vpow.pop %v2693
    %v2695 = vadd.f32 %v2694, 1.0
    %v2696 = vrcp.pop %v2695
    %v2697 = vmul.f32 1.0, %v2696
    %v2698 = vmul.f32 %v2690, %v2482
    %v2699 = vmul.f32 %v2684, %v2691
    %v2700 = vadd.f32 %v2698, %v2699
    %v2701 = vtanh.pop %v2700
    %v2702 = vmul.f32 %v2697, %v2701
    %v2703 = vld [vmem:[%s6] sm:$0xff]
    %v2704 = vld [vmem:[%s6 + $0x8] sm:$0xff]
    %v2705 = vld [vmem:[%s6 + $0x10] sm:$0xff]
    %v2706 = vld [vmem:[%s6 + $0x18] sm:$0xff]
    %v2707 = vld [vmem:[%s6 + $0x20] sm:$0xff]
    %v2708 = vld [vmem:[%s6 + $0x28] sm:$0xff]
    %v2709 = vld [vmem:[%s6 + $0x30] sm:$0xff]
    %v2710 = vld [vmem:[%s6 + $0x38] sm:$0xff]
    %v2711 = vld [vmem:[%s6 + $0x40] sm:$0xff]
    %v2712 = vld [vmem:[%s6 + $0x48] sm:$0xff]
    %v2713 = vld [vmem:[%s6 + $0x50] sm:$0xff]
    %v2714 = vld [vmem:[%s6 + $0x58] sm:$0xff]
    %v2715 = vld [vmem:[%s6 + $0x60] sm:$0xff]
    %v2716 = vld [vmem:[%s6 + $0x68] sm:$0xff]
    %v2717 = vld [vmem:[%s6 + $0x70] sm:$0xff]
    %v2718 = vld [vmem:[%s6 + $0x78] sm:$0xff]
    %v2719 = vld [vmem:[#allocation2] sm:$0x1]
    %v2721 = vlaneseq
    %v2722 = vshrl.u32 %v2721, 7
    %v2723 = vsub.s32 0, %v2722
    %v2724 = vrot.slane %v2719, %v2723
    %2726 = vmatprep.subr.mxu0 0.0
    %2727 = vmatpush1.msra.mxu0 %v2703
    %2728 = vmatprep.subr.mxu0 0.0
    %2729 = vmatpush1.msra.mxu0 %v2704
    %2730 = vmatprep.subr.mxu0 0.0
    %2731 = vmatpush1.msra.mxu0 %v2705
    %2732 = vmatprep.subr.mxu0 0.0
    %2733 = vmatpush1.msra.mxu0 %v2706
    %2734 = vmatprep.subr.mxu0 0.0
    %2735 = vmatpush1.msra.mxu0 %v2707
    %2736 = vmatprep.subr.mxu0 0.0
    %2737 = vmatpush1.msra.mxu0 %v2708
    %2738 = vmatprep.subr.mxu0 0.0
    %2739 = vmatpush1.msra.mxu0 %v2709
    %2740 = vmatprep.subr.mxu0 0.0
    %2741 = vmatpush1.msra.mxu0 %v2710
    %2742 = vmatprep.subr.mxu0 0.0
    %2743 = vmatpush1.msra.mxu0 %v2711
    %2744 = vmatprep.subr.mxu0 0.0
    %2745 = vmatpush1.msra.mxu0 %v2712
    %2746 = vmatprep.subr.mxu0 0.0
    %2747 = vmatpush1.msra.mxu0 %v2713
    %2748 = vmatprep.subr.mxu0 0.0
    %2749 = vmatpush1.msra.mxu0 %v2714
    %2750 = vmatprep.subr.mxu0 0.0
    %2751 = vmatpush1.msra.mxu0 %v2715
    %2752 = vmatprep.subr.mxu0 0.0
    %2753 = vmatpush1.msra.mxu0 %v2716
    %2754 = vmatprep.subr.mxu0 0.0
    %2755 = vmatpush1.msra.mxu0 %v2717
    %2756 = vmatprep.subr.mxu0 0.0
    %2757 = vmatpush1.msra.mxu0 %v2718
    %2758 = vmatprep.subr.mxu0 0.0
    %2759 = vmatpush1.msra.mxu0 0.0
    %2760 = vmatprep.subr.mxu0 0.0
    %2761 = vmatpush1.msra.mxu0 0.0
    %2762 = vmatprep.subr.mxu0 0.0
    %2763 = vmatpush1.msra.mxu0 0.0
    %2764 = vmatprep.subr.mxu0 0.0
    %2765 = vmatpush1.msra.mxu0 0.0
    %2766 = vmatprep.subr.mxu0 0.0
    %2767 = vmatpush1.msra.mxu0 0.0
    %2768 = vmatprep.subr.mxu0 0.0
    %2769 = vmatpush1.msra.mxu0 0.0
    %2770 = vmatprep.subr.mxu0 0.0
    %2771 = vmatpush1.msra.mxu0 0.0
    %2772 = vmatprep.subr.mxu0 0.0
    %2773 = vmatpush1.msra.mxu0 0.0
    %2774 = vmatprep.subr.mxu0 0.0
    %2775 = vmatpush1.msra.mxu0 0.0
    %2776 = vmatprep.subr.mxu0 0.0
    %2777 = vmatpush1.msra.mxu0 0.0
    %2778 = vmatprep.subr.mxu0 0.0
    %2779 = vmatpush1.msra.mxu0 0.0
    %2780 = vmatprep.subr.mxu0 0.0
    %2781 = vmatpush1.msra.mxu0 0.0
    %2782 = vmatprep.subr.mxu0 0.0
    %2783 = vmatpush1.msra.mxu0 0.0
    %2784 = vmatprep.subr.mxu0 0.0
    %2785 = vmatpush1.msra.mxu0 0.0
    %2786 = vmatprep.subr.mxu0 0.0
    %2787 = vmatpush1.msra.mxu0 0.0
    %2788 = vmatprep.subr.mxu0 0.0
    %2789 = vmatpush1.msra.mxu0 0.0
    %2790 = vmatprep.mubr.f32.mxu0 0.0
    %2791 = vmatmul.mubr.f32.gmra.mrb[0].mxu0 %v2702
    %v2792 = vpop.f32.mrb[0].mxu0
    %v2793 = vadd.f32 %v2724, %v2792
    %v2794 = vpop.f32.mrb[0].mxu0
    %2795 = vdwg.mxu0
    %vm2796 = vcmask 7168
    %2797 = vst.msk [vmem:[%s8] sm:$0xff] %vm2796, %v2793
    // Predicated region
    $region42: #{tpu_custom_call.1} parent=1 // pred_check
      _
    $region43: #{tpu_custom_call.1} parent=1 // pred_check_branch
      %2799 = sbr.rel (0) target = $region45
    $region44: #{tpu_custom_call.1} parent=1 // pred_region
      _
    $region45: #{tpu_custom_call.1} parent=1 // pred_fallthru
      _
    // Predicated region
    $region46: #{tpu_custom_call.1} parent=1 // pred_check
      _
    $region47: #{tpu_custom_call.1} parent=1 // pred_check_branch
      %2801 = sbr.rel (0) target = $region49
    $region48: #{tpu_custom_call.1} parent=1 // pred_region
      _
    $region49: #{tpu_custom_call.1} parent=1 // pred_fallthru
      _
    %2802 = vsyncpa [#allocation4], 1
    %2803 = vsyncpa [#allocation6], 1

</llo_original>
